<compile_context>
chip_gen: v7x
topology: tpu7x:2x2x1
jax: 0.10.0
libtpu: 0.0.40
codegen_flags: <defaults>
</compile_context>

<pallas_src>
import functools

import jax
import jax.numpy as jnp
from jax import lax
from jax.experimental import pallas as pl
from jax.experimental.pallas import tpu as pltpu

BN_EPS = 1e-5


# -----------------------------------------------------------------------------
# helpers
# -----------------------------------------------------------------------------
def _rup(x, m):
    return ((x + m - 1) // m) * m


def _tile_rows(M, bytes_per_row, max_tile=512, vmem_budget=20 << 20):
    """Pick a row tile.

    Prefer the whole M in one tile (fewest ~0.35us grid steps) when it fits in
    the VMEM budget; otherwise the largest multiple-of-8 divisor of M (so no
    wrapper-side padding); pad only as a last resort.  Larger M automatically
    yields >= 2 tiles, which is what the v7x megacore wants."""
    mt = max_tile
    while mt > 8 and 2 * mt * bytes_per_row > vmem_budget:
        mt //= 2
    if M <= mt:
        return M, M                       # single tile, no padding
    start = mt - (mt % 8)
    for tm in range(start, 7, -8):
        if M % tm == 0:
            return tm, M                  # divisor tile, no padding
    tm = max(8, start)
    return tm, _rup(M, tm)                # rare fallback: padded rows (zeros)


def _cparams(dims):
    # Generation-aware VMEM budget: ~75% of physical capacity (v7x: 64 MiB per
    # TensorCore; v5e/v6e: 128 MiB).  Fall back to the compiler default.
    try:
        vmem_limit = int(pltpu.get_tpu_info().vmem_capacity_bytes * 3 // 4)
    except Exception:
        vmem_limit = None
    return pltpu.CompilerParams(dimension_semantics=dims,
                                vmem_limit_bytes=vmem_limit)


# -----------------------------------------------------------------------------
# Pallas kernels
# -----------------------------------------------------------------------------
def _stats_block(acc):
    """Pack per-tile channel sum / sum-of-squares into an (8, C) block
    (row 0 = sum, row 1 = sum of squares, rest zero)."""
    row_sum = jnp.sum(acc, axis=0, keepdims=True)             # (1, C)
    row_ssq = jnp.sum(acc * acc, axis=0, keepdims=True)       # (1, C)
    rows = lax.broadcasted_iota(jnp.int32, (8, acc.shape[1]), 0)
    return jnp.where(rows == 0, row_sum,
                     jnp.where(rows == 1, row_ssq, 0.0))


def mm_stats_kernel(x_ref, w_ref, y_ref, st_ref):
    # (tm, K) @ (K, C) on the MXU, bf16 operands, f32 accumulate.
    acc = jnp.dot(x_ref[...], w_ref[...], preferred_element_type=jnp.float32)
    y_ref[...] = acc.astype(y_ref.dtype)
    st_ref[...] = _stats_block(acc)


def bnrelu_mm_stats_kernel(x_ref, s_ref, b_ref, w_ref, y_ref, st_ref, *,
                           tm, rows_valid):
    # Fused prologue: relu(x*scale + shift) on the VPU, then the MXU matmul.
    x = x_ref[...].astype(jnp.float32) * s_ref[...] + b_ref[...]
    x = jnp.maximum(x, 0.0)
    if rows_valid is not None:
        # only in the padded-M fallback: zero padded rows so the BN shift does
        # not leak into the batch statistics.
        ridx = pl.program_id(0) * tm + lax.broadcasted_iota(jnp.int32, x.shape, 0)
        x = jnp.where(ridx < rows_valid, x, 0.0)
    acc = jnp.dot(x.astype(jnp.bfloat16), w_ref[...],
                  preferred_element_type=jnp.float32)
    y_ref[...] = acc.astype(y_ref.dtype)
    st_ref[...] = _stats_block(acc)


def bn_res_relu_kernel(y_ref, s_ref, b_ref, r_ref, rs_ref, rb_ref, o_ref):
    # relu( y*scale + shift + residual*res_scale + res_shift )
    out = y_ref[...].astype(jnp.float32) * s_ref[...] + b_ref[...]
    out = out + r_ref[...].astype(jnp.float32) * rs_ref[...] + rb_ref[...]
    o_ref[...] = jnp.maximum(out, 0.0).astype(o_ref.dtype)


# -----------------------------------------------------------------------------
# Pallas wrappers
# -----------------------------------------------------------------------------
def matmul_stats(x2d, w, *, out_dtype=jnp.bfloat16):
    """x2d:(M,K) @ w:(K,C) -> (y:(M,C) out_dtype, stats:(nt,8,C) f32)."""
    M, K = x2d.shape
    C = w.shape[1]
    x2d = x2d.astype(jnp.bfloat16)
    w = w.astype(jnp.bfloat16)
    tm, Mp = _tile_rows(M, bytes_per_row=2 * K + 6 * C)
    if Mp != M:
        x2d = jnp.pad(x2d, ((0, Mp - M), (0, 0)))
    nt = Mp // tm
    y, stats = pl.pallas_call(
        mm_stats_kernel,
        out_shape=(jax.ShapeDtypeStruct((Mp, C), out_dtype),
                   jax.ShapeDtypeStruct((nt, 8, C), jnp.float32)),
        grid_spec=pltpu.PrefetchScalarGridSpec(
            num_scalar_prefetch=0,
            grid=(nt,),
            in_specs=[
                pl.BlockSpec((tm, K), lambda i: (i, 0)),
                pl.BlockSpec((K, C), lambda i: (0, 0)),   # resident weight
            ],
            out_specs=[
                pl.BlockSpec((tm, C), lambda i: (i, 0)),
                pl.BlockSpec((None, 8, C), lambda i: (i, 0, 0)),
            ],
        ),
        compiler_params=_cparams(("parallel",)),
    )(x2d, w)
    if Mp != M:
        y = y[:M]
    return y, stats


def matmul_bnrelu_stats(x2d, scale, shift, w, *, out_dtype=jnp.bfloat16):
    """relu(x2d*scale+shift) @ w with fused BN prologue and stats side output."""
    M, K = x2d.shape
    C = w.shape[1]
    w = w.astype(jnp.bfloat16)
    tm, Mp = _tile_rows(M, bytes_per_row=2 * K + 6 * C)
    xp = x2d if Mp == M else jnp.pad(x2d, ((0, Mp - M), (0, 0)))
    nt = Mp // tm
    kern = functools.partial(bnrelu_mm_stats_kernel, tm=tm,
                             rows_valid=(M if Mp != M else None))
    y, stats = pl.pallas_call(
        kern,
        out_shape=(jax.ShapeDtypeStruct((Mp, C), out_dtype),
                   jax.ShapeDtypeStruct((nt, 8, C), jnp.float32)),
        grid_spec=pltpu.PrefetchScalarGridSpec(
            num_scalar_prefetch=0,
            grid=(nt,),
            in_specs=[
                pl.BlockSpec((tm, K), lambda i: (i, 0)),
                pl.BlockSpec((1, K), lambda i: (0, 0)),
                pl.BlockSpec((1, K), lambda i: (0, 0)),
                pl.BlockSpec((K, C), lambda i: (0, 0)),
            ],
            out_specs=[
                pl.BlockSpec((tm, C), lambda i: (i, 0)),
                pl.BlockSpec((None, 8, C), lambda i: (i, 0, 0)),
            ],
        ),
        compiler_params=_cparams(("parallel",)),
    )(xp, scale.reshape(1, K).astype(jnp.float32),
      shift.reshape(1, K).astype(jnp.float32), w)
    if Mp != M:
        y = y[:M]
    return y, stats


def _finalize_bn(stats, M, gamma, beta):
    """Tiny reduction of per-tile (sum, sumsq) -> BN scale/shift (batch stats,
    biased variance like PyTorch train-mode normalization)."""
    s = jnp.sum(stats[:, 0, :], axis=0)
    q = jnp.sum(stats[:, 1, :], axis=0)
    mean = s / M
    var = jnp.maximum(q / M - mean * mean, 0.0)
    scale = gamma * lax.rsqrt(var + BN_EPS)
    shift = beta - mean * scale
    return scale, shift


def conv3x3_patches(y1, scale1, shift1, N, H, W, Cin, stride):
    """bn1-apply + ReLU fused (by XLA) into the im2col patch construction.
    Returns ((M, 9*Cin) bf16 patches, Ho, Wo)."""
    z = jnp.maximum(y1.astype(jnp.float32) * scale1 + shift1, 0.0)
    z = z.astype(jnp.bfloat16).reshape(N, H, W, Cin)
    zp = jnp.pad(z, ((0, 0), (1, 1), (1, 1), (0, 0)))
    Ho = (H + 2 - 3) // stride + 1
    Wo = (W + 2 - 3) // stride + 1
    taps = [zp[:, i:i + stride * Ho:stride, j:j + stride * Wo:stride, :]
            for i in range(3) for j in range(3)]
    patches = jnp.concatenate(taps, axis=-1).reshape(N * Ho * Wo, 9 * Cin)
    return patches, Ho, Wo


def bn_residual_relu(y, scale, shift, residual, res_scale, res_shift,
                     *, out_dtype=jnp.float32):
    """Fused relu( y*scale + shift + residual*res_scale + res_shift ).

    When C < 128 the row-major (M, C) buffers are reinterpreted as
    (M/k, k*C) with k*C a multiple of 128 so stores are full-width vst
    (lane-dense) instead of masked vst.msk."""
    M, C = y.shape
    k = 1
    if C < 128 and 128 % C == 0 and M % (128 // C) == 0:
        k = 128 // C
    if k > 1:
        y = y.reshape(M // k, k * C)
        residual = residual.reshape(M // k, k * C)
        scale, shift = jnp.tile(scale, k), jnp.tile(shift, k)
        res_scale, res_shift = jnp.tile(res_scale, k), jnp.tile(res_shift, k)
    Mr, Cr = y.shape
    tm, Mp = _tile_rows(Mr, bytes_per_row=12 * Cr)
    if Mp != Mr:
        y = jnp.pad(y, ((0, Mp - Mr), (0, 0)))
        residual = jnp.pad(residual, ((0, Mp - Mr), (0, 0)))

    row_spec = pl.BlockSpec((tm, Cr), lambda i: (i, 0))
    vec_spec = pl.BlockSpec((1, Cr), lambda i: (0, 0))
    out = pl.pallas_call(
        bn_res_relu_kernel,
        out_shape=jax.ShapeDtypeStruct((Mp, Cr), out_dtype),
        grid_spec=pltpu.PrefetchScalarGridSpec(
            num_scalar_prefetch=0,
            grid=(Mp // tm,),
            in_specs=[row_spec, vec_spec, vec_spec,
                      row_spec, vec_spec, vec_spec],
            out_specs=row_spec,
        ),
        compiler_params=_cparams(("parallel",)),
    )(y, scale.reshape(1, Cr).astype(jnp.float32),
      shift.reshape(1, Cr).astype(jnp.float32),
      residual, res_scale.reshape(1, Cr).astype(jnp.float32),
      res_shift.reshape(1, Cr).astype(jnp.float32))
    if Mp != Mr:
        out = out[:Mr]
    if k > 1:
        out = out.reshape(M, C)
    return out


# -----------------------------------------------------------------------------
# Bottleneck forward (expansion = 4)
# -----------------------------------------------------------------------------
def bottleneck_forward(params, x_nchw):
    stride = params["stride"]
    x = jnp.transpose(x_nchw, (0, 2, 3, 1)).astype(jnp.float32)      # NHWC
    N, H, W, Cin = x.shape
    planes = params["conv1_w"].shape[1]
    outC = params["conv3_w"].shape[1]                                # planes*4
    M0 = N * H * W

    # conv1 (1x1) with fused bn1 batch-statistics side outputs
    y1, st1 = matmul_stats(x.reshape(M0, Cin), params["conv1_w"])
    s1, b1 = _finalize_bn(st1, M0, params["bn1_g"], params["bn1_b"])

    # bn1-apply + ReLU folded into the im2col construction; conv2 (3x3,stride)
    # as one merged-K (=9*planes) matmul with fused bn2 stats
    patches, Ho, Wo = conv3x3_patches(y1, s1, b1, N, H, W, planes, stride)
    M1 = N * Ho * Wo
    y2, st2 = matmul_stats(patches, params["conv2_w"].reshape(9 * planes, planes))
    s2, b2 = _finalize_bn(st2, M1, params["bn2_g"], params["bn2_b"])

    # conv3 (1x1) with bn2-apply+ReLU fused as a prologue; bn3 stats side out
    y3, st3 = matmul_bnrelu_stats(y2, s2, b2, params["conv3_w"])
    s3, b3 = _finalize_bn(st3, M1, params["bn3_g"], params["bn3_b"])

    # shortcut branch
    if "down_w" in params:
        # TODO(synk): express this strided spatial subsample via a BlockSpec
        # index_map / pl.ds stride instead of an XLA slice.
        xd = x[:, ::stride, ::stride, :].reshape(M1, Cin)
        yd, std = matmul_stats(xd, params["down_w"])
        rs, rb = _finalize_bn(std, M1, params["down_bn_g"], params["down_bn_b"])
        residual = yd
    else:
        residual = x.reshape(M1, outC)
        rs = jnp.ones((outC,), jnp.float32)
        rb = jnp.zeros((outC,), jnp.float32)

    out = bn_residual_relu(y3, s3, b3, residual, rs, rb)
    out = out.reshape(N, Ho, Wo, outC)
    return jnp.transpose(out, (0, 3, 1, 2))                          # NCHW


# -----------------------------------------------------------------------------
# Parameters
# -----------------------------------------------------------------------------
def _conv_uniform(key, shape, fan_in):
    bound = 1.0 / (fan_in ** 0.5)   # PyTorch Conv2d default (kaiming_uniform)
    return jax.random.uniform(key, shape, jnp.float32, -bound, bound)


def init_bottleneck_params(key, inplanes, planes, stride=1):
    expansion = 4
    outplanes = planes * expansion
    k1, k2, k3, k4 = jax.random.split(key, 4)
    p = {
        "stride": stride,
        "conv1_w": _conv_uniform(k1, (inplanes, planes), inplanes),
        "bn1_g": jnp.ones((planes,), jnp.float32),
        "bn1_b": jnp.zeros((planes,), jnp.float32),
        "conv2_w": _conv_uniform(k2, (3, 3, planes, planes), planes * 9),
        "bn2_g": jnp.ones((planes,), jnp.float32),
        "bn2_b": jnp.zeros((planes,), jnp.float32),
        "conv3_w": _conv_uniform(k3, (planes, outplanes), planes),
        "bn3_g": jnp.ones((outplanes,), jnp.float32),
        "bn3_b": jnp.zeros((outplanes,), jnp.float32),
    }
    if stride != 1 or inplanes != outplanes:
        p["down_w"] = _conv_uniform(k4, (inplanes, outplanes), inplanes)
        p["down_bn_g"] = jnp.ones((outplanes,), jnp.float32)
        p["down_bn_b"] = jnp.zeros((outplanes,), jnp.float32)
    return p


# -----------------------------------------------------------------------------
# Main
# -----------------------------------------------------------------------------
if __name__ == "__main__":
    key = jax.random.PRNGKey(0)
    kx, kp1, kp2 = jax.random.split(key, 3)

    # Small Bottleneck config: inplanes=32, planes=16 (expansion 4 -> 64),
    # stride=2 with a conv1x1+BN downsample shortcut, followed by a second
    # block with an identity shortcut (stride=1, 64 -> 64) to exercise both
    # residual paths of the module.
    x = jax.random.normal(kx, (2, 32, 16, 16), jnp.float32)          # NCHW
    p1 = init_bottleneck_params(kp1, inplanes=32, planes=16, stride=2)
    p2 = init_bottleneck_params(kp2, inplanes=64, planes=16, stride=1)

    @jax.jit
    def fwd(inp):
        h = bottleneck_forward(p1, inp)
        return bottleneck_forward(p2, h)

    out = jax.block_until_ready(fwd(x))
    assert out.shape == (2, 64, 8, 8), out.shape
    assert bool(jnp.all(jnp.isfinite(out)))
    print("KERNEL_OK")
</pallas_src>

<mosaic_0001>
module attributes {stable_mosaic.version = 11 : i64} {
  func.func @mm_stats_kernel(%arg0: i32, %arg1: memref<512x32xbf16, #tpu.memory_space<vmem>>, %arg2: memref<32x16xbf16, #tpu.memory_space<vmem>>, %arg3: memref<512x16xbf16, #tpu.memory_space<vmem>>, %arg4: memref<1x8x16xf32, #tpu.memory_space<vmem>>) attributes {dimension_semantics = [#tpu.dimension_semantics<parallel>], iteration_bounds = array<i64: 1>, scalar_prefetch = 0 : i64, scratch_operands = 0 : i64, tpu.core_type = #tpu.core_type<tc>, window_params = [{transform_indices = @transform_0, window_bounds = array<i64: 512, 32>}, {pipeline_mode = #tpu.pipeline_mode<synchronous>, transform_indices = @transform_1, window_bounds = array<i64: 32, 16>}, {transform_indices = @transform_2, window_bounds = array<i64: 512, 16>}, {transform_indices = @transform_3, window_bounds = array<i64: 1, 8, 16>}]} {
    %c0 = arith.constant 0 : index
    %c0_0 = arith.constant 0 : index
    %0 = vector.load %arg1[%c0, %c0_0] : memref<512x32xbf16, #tpu.memory_space<vmem>>, vector<512x32xbf16>
    %c0_1 = arith.constant 0 : index
    %c0_2 = arith.constant 0 : index
    %1 = vector.load %arg2[%c0_1, %c0_2] : memref<32x16xbf16, #tpu.memory_space<vmem>>, vector<32x16xbf16>
    %cst = arith.constant dense<0.000000e+00> : vector<512x16xf32>
    %2 = tpu.matmul %0, %1, %cst {dimension_numbers = #tpu.dot_dimension_numbers<[1], [0], [0], [1], [0, 0, 1, 1], [], []>} : vector<512x32xbf16>, vector<32x16xbf16>, vector<512x16xf32> -> vector<512x16xf32>
    %3 = arith.truncf %2 : vector<512x16xf32> to vector<512x16xbf16>
    %c0_3 = arith.constant 0 : index
    %c0_4 = arith.constant 0 : index
    %4 = vector.load %arg3[%c0_3, %c0_4] : memref<512x16xbf16, #tpu.memory_space<vmem>>, vector<512x16xbf16>
    tpu.vector_store %arg3[%c0_3, %c0_4], %3 {strides = array<i32>} : memref<512x16xbf16, #tpu.memory_space<vmem>>, vector<512x16xbf16>,
    %cst_5 = arith.constant dense<0.000000e+00> : vector<16xf32>
    %5 = vector.multi_reduction <add>, %2, %cst_5 [0] : vector<512x16xf32> to vector<16xf32>
    %6 = vector.shape_cast %5 : vector<16xf32> to vector<1x16xf32>
    %7 = arith.mulf %2, %2 : vector<512x16xf32>
    %cst_6 = arith.constant dense<0.000000e+00> : vector<16xf32>
    %8 = vector.multi_reduction <add>, %7, %cst_6 [0] : vector<512x16xf32> to vector<16xf32>
    %9 = vector.shape_cast %8 : vector<16xf32> to vector<1x16xf32>
    %10 = tpu.iota {dimensions = array<i32: 0>} : vector<8x16xi32>
    %c0_i32 = arith.constant 0 : i32
    %11 = vector.broadcast %c0_i32 : i32 to vector<8x16xi32>
    %12 = arith.cmpi eq, %10, %11 : vector<8x16xi32>
    %c1_i32 = arith.constant 1 : i32
    %13 = vector.broadcast %c1_i32 : i32 to vector<8x16xi32>
    %14 = arith.cmpi eq, %10, %13 : vector<8x16xi32>
    %cst_7 = arith.constant 0.000000e+00 : f32
    %15 = vector.shape_cast %9 : vector<1x16xf32> to vector<1x16xf32>
    %16 = vector.broadcast %15 : vector<1x16xf32> to vector<8x16xf32>
    %17 = vector.broadcast %cst_7 : f32 to vector<8x16xf32>
    %18 = arith.select %14, %16, %17 : vector<8x16xi1>, vector<8x16xf32>
    %19 = vector.shape_cast %6 : vector<1x16xf32> to vector<1x16xf32>
    %20 = vector.broadcast %19 : vector<1x16xf32> to vector<8x16xf32>
    %21 = arith.select %12, %20, %18 : vector<8x16xi1>, vector<8x16xf32>
    %c0_8 = arith.constant 0 : index
    %c0_9 = arith.constant 0 : index
    %c0_10 = arith.constant 0 : index
    %22 = vector.load %arg4[%c0_8, %c0_9, %c0_10] : memref<1x8x16xf32, #tpu.memory_space<vmem>>, vector<1x8x16xf32>
    %23 = vector.shape_cast %22 : vector<1x8x16xf32> to vector<8x16xf32>
    %24 = vector.shape_cast %21 : vector<8x16xf32> to vector<1x8x16xf32>
    tpu.vector_store %arg4[%c0_8, %c0_9, %c0_10], %24 {strides = array<i32>} : memref<1x8x16xf32, #tpu.memory_space<vmem>>, vector<1x8x16xf32>,
    return
  }
  func.func @transform_0(%arg0: i32) -> (i32, i32) {
    %c0_i32 = arith.constant 0 : i32
    %c0_i32_0 = arith.constant 0 : i32
    return %arg0, %c0_i32 : i32, i32
  }
  func.func @transform_1(%arg0: i32) -> (i32, i32) {
    %c0_i32 = arith.constant 0 : i32
    %c0_i32_0 = arith.constant 0 : i32
    %c0_i32_1 = arith.constant 0 : i32
    return %c0_i32, %c0_i32_0 : i32, i32
  }
  func.func @transform_2(%arg0: i32) -> (i32, i32) {
    %c0_i32 = arith.constant 0 : i32
    %c0_i32_0 = arith.constant 0 : i32
    return %arg0, %c0_i32 : i32, i32
  }
  func.func @transform_3(%arg0: i32) -> (i32, i32, i32) {
    %c0_i32 = arith.constant 0 : i32
    %c0_i32_0 = arith.constant 0 : i32
    %c0_i32_1 = arith.constant 0 : i32
    return %arg0, %c0_i32, %c0_i32_0 : i32, i32, i32
  }
}

module attributes {stable_mosaic.version = 11 : i64} {
  func.func @mm_stats_kernel(%arg0: i32, %arg1: memref<128x144xbf16, #tpu.memory_space<vmem>>, %arg2: memref<144x16xbf16, #tpu.memory_space<vmem>>, %arg3: memref<128x16xbf16, #tpu.memory_space<vmem>>, %arg4: memref<1x8x16xf32, #tpu.memory_space<vmem>>) attributes {dimension_semantics = [#tpu.dimension_semantics<parallel>], iteration_bounds = array<i64: 1>, scalar_prefetch = 0 : i64, scratch_operands = 0 : i64, tpu.core_type = #tpu.core_type<tc>, window_params = [{transform_indices = @transform_0, window_bounds = array<i64: 128, 144>}, {pipeline_mode = #tpu.pipeline_mode<synchronous>, transform_indices = @transform_1, window_bounds = array<i64: 144, 16>}, {transform_indices = @transform_2, window_bounds = array<i64: 128, 16>}, {transform_indices = @transform_3, window_bounds = array<i64: 1, 8, 16>}]} {
    %c0 = arith.constant 0 : index
    %c0_0 = arith.constant 0 : index
    %0 = vector.load %arg1[%c0, %c0_0] : memref<128x144xbf16, #tpu.memory_space<vmem>>, vector<128x144xbf16>
    %c0_1 = arith.constant 0 : index
    %c0_2 = arith.constant 0 : index
    %1 = vector.load %arg2[%c0_1, %c0_2] : memref<144x16xbf16, #tpu.memory_space<vmem>>, vector<144x16xbf16>
    %cst = arith.constant dense<0.000000e+00> : vector<128x16xf32>
    %2 = tpu.matmul %0, %1, %cst {dimension_numbers = #tpu.dot_dimension_numbers<[1], [0], [0], [1], [0, 0, 1, 1], [], []>} : vector<128x144xbf16>, vector<144x16xbf16>, vector<128x16xf32> -> vector<128x16xf32>
    %3 = arith.truncf %2 : vector<128x16xf32> to vector<128x16xbf16>
    %c0_3 = arith.constant 0 : index
    %c0_4 = arith.constant 0 : index
    %4 = vector.load %arg3[%c0_3, %c0_4] : memref<128x16xbf16, #tpu.memory_space<vmem>>, vector<128x16xbf16>
    tpu.vector_store %arg3[%c0_3, %c0_4], %3 {strides = array<i32>} : memref<128x16xbf16, #tpu.memory_space<vmem>>, vector<128x16xbf16>,
    %cst_5 = arith.constant dense<0.000000e+00> : vector<16xf32>
    %5 = vector.multi_reduction <add>, %2, %cst_5 [0] : vector<128x16xf32> to vector<16xf32>
    %6 = vector.shape_cast %5 : vector<16xf32> to vector<1x16xf32>
    %7 = arith.mulf %2, %2 : vector<128x16xf32>
    %cst_6 = arith.constant dense<0.000000e+00> : vector<16xf32>
    %8 = vector.multi_reduction <add>, %7, %cst_6 [0] : vector<128x16xf32> to vector<16xf32>
    %9 = vector.shape_cast %8 : vector<16xf32> to vector<1x16xf32>
    %10 = tpu.iota {dimensions = array<i32: 0>} : vector<8x16xi32>
    %c0_i32 = arith.constant 0 : i32
    %11 = vector.broadcast %c0_i32 : i32 to vector<8x16xi32>
    %12 = arith.cmpi eq, %10, %11 : vector<8x16xi32>
    %c1_i32 = arith.constant 1 : i32
    %13 = vector.broadcast %c1_i32 : i32 to vector<8x16xi32>
    %14 = arith.cmpi eq, %10, %13 : vector<8x16xi32>
    %cst_7 = arith.constant 0.000000e+00 : f32
    %15 = vector.shape_cast %9 : vector<1x16xf32> to vector<1x16xf32>
    %16 = vector.broadcast %15 : vector<1x16xf32> to vector<8x16xf32>
    %17 = vector.broadcast %cst_7 : f32 to vector<8x16xf32>
    %18 = arith.select %14, %16, %17 : vector<8x16xi1>, vector<8x16xf32>
    %19 = vector.shape_cast %6 : vector<1x16xf32> to vector<1x16xf32>
    %20 = vector.broadcast %19 : vector<1x16xf32> to vector<8x16xf32>
    %21 = arith.select %12, %20, %18 : vector<8x16xi1>, vector<8x16xf32>
    %c0_8 = arith.constant 0 : index
    %c0_9 = arith.constant 0 : index
    %c0_10 = arith.constant 0 : index
    %22 = vector.load %arg4[%c0_8, %c0_9, %c0_10] : memref<1x8x16xf32, #tpu.memory_space<vmem>>, vector<1x8x16xf32>
    %23 = vector.shape_cast %22 : vector<1x8x16xf32> to vector<8x16xf32>
    %24 = vector.shape_cast %21 : vector<8x16xf32> to vector<1x8x16xf32>
    tpu.vector_store %arg4[%c0_8, %c0_9, %c0_10], %24 {strides = array<i32>} : memref<1x8x16xf32, #tpu.memory_space<vmem>>, vector<1x8x16xf32>,
    return
  }
  func.func @transform_0(%arg0: i32) -> (i32, i32) {
    %c0_i32 = arith.constant 0 : i32
    %c0_i32_0 = arith.constant 0 : i32
    return %arg0, %c0_i32 : i32, i32
  }
  func.func @transform_1(%arg0: i32) -> (i32, i32) {
    %c0_i32 = arith.constant 0 : i32
    %c0_i32_0 = arith.constant 0 : i32
    %c0_i32_1 = arith.constant 0 : i32
    return %c0_i32, %c0_i32_0 : i32, i32
  }
  func.func @transform_2(%arg0: i32) -> (i32, i32) {
    %c0_i32 = arith.constant 0 : i32
    %c0_i32_0 = arith.constant 0 : i32
    return %arg0, %c0_i32 : i32, i32
  }
  func.func @transform_3(%arg0: i32) -> (i32, i32, i32) {
    %c0_i32 = arith.constant 0 : i32
    %c0_i32_0 = arith.constant 0 : i32
    %c0_i32_1 = arith.constant 0 : i32
    return %arg0, %c0_i32, %c0_i32_0 : i32, i32, i32
  }
}

module attributes {stable_mosaic.version = 11 : i64} {
  func.func @bnrelu_mm_stats_kernel(%arg0: i32, %arg1: memref<128x16xbf16, #tpu.memory_space<vmem>>, %arg2: memref<1x16xf32, #tpu.memory_space<vmem>>, %arg3: memref<1x16xf32, #tpu.memory_space<vmem>>, %arg4: memref<16x64xbf16, #tpu.memory_space<vmem>>, %arg5: memref<128x64xbf16, #tpu.memory_space<vmem>>, %arg6: memref<1x8x64xf32, #tpu.memory_space<vmem>>) attributes {dimension_semantics = [#tpu.dimension_semantics<parallel>], iteration_bounds = array<i64: 1>, scalar_prefetch = 0 : i64, scratch_operands = 0 : i64, tpu.core_type = #tpu.core_type<tc>, window_params = [{transform_indices = @transform_0, window_bounds = array<i64: 128, 16>}, {pipeline_mode = #tpu.pipeline_mode<synchronous>, transform_indices = @transform_1, window_bounds = array<i64: 1, 16>}, {pipeline_mode = #tpu.pipeline_mode<synchronous>, transform_indices = @transform_2, window_bounds = array<i64: 1, 16>}, {pipeline_mode = #tpu.pipeline_mode<synchronous>, transform_indices = @transform_3, window_bounds = array<i64: 16, 64>}, {transform_indices = @transform_4, window_bounds = array<i64: 128, 64>}, {transform_indices = @transform_5, window_bounds = array<i64: 1, 8, 64>}]} {
    %c0 = arith.constant 0 : index
    %c0_0 = arith.constant 0 : index
    %0 = vector.load %arg1[%c0, %c0_0] : memref<128x16xbf16, #tpu.memory_space<vmem>>, vector<128x16xbf16>
    %1 = arith.extf %0 : vector<128x16xbf16> to vector<128x16xf32>
    %c0_1 = arith.constant 0 : index
    %c0_2 = arith.constant 0 : index
    %2 = vector.load %arg2[%c0_1, %c0_2] : memref<1x16xf32, #tpu.memory_space<vmem>>, vector<1x16xf32>
    %3 = vector.broadcast %2 : vector<1x16xf32> to vector<128x16xf32>
    %4 = arith.mulf %1, %3 : vector<128x16xf32>
    %c0_3 = arith.constant 0 : index
    %c0_4 = arith.constant 0 : index
    %5 = vector.load %arg3[%c0_3, %c0_4] : memref<1x16xf32, #tpu.memory_space<vmem>>, vector<1x16xf32>
    %6 = vector.broadcast %5 : vector<1x16xf32> to vector<128x16xf32>
    %7 = arith.addf %4, %6 : vector<128x16xf32>
    %cst = arith.constant 0.000000e+00 : f32
    %8 = vector.broadcast %cst : f32 to vector<128x16xf32>
    %9 = arith.maximumf %7, %8 : vector<128x16xf32>
    %10 = arith.truncf %9 : vector<128x16xf32> to vector<128x16xbf16>
    %c0_5 = arith.constant 0 : index
    %c0_6 = arith.constant 0 : index
    %11 = vector.load %arg4[%c0_5, %c0_6] : memref<16x64xbf16, #tpu.memory_space<vmem>>, vector<16x64xbf16>
    %cst_7 = arith.constant dense<0.000000e+00> : vector<128x64xf32>
    %12 = tpu.matmul %10, %11, %cst_7 {dimension_numbers = #tpu.dot_dimension_numbers<[1], [0], [0], [1], [0, 0, 1, 1], [], []>} : vector<128x16xbf16>, vector<16x64xbf16>, vector<128x64xf32> -> vector<128x64xf32>
    %13 = arith.truncf %12 : vector<128x64xf32> to vector<128x64xbf16>
    %c0_8 = arith.constant 0 : index
    %c0_9 = arith.constant 0 : index
    %14 = vector.load %arg5[%c0_8, %c0_9] : memref<128x64xbf16, #tpu.memory_space<vmem>>, vector<128x64xbf16>
    tpu.vector_store %arg5[%c0_8, %c0_9], %13 {strides = array<i32>} : memref<128x64xbf16, #tpu.memory_space<vmem>>, vector<128x64xbf16>,
    %cst_10 = arith.constant dense<0.000000e+00> : vector<64xf32>
    %15 = vector.multi_reduction <add>, %12, %cst_10 [0] : vector<128x64xf32> to vector<64xf32>
    %16 = vector.shape_cast %15 : vector<64xf32> to vector<1x64xf32>
    %17 = arith.mulf %12, %12 : vector<128x64xf32>
    %cst_11 = arith.constant dense<0.000000e+00> : vector<64xf32>
    %18 = vector.multi_reduction <add>, %17, %cst_11 [0] : vector<128x64xf32> to vector<64xf32>
    %19 = vector.shape_cast %18 : vector<64xf32> to vector<1x64xf32>
    %20 = tpu.iota {dimensions = array<i32: 0>} : vector<8x64xi32>
    %c0_i32 = arith.constant 0 : i32
    %21 = vector.broadcast %c0_i32 : i32 to vector<8x64xi32>
    %22 = arith.cmpi eq, %20, %21 : vector<8x64xi32>
    %c1_i32 = arith.constant 1 : i32
    %23 = vector.broadcast %c1_i32 : i32 to vector<8x64xi32>
    %24 = arith.cmpi eq, %20, %23 : vector<8x64xi32>
    %cst_12 = arith.constant 0.000000e+00 : f32
    %25 = vector.shape_cast %19 : vector<1x64xf32> to vector<1x64xf32>
    %26 = vector.broadcast %25 : vector<1x64xf32> to vector<8x64xf32>
    %27 = vector.broadcast %cst_12 : f32 to vector<8x64xf32>
    %28 = arith.select %24, %26, %27 : vector<8x64xi1>, vector<8x64xf32>
    %29 = vector.shape_cast %16 : vector<1x64xf32> to vector<1x64xf32>
    %30 = vector.broadcast %29 : vector<1x64xf32> to vector<8x64xf32>
    %31 = arith.select %22, %30, %28 : vector<8x64xi1>, vector<8x64xf32>
    %c0_13 = arith.constant 0 : index
    %c0_14 = arith.constant 0 : index
    %c0_15 = arith.constant 0 : index
    %32 = vector.load %arg6[%c0_13, %c0_14, %c0_15] : memref<1x8x64xf32, #tpu.memory_space<vmem>>, vector<1x8x64xf32>
    %33 = vector.shape_cast %32 : vector<1x8x64xf32> to vector<8x64xf32>
    %34 = vector.shape_cast %31 : vector<8x64xf32> to vector<1x8x64xf32>
    tpu.vector_store %arg6[%c0_13, %c0_14, %c0_15], %34 {strides = array<i32>} : memref<1x8x64xf32, #tpu.memory_space<vmem>>, vector<1x8x64xf32>,
    return
  }
  func.func @transform_0(%arg0: i32) -> (i32, i32) {
    %c0_i32 = arith.constant 0 : i32
    %c0_i32_0 = arith.constant 0 : i32
    return %arg0, %c0_i32 : i32, i32
  }
  func.func @transform_1(%arg0: i32) -> (i32, i32) {
    %c0_i32 = arith.constant 0 : i32
    %c0_i32_0 = arith.constant 0 : i32
    %c0_i32_1 = arith.constant 0 : i32
    return %c0_i32, %c0_i32_0 : i32, i32
  }
  func.func @transform_2(%arg0: i32) -> (i32, i32) {
    %c0_i32 = arith.constant 0 : i32
    %c0_i32_0 = arith.constant 0 : i32
    %c0_i32_1 = arith.constant 0 : i32
    return %c0_i32, %c0_i32_0 : i32, i32
  }
  func.func @transform_3(%arg0: i32) -> (i32, i32) {
    %c0_i32 = arith.constant 0 : i32
    %c0_i32_0 = arith.constant 0 : i32
    %c0_i32_1 = arith.constant 0 : i32
    return %c0_i32, %c0_i32_0 : i32, i32
  }
  func.func @transform_4(%arg0: i32) -> (i32, i32) {
    %c0_i32 = arith.constant 0 : i32
    %c0_i32_0 = arith.constant 0 : i32
    return %arg0, %c0_i32 : i32, i32
  }
  func.func @transform_5(%arg0: i32) -> (i32, i32, i32) {
    %c0_i32 = arith.constant 0 : i32
    %c0_i32_0 = arith.constant 0 : i32
    %c0_i32_1 = arith.constant 0 : i32
    return %arg0, %c0_i32, %c0_i32_0 : i32, i32, i32
  }
}

module attributes {stable_mosaic.version = 11 : i64} {
  func.func @mm_stats_kernel(%arg0: i32, %arg1: memref<128x32xbf16, #tpu.memory_space<vmem>>, %arg2: memref<32x64xbf16, #tpu.memory_space<vmem>>, %arg3: memref<128x64xbf16, #tpu.memory_space<vmem>>, %arg4: memref<1x8x64xf32, #tpu.memory_space<vmem>>) attributes {dimension_semantics = [#tpu.dimension_semantics<parallel>], iteration_bounds = array<i64: 1>, scalar_prefetch = 0 : i64, scratch_operands = 0 : i64, tpu.core_type = #tpu.core_type<tc>, window_params = [{transform_indices = @transform_0, window_bounds = array<i64: 128, 32>}, {pipeline_mode = #tpu.pipeline_mode<synchronous>, transform_indices = @transform_1, window_bounds = array<i64: 32, 64>}, {transform_indices = @transform_2, window_bounds = array<i64: 128, 64>}, {transform_indices = @transform_3, window_bounds = array<i64: 1, 8, 64>}]} {
    %c0 = arith.constant 0 : index
    %c0_0 = arith.constant 0 : index
    %0 = vector.load %arg1[%c0, %c0_0] : memref<128x32xbf16, #tpu.memory_space<vmem>>, vector<128x32xbf16>
    %c0_1 = arith.constant 0 : index
    %c0_2 = arith.constant 0 : index
    %1 = vector.load %arg2[%c0_1, %c0_2] : memref<32x64xbf16, #tpu.memory_space<vmem>>, vector<32x64xbf16>
    %cst = arith.constant dense<0.000000e+00> : vector<128x64xf32>
    %2 = tpu.matmul %0, %1, %cst {dimension_numbers = #tpu.dot_dimension_numbers<[1], [0], [0], [1], [0, 0, 1, 1], [], []>} : vector<128x32xbf16>, vector<32x64xbf16>, vector<128x64xf32> -> vector<128x64xf32>
    %3 = arith.truncf %2 : vector<128x64xf32> to vector<128x64xbf16>
    %c0_3 = arith.constant 0 : index
    %c0_4 = arith.constant 0 : index
    %4 = vector.load %arg3[%c0_3, %c0_4] : memref<128x64xbf16, #tpu.memory_space<vmem>>, vector<128x64xbf16>
    tpu.vector_store %arg3[%c0_3, %c0_4], %3 {strides = array<i32>} : memref<128x64xbf16, #tpu.memory_space<vmem>>, vector<128x64xbf16>,
    %cst_5 = arith.constant dense<0.000000e+00> : vector<64xf32>
    %5 = vector.multi_reduction <add>, %2, %cst_5 [0] : vector<128x64xf32> to vector<64xf32>
    %6 = vector.shape_cast %5 : vector<64xf32> to vector<1x64xf32>
    %7 = arith.mulf %2, %2 : vector<128x64xf32>
    %cst_6 = arith.constant dense<0.000000e+00> : vector<64xf32>
    %8 = vector.multi_reduction <add>, %7, %cst_6 [0] : vector<128x64xf32> to vector<64xf32>
    %9 = vector.shape_cast %8 : vector<64xf32> to vector<1x64xf32>
    %10 = tpu.iota {dimensions = array<i32: 0>} : vector<8x64xi32>
    %c0_i32 = arith.constant 0 : i32
    %11 = vector.broadcast %c0_i32 : i32 to vector<8x64xi32>
    %12 = arith.cmpi eq, %10, %11 : vector<8x64xi32>
    %c1_i32 = arith.constant 1 : i32
    %13 = vector.broadcast %c1_i32 : i32 to vector<8x64xi32>
    %14 = arith.cmpi eq, %10, %13 : vector<8x64xi32>
    %cst_7 = arith.constant 0.000000e+00 : f32
    %15 = vector.shape_cast %9 : vector<1x64xf32> to vector<1x64xf32>
    %16 = vector.broadcast %15 : vector<1x64xf32> to vector<8x64xf32>
    %17 = vector.broadcast %cst_7 : f32 to vector<8x64xf32>
    %18 = arith.select %14, %16, %17 : vector<8x64xi1>, vector<8x64xf32>
    %19 = vector.shape_cast %6 : vector<1x64xf32> to vector<1x64xf32>
    %20 = vector.broadcast %19 : vector<1x64xf32> to vector<8x64xf32>
    %21 = arith.select %12, %20, %18 : vector<8x64xi1>, vector<8x64xf32>
    %c0_8 = arith.constant 0 : index
    %c0_9 = arith.constant 0 : index
    %c0_10 = arith.constant 0 : index
    %22 = vector.load %arg4[%c0_8, %c0_9, %c0_10] : memref<1x8x64xf32, #tpu.memory_space<vmem>>, vector<1x8x64xf32>
    %23 = vector.shape_cast %22 : vector<1x8x64xf32> to vector<8x64xf32>
    %24 = vector.shape_cast %21 : vector<8x64xf32> to vector<1x8x64xf32>
    tpu.vector_store %arg4[%c0_8, %c0_9, %c0_10], %24 {strides = array<i32>} : memref<1x8x64xf32, #tpu.memory_space<vmem>>, vector<1x8x64xf32>,
    return
  }
  func.func @transform_0(%arg0: i32) -> (i32, i32) {
    %c0_i32 = arith.constant 0 : i32
    %c0_i32_0 = arith.constant 0 : i32
    return %arg0, %c0_i32 : i32, i32
  }
  func.func @transform_1(%arg0: i32) -> (i32, i32) {
    %c0_i32 = arith.constant 0 : i32
    %c0_i32_0 = arith.constant 0 : i32
    %c0_i32_1 = arith.constant 0 : i32
    return %c0_i32, %c0_i32_0 : i32, i32
  }
  func.func @transform_2(%arg0: i32) -> (i32, i32) {
    %c0_i32 = arith.constant 0 : i32
    %c0_i32_0 = arith.constant 0 : i32
    return %arg0, %c0_i32 : i32, i32
  }
  func.func @transform_3(%arg0: i32) -> (i32, i32, i32) {
    %c0_i32 = arith.constant 0 : i32
    %c0_i32_0 = arith.constant 0 : i32
    %c0_i32_1 = arith.constant 0 : i32
    return %arg0, %c0_i32, %c0_i32_0 : i32, i32, i32
  }
}

module attributes {stable_mosaic.version = 11 : i64} {
  func.func @bn_res_relu_kernel(%arg0: i32, %arg1: memref<64x128xbf16, #tpu.memory_space<vmem>>, %arg2: memref<1x128xf32, #tpu.memory_space<vmem>>, %arg3: memref<1x128xf32, #tpu.memory_space<vmem>>, %arg4: memref<64x128xbf16, #tpu.memory_space<vmem>>, %arg5: memref<1x128xf32, #tpu.memory_space<vmem>>, %arg6: memref<1x128xf32, #tpu.memory_space<vmem>>, %arg7: memref<64x128xf32, #tpu.memory_space<vmem>>) attributes {dimension_semantics = [#tpu.dimension_semantics<parallel>], iteration_bounds = array<i64: 1>, scalar_prefetch = 0 : i64, scratch_operands = 0 : i64, tpu.core_type = #tpu.core_type<tc>, window_params = [{transform_indices = @transform_0, window_bounds = array<i64: 64, 128>}, {pipeline_mode = #tpu.pipeline_mode<synchronous>, transform_indices = @transform_1, window_bounds = array<i64: 1, 128>}, {pipeline_mode = #tpu.pipeline_mode<synchronous>, transform_indices = @transform_2, window_bounds = array<i64: 1, 128>}, {transform_indices = @transform_3, window_bounds = array<i64: 64, 128>}, {pipeline_mode = #tpu.pipeline_mode<synchronous>, transform_indices = @transform_4, window_bounds = array<i64: 1, 128>}, {pipeline_mode = #tpu.pipeline_mode<synchronous>, transform_indices = @transform_5, window_bounds = array<i64: 1, 128>}, {transform_indices = @transform_6, window_bounds = array<i64: 64, 128>}]} {
    %c0 = arith.constant 0 : index
    %c0_0 = arith.constant 0 : index
    %0 = vector.load %arg1[%c0, %c0_0] : memref<64x128xbf16, #tpu.memory_space<vmem>>, vector<64x128xbf16>
    %1 = arith.extf %0 : vector<64x128xbf16> to vector<64x128xf32>
    %c0_1 = arith.constant 0 : index
    %c0_2 = arith.constant 0 : index
    %2 = vector.load %arg2[%c0_1, %c0_2] : memref<1x128xf32, #tpu.memory_space<vmem>>, vector<1x128xf32>
    %3 = vector.broadcast %2 : vector<1x128xf32> to vector<64x128xf32>
    %4 = arith.mulf %1, %3 : vector<64x128xf32>
    %c0_3 = arith.constant 0 : index
    %c0_4 = arith.constant 0 : index
    %5 = vector.load %arg3[%c0_3, %c0_4] : memref<1x128xf32, #tpu.memory_space<vmem>>, vector<1x128xf32>
    %6 = vector.broadcast %5 : vector<1x128xf32> to vector<64x128xf32>
    %7 = arith.addf %4, %6 : vector<64x128xf32>
    %c0_5 = arith.constant 0 : index
    %c0_6 = arith.constant 0 : index
    %8 = vector.load %arg4[%c0_5, %c0_6] : memref<64x128xbf16, #tpu.memory_space<vmem>>, vector<64x128xbf16>
    %9 = arith.extf %8 : vector<64x128xbf16> to vector<64x128xf32>
    %c0_7 = arith.constant 0 : index
    %c0_8 = arith.constant 0 : index
    %10 = vector.load %arg5[%c0_7, %c0_8] : memref<1x128xf32, #tpu.memory_space<vmem>>, vector<1x128xf32>
    %11 = vector.broadcast %10 : vector<1x128xf32> to vector<64x128xf32>
    %12 = arith.mulf %9, %11 : vector<64x128xf32>
    %13 = arith.addf %7, %12 : vector<64x128xf32>
    %c0_9 = arith.constant 0 : index
    %c0_10 = arith.constant 0 : index
    %14 = vector.load %arg6[%c0_9, %c0_10] : memref<1x128xf32, #tpu.memory_space<vmem>>, vector<1x128xf32>
    %15 = vector.broadcast %14 : vector<1x128xf32> to vector<64x128xf32>
    %16 = arith.addf %13, %15 : vector<64x128xf32>
    %cst = arith.constant 0.000000e+00 : f32
    %17 = vector.broadcast %cst : f32 to vector<64x128xf32>
    %18 = arith.maximumf %16, %17 : vector<64x128xf32>
    %c0_11 = arith.constant 0 : index
    %c0_12 = arith.constant 0 : index
    %19 = vector.load %arg7[%c0_11, %c0_12] : memref<64x128xf32, #tpu.memory_space<vmem>>, vector<64x128xf32>
    tpu.vector_store %arg7[%c0_11, %c0_12], %18 {strides = array<i32>} : memref<64x128xf32, #tpu.memory_space<vmem>>, vector<64x128xf32>,
    return
  }
  func.func @transform_0(%arg0: i32) -> (i32, i32) {
    %c0_i32 = arith.constant 0 : i32
    %c0_i32_0 = arith.constant 0 : i32
    return %arg0, %c0_i32 : i32, i32
  }
  func.func @transform_1(%arg0: i32) -> (i32, i32) {
    %c0_i32 = arith.constant 0 : i32
    %c0_i32_0 = arith.constant 0 : i32
    %c0_i32_1 = arith.constant 0 : i32
    return %c0_i32, %c0_i32_0 : i32, i32
  }
  func.func @transform_2(%arg0: i32) -> (i32, i32) {
    %c0_i32 = arith.constant 0 : i32
    %c0_i32_0 = arith.constant 0 : i32
    %c0_i32_1 = arith.constant 0 : i32
    return %c0_i32, %c0_i32_0 : i32, i32
  }
  func.func @transform_3(%arg0: i32) -> (i32, i32) {
    %c0_i32 = arith.constant 0 : i32
    %c0_i32_0 = arith.constant 0 : i32
    return %arg0, %c0_i32 : i32, i32
  }
  func.func @transform_4(%arg0: i32) -> (i32, i32) {
    %c0_i32 = arith.constant 0 : i32
    %c0_i32_0 = arith.constant 0 : i32
    %c0_i32_1 = arith.constant 0 : i32
    return %c0_i32, %c0_i32_0 : i32, i32
  }
  func.func @transform_5(%arg0: i32) -> (i32, i32) {
    %c0_i32 = arith.constant 0 : i32
    %c0_i32_0 = arith.constant 0 : i32
    %c0_i32_1 = arith.constant 0 : i32
    return %c0_i32, %c0_i32_0 : i32, i32
  }
  func.func @transform_6(%arg0: i32) -> (i32, i32) {
    %c0_i32 = arith.constant 0 : i32
    %c0_i32_0 = arith.constant 0 : i32
    return %arg0, %c0_i32 : i32, i32
  }
}

module attributes {stable_mosaic.version = 11 : i64} {
  func.func @mm_stats_kernel(%arg0: i32, %arg1: memref<128x64xbf16, #tpu.memory_space<vmem>>, %arg2: memref<64x16xbf16, #tpu.memory_space<vmem>>, %arg3: memref<128x16xbf16, #tpu.memory_space<vmem>>, %arg4: memref<1x8x16xf32, #tpu.memory_space<vmem>>) attributes {dimension_semantics = [#tpu.dimension_semantics<parallel>], iteration_bounds = array<i64: 1>, scalar_prefetch = 0 : i64, scratch_operands = 0 : i64, tpu.core_type = #tpu.core_type<tc>, window_params = [{transform_indices = @transform_0, window_bounds = array<i64: 128, 64>}, {pipeline_mode = #tpu.pipeline_mode<synchronous>, transform_indices = @transform_1, window_bounds = array<i64: 64, 16>}, {transform_indices = @transform_2, window_bounds = array<i64: 128, 16>}, {transform_indices = @transform_3, window_bounds = array<i64: 1, 8, 16>}]} {
    %c0 = arith.constant 0 : index
    %c0_0 = arith.constant 0 : index
    %0 = vector.load %arg1[%c0, %c0_0] : memref<128x64xbf16, #tpu.memory_space<vmem>>, vector<128x64xbf16>
    %c0_1 = arith.constant 0 : index
    %c0_2 = arith.constant 0 : index
    %1 = vector.load %arg2[%c0_1, %c0_2] : memref<64x16xbf16, #tpu.memory_space<vmem>>, vector<64x16xbf16>
    %cst = arith.constant dense<0.000000e+00> : vector<128x16xf32>
    %2 = tpu.matmul %0, %1, %cst {dimension_numbers = #tpu.dot_dimension_numbers<[1], [0], [0], [1], [0, 0, 1, 1], [], []>} : vector<128x64xbf16>, vector<64x16xbf16>, vector<128x16xf32> -> vector<128x16xf32>
    %3 = arith.truncf %2 : vector<128x16xf32> to vector<128x16xbf16>
    %c0_3 = arith.constant 0 : index
    %c0_4 = arith.constant 0 : index
    %4 = vector.load %arg3[%c0_3, %c0_4] : memref<128x16xbf16, #tpu.memory_space<vmem>>, vector<128x16xbf16>
    tpu.vector_store %arg3[%c0_3, %c0_4], %3 {strides = array<i32>} : memref<128x16xbf16, #tpu.memory_space<vmem>>, vector<128x16xbf16>,
    %cst_5 = arith.constant dense<0.000000e+00> : vector<16xf32>
    %5 = vector.multi_reduction <add>, %2, %cst_5 [0] : vector<128x16xf32> to vector<16xf32>
    %6 = vector.shape_cast %5 : vector<16xf32> to vector<1x16xf32>
    %7 = arith.mulf %2, %2 : vector<128x16xf32>
    %cst_6 = arith.constant dense<0.000000e+00> : vector<16xf32>
    %8 = vector.multi_reduction <add>, %7, %cst_6 [0] : vector<128x16xf32> to vector<16xf32>
    %9 = vector.shape_cast %8 : vector<16xf32> to vector<1x16xf32>
    %10 = tpu.iota {dimensions = array<i32: 0>} : vector<8x16xi32>
    %c0_i32 = arith.constant 0 : i32
    %11 = vector.broadcast %c0_i32 : i32 to vector<8x16xi32>
    %12 = arith.cmpi eq, %10, %11 : vector<8x16xi32>
    %c1_i32 = arith.constant 1 : i32
    %13 = vector.broadcast %c1_i32 : i32 to vector<8x16xi32>
    %14 = arith.cmpi eq, %10, %13 : vector<8x16xi32>
    %cst_7 = arith.constant 0.000000e+00 : f32
    %15 = vector.shape_cast %9 : vector<1x16xf32> to vector<1x16xf32>
    %16 = vector.broadcast %15 : vector<1x16xf32> to vector<8x16xf32>
    %17 = vector.broadcast %cst_7 : f32 to vector<8x16xf32>
    %18 = arith.select %14, %16, %17 : vector<8x16xi1>, vector<8x16xf32>
    %19 = vector.shape_cast %6 : vector<1x16xf32> to vector<1x16xf32>
    %20 = vector.broadcast %19 : vector<1x16xf32> to vector<8x16xf32>
    %21 = arith.select %12, %20, %18 : vector<8x16xi1>, vector<8x16xf32>
    %c0_8 = arith.constant 0 : index
    %c0_9 = arith.constant 0 : index
    %c0_10 = arith.constant 0 : index
    %22 = vector.load %arg4[%c0_8, %c0_9, %c0_10] : memref<1x8x16xf32, #tpu.memory_space<vmem>>, vector<1x8x16xf32>
    %23 = vector.shape_cast %22 : vector<1x8x16xf32> to vector<8x16xf32>
    %24 = vector.shape_cast %21 : vector<8x16xf32> to vector<1x8x16xf32>
    tpu.vector_store %arg4[%c0_8, %c0_9, %c0_10], %24 {strides = array<i32>} : memref<1x8x16xf32, #tpu.memory_space<vmem>>, vector<1x8x16xf32>,
    return
  }
  func.func @transform_0(%arg0: i32) -> (i32, i32) {
    %c0_i32 = arith.constant 0 : i32
    %c0_i32_0 = arith.constant 0 : i32
    return %arg0, %c0_i32 : i32, i32
  }
  func.func @transform_1(%arg0: i32) -> (i32, i32) {
    %c0_i32 = arith.constant 0 : i32
    %c0_i32_0 = arith.constant 0 : i32
    %c0_i32_1 = arith.constant 0 : i32
    return %c0_i32, %c0_i32_0 : i32, i32
  }
  func.func @transform_2(%arg0: i32) -> (i32, i32) {
    %c0_i32 = arith.constant 0 : i32
    %c0_i32_0 = arith.constant 0 : i32
    return %arg0, %c0_i32 : i32, i32
  }
  func.func @transform_3(%arg0: i32) -> (i32, i32, i32) {
    %c0_i32 = arith.constant 0 : i32
    %c0_i32_0 = arith.constant 0 : i32
    %c0_i32_1 = arith.constant 0 : i32
    return %arg0, %c0_i32, %c0_i32_0 : i32, i32, i32
  }
}

module attributes {stable_mosaic.version = 11 : i64} {
  func.func @bn_res_relu_kernel(%arg0: i32, %arg1: memref<64x128xbf16, #tpu.memory_space<vmem>>, %arg2: memref<1x128xf32, #tpu.memory_space<vmem>>, %arg3: memref<1x128xf32, #tpu.memory_space<vmem>>, %arg4: memref<64x128xf32, #tpu.memory_space<vmem>>, %arg5: memref<1x128xf32, #tpu.memory_space<vmem>>, %arg6: memref<1x128xf32, #tpu.memory_space<vmem>>, %arg7: memref<64x128xf32, #tpu.memory_space<vmem>>) attributes {dimension_semantics = [#tpu.dimension_semantics<parallel>], iteration_bounds = array<i64: 1>, scalar_prefetch = 0 : i64, scratch_operands = 0 : i64, tpu.core_type = #tpu.core_type<tc>, window_params = [{transform_indices = @transform_0, window_bounds = array<i64: 64, 128>}, {pipeline_mode = #tpu.pipeline_mode<synchronous>, transform_indices = @transform_1, window_bounds = array<i64: 1, 128>}, {pipeline_mode = #tpu.pipeline_mode<synchronous>, transform_indices = @transform_2, window_bounds = array<i64: 1, 128>}, {transform_indices = @transform_3, window_bounds = array<i64: 64, 128>}, {pipeline_mode = #tpu.pipeline_mode<synchronous>, transform_indices = @transform_4, window_bounds = array<i64: 1, 128>}, {pipeline_mode = #tpu.pipeline_mode<synchronous>, transform_indices = @transform_5, window_bounds = array<i64: 1, 128>}, {transform_indices = @transform_6, window_bounds = array<i64: 64, 128>}]} {
    %c0 = arith.constant 0 : index
    %c0_0 = arith.constant 0 : index
    %0 = vector.load %arg1[%c0, %c0_0] : memref<64x128xbf16, #tpu.memory_space<vmem>>, vector<64x128xbf16>
    %1 = arith.extf %0 : vector<64x128xbf16> to vector<64x128xf32>
    %c0_1 = arith.constant 0 : index
    %c0_2 = arith.constant 0 : index
    %2 = vector.load %arg2[%c0_1, %c0_2] : memref<1x128xf32, #tpu.memory_space<vmem>>, vector<1x128xf32>
    %3 = vector.broadcast %2 : vector<1x128xf32> to vector<64x128xf32>
    %4 = arith.mulf %1, %3 : vector<64x128xf32>
    %c0_3 = arith.constant 0 : index
    %c0_4 = arith.constant 0 : index
    %5 = vector.load %arg3[%c0_3, %c0_4] : memref<1x128xf32, #tpu.memory_space<vmem>>, vector<1x128xf32>
    %6 = vector.broadcast %5 : vector<1x128xf32> to vector<64x128xf32>
    %7 = arith.addf %4, %6 : vector<64x128xf32>
    %c0_5 = arith.constant 0 : index
    %c0_6 = arith.constant 0 : index
    %8 = vector.load %arg4[%c0_5, %c0_6] : memref<64x128xf32, #tpu.memory_space<vmem>>, vector<64x128xf32>
    %c0_7 = arith.constant 0 : index
    %c0_8 = arith.constant 0 : index
    %9 = vector.load %arg5[%c0_7, %c0_8] : memref<1x128xf32, #tpu.memory_space<vmem>>, vector<1x128xf32>
    %10 = vector.broadcast %9 : vector<1x128xf32> to vector<64x128xf32>
    %11 = arith.mulf %8, %10 : vector<64x128xf32>
    %12 = arith.addf %7, %11 : vector<64x128xf32>
    %c0_9 = arith.constant 0 : index
    %c0_10 = arith.constant 0 : index
    %13 = vector.load %arg6[%c0_9, %c0_10] : memref<1x128xf32, #tpu.memory_space<vmem>>, vector<1x128xf32>
    %14 = vector.broadcast %13 : vector<1x128xf32> to vector<64x128xf32>
    %15 = arith.addf %12, %14 : vector<64x128xf32>
    %cst = arith.constant 0.000000e+00 : f32
    %16 = vector.broadcast %cst : f32 to vector<64x128xf32>
    %17 = arith.maximumf %15, %16 : vector<64x128xf32>
    %c0_11 = arith.constant 0 : index
    %c0_12 = arith.constant 0 : index
    %18 = vector.load %arg7[%c0_11, %c0_12] : memref<64x128xf32, #tpu.memory_space<vmem>>, vector<64x128xf32>
    tpu.vector_store %arg7[%c0_11, %c0_12], %17 {strides = array<i32>} : memref<64x128xf32, #tpu.memory_space<vmem>>, vector<64x128xf32>,
    return
  }
  func.func @transform_0(%arg0: i32) -> (i32, i32) {
    %c0_i32 = arith.constant 0 : i32
    %c0_i32_0 = arith.constant 0 : i32
    return %arg0, %c0_i32 : i32, i32
  }
  func.func @transform_1(%arg0: i32) -> (i32, i32) {
    %c0_i32 = arith.constant 0 : i32
    %c0_i32_0 = arith.constant 0 : i32
    %c0_i32_1 = arith.constant 0 : i32
    return %c0_i32, %c0_i32_0 : i32, i32
  }
  func.func @transform_2(%arg0: i32) -> (i32, i32) {
    %c0_i32 = arith.constant 0 : i32
    %c0_i32_0 = arith.constant 0 : i32
    %c0_i32_1 = arith.constant 0 : i32
    return %c0_i32, %c0_i32_0 : i32, i32
  }
  func.func @transform_3(%arg0: i32) -> (i32, i32) {
    %c0_i32 = arith.constant 0 : i32
    %c0_i32_0 = arith.constant 0 : i32
    return %arg0, %c0_i32 : i32, i32
  }
  func.func @transform_4(%arg0: i32) -> (i32, i32) {
    %c0_i32 = arith.constant 0 : i32
    %c0_i32_0 = arith.constant 0 : i32
    %c0_i32_1 = arith.constant 0 : i32
    return %c0_i32, %c0_i32_0 : i32, i32
  }
  func.func @transform_5(%arg0: i32) -> (i32, i32) {
    %c0_i32 = arith.constant 0 : i32
    %c0_i32_0 = arith.constant 0 : i32
    %c0_i32_1 = arith.constant 0 : i32
    return %c0_i32, %c0_i32_0 : i32, i32
  }
  func.func @transform_6(%arg0: i32) -> (i32, i32) {
    %c0_i32 = arith.constant 0 : i32
    %c0_i32_0 = arith.constant 0 : i32
    return %arg0, %c0_i32 : i32, i32
  }
}

</mosaic_0001>

<llo_original>
// kernel: fwd.9
$region0: #{fwd.9}
  #allocation0 [shape = 'u32[]', space=smem, size = 0x4, offset = 0x4, fixed_abs, tag = 'smem constant byte address 0x4 - core index']
  #allocation1 [shape = 'u32[144,128]{1,0:T(1,128)}', space=vmem, size = 0x12000, scoped, tag = 'internal scratch']
  %s0 = inlined_call_operand.vmem [shape: bf16[512,32], index: 0, kind: input, shape index: {}]
  %s1 = inlined_call_operand.vmem [shape: bf16[32,16], index: 1, kind: input, shape index: {}]
  %s2 = inlined_call_operand.vmem [shape: bf16[512,16], index: 2, kind: output, shape index: {0}]
  %s3 = inlined_call_operand.vmem [shape: f32[1,8,16], index: 3, kind: output, shape index: {1}]
  %4 = xla_tuple %s2, %s3
  %s5 = sld [smem:[#allocation0]]
  $region26: #{fwd.9} parent=0
    _
  %s7 = ssub.s32 1, %s5
  %s8 = scalar_select 0, %s7, %s5
  // Predicated region
  $region2: #{fwd.9} parent=0 // pred_check
    _
  $region3: #{fwd.9} parent=0 // pred_check_branch
    %10 = sbr.rel (0) target = $region5
  $region4: #{fwd.9} parent=0 // pred_region
    _
  $region5: #{fwd.9} parent=0 // pred_fallthru
    _
  // Predicated region
  $region6: #{fwd.9} parent=0 // pred_check
    _
  $region7: #{fwd.9} parent=0 // pred_check_branch
    %12 = sbr.rel (0) target = $region9
  $region8: #{fwd.9} parent=0 // pred_region
    _
  $region9: #{fwd.9} parent=0 // pred_fallthru
    _
  %v14 = vld [vmem:[%s0] sm:$0xf]
  %v15 = vld [vmem:[%s0 + $0x4] sm:$0xf]
  %v16 = vld [vmem:[%s0 + $0x8] sm:$0xf]
  %v17 = vld [vmem:[%s0 + $0xc] sm:$0xf]
  %v18 = vld [vmem:[%s0 + $0x10] sm:$0xf]
  %v19 = vld [vmem:[%s0 + $0x14] sm:$0xf]
  %v20 = vld [vmem:[%s0 + $0x18] sm:$0xf]
  %v21 = vld [vmem:[%s0 + $0x1c] sm:$0xf]
  %v22 = vld [vmem:[%s0 + $0x20] sm:$0xf]
  %v23 = vld [vmem:[%s0 + $0x24] sm:$0xf]
  %v24 = vld [vmem:[%s0 + $0x28] sm:$0xf]
  %v25 = vld [vmem:[%s0 + $0x2c] sm:$0xf]
  %v26 = vld [vmem:[%s0 + $0x30] sm:$0xf]
  %v27 = vld [vmem:[%s0 + $0x34] sm:$0xf]
  %v28 = vld [vmem:[%s0 + $0x38] sm:$0xf]
  %v29 = vld [vmem:[%s0 + $0x3c] sm:$0xf]
  %v30 = vld [vmem:[%s0 + $0x40] sm:$0xf]
  %v31 = vld [vmem:[%s0 + $0x44] sm:$0xf]
  %v32 = vld [vmem:[%s0 + $0x48] sm:$0xf]
  %v33 = vld [vmem:[%s0 + $0x4c] sm:$0xf]
  %v34 = vld [vmem:[%s0 + $0x50] sm:$0xf]
  %v35 = vld [vmem:[%s0 + $0x54] sm:$0xf]
  %v36 = vld [vmem:[%s0 + $0x58] sm:$0xf]
  %v37 = vld [vmem:[%s0 + $0x5c] sm:$0xf]
  %v38 = vld [vmem:[%s0 + $0x60] sm:$0xf]
  %v39 = vld [vmem:[%s0 + $0x64] sm:$0xf]
  %v40 = vld [vmem:[%s0 + $0x68] sm:$0xf]
  %v41 = vld [vmem:[%s0 + $0x6c] sm:$0xf]
  %v42 = vld [vmem:[%s0 + $0x70] sm:$0xf]
  %v43 = vld [vmem:[%s0 + $0x74] sm:$0xf]
  %v44 = vld [vmem:[%s0 + $0x78] sm:$0xf]
  %v45 = vld [vmem:[%s0 + $0x7c] sm:$0xf]
  %v46 = vld [vmem:[%s0 + $0x80] sm:$0xf]
  %v47 = vld [vmem:[%s0 + $0x84] sm:$0xf]
  %v48 = vld [vmem:[%s0 + $0x88] sm:$0xf]
  %v49 = vld [vmem:[%s0 + $0x8c] sm:$0xf]
  %v50 = vld [vmem:[%s0 + $0x90] sm:$0xf]
  %v51 = vld [vmem:[%s0 + $0x94] sm:$0xf]
  %v52 = vld [vmem:[%s0 + $0x98] sm:$0xf]
  %v53 = vld [vmem:[%s0 + $0x9c] sm:$0xf]
  %v54 = vld [vmem:[%s0 + $0xa0] sm:$0xf]
  %v55 = vld [vmem:[%s0 + $0xa4] sm:$0xf]
  %v56 = vld [vmem:[%s0 + $0xa8] sm:$0xf]
  %v57 = vld [vmem:[%s0 + $0xac] sm:$0xf]
  %v58 = vld [vmem:[%s0 + $0xb0] sm:$0xf]
  %v59 = vld [vmem:[%s0 + $0xb4] sm:$0xf]
  %v60 = vld [vmem:[%s0 + $0xb8] sm:$0xf]
  %v61 = vld [vmem:[%s0 + $0xbc] sm:$0xf]
  %v62 = vld [vmem:[%s0 + $0xc0] sm:$0xf]
  %v63 = vld [vmem:[%s0 + $0xc4] sm:$0xf]
  %v64 = vld [vmem:[%s0 + $0xc8] sm:$0xf]
  %v65 = vld [vmem:[%s0 + $0xcc] sm:$0xf]
  %v66 = vld [vmem:[%s0 + $0xd0] sm:$0xf]
  %v67 = vld [vmem:[%s0 + $0xd4] sm:$0xf]
  %v68 = vld [vmem:[%s0 + $0xd8] sm:$0xf]
  %v69 = vld [vmem:[%s0 + $0xdc] sm:$0xf]
  %v70 = vld [vmem:[%s0 + $0xe0] sm:$0xf]
  %v71 = vld [vmem:[%s0 + $0xe4] sm:$0xf]
  %v72 = vld [vmem:[%s0 + $0xe8] sm:$0xf]
  %v73 = vld [vmem:[%s0 + $0xec] sm:$0xf]
  %v74 = vld [vmem:[%s0 + $0xf0] sm:$0xf]
  %v75 = vld [vmem:[%s0 + $0xf4] sm:$0xf]
  %v76 = vld [vmem:[%s0 + $0xf8] sm:$0xf]
  %v77 = vld [vmem:[%s0 + $0xfc] sm:$0xf]
  %v78 = vld [vmem:[%s1] sm:$0xf]
  %v79 = vld [vmem:[%s1 + $0x4] sm:$0xf]
  %v80 = vld [vmem:[%s1 + $0x8] sm:$0xf]
  %v81 = vld [vmem:[%s1 + $0xc] sm:$0xf]
  %v146 = vunpack.c.l.b16 %v14
  %v147 = vunpack.c.l.b16 %v15
  %v148 = vunpack.c.l.b16 %v16
  %v149 = vunpack.c.l.b16 %v17
  %v150 = vunpack.c.l.b16 %v18
  %v151 = vunpack.c.l.b16 %v19
  %v152 = vunpack.c.l.b16 %v20
  %v153 = vunpack.c.l.b16 %v21
  %v154 = vunpack.c.l.b16 %v22
  %v155 = vunpack.c.l.b16 %v23
  %v156 = vunpack.c.l.b16 %v24
  %v157 = vunpack.c.l.b16 %v25
  %v158 = vunpack.c.l.b16 %v26
  %v159 = vunpack.c.l.b16 %v27
  %v160 = vunpack.c.l.b16 %v28
  %v161 = vunpack.c.l.b16 %v29
  %v162 = vunpack.c.l.b16 %v30
  %v163 = vunpack.c.l.b16 %v31
  %v164 = vunpack.c.l.b16 %v32
  %v165 = vunpack.c.l.b16 %v33
  %v166 = vunpack.c.l.b16 %v34
  %v167 = vunpack.c.l.b16 %v35
  %v168 = vunpack.c.l.b16 %v36
  %v169 = vunpack.c.l.b16 %v37
  %v170 = vunpack.c.l.b16 %v38
  %v171 = vunpack.c.l.b16 %v39
  %v172 = vunpack.c.l.b16 %v40
  %v173 = vunpack.c.l.b16 %v41
  %v174 = vunpack.c.l.b16 %v42
  %v175 = vunpack.c.l.b16 %v43
  %v176 = vunpack.c.l.b16 %v44
  %v177 = vunpack.c.l.b16 %v45
  %v178 = vunpack.c.l.b16 %v46
  %v179 = vunpack.c.l.b16 %v47
  %v180 = vunpack.c.l.b16 %v48
  %v181 = vunpack.c.l.b16 %v49
  %v182 = vunpack.c.l.b16 %v50
  %v183 = vunpack.c.l.b16 %v51
  %v184 = vunpack.c.l.b16 %v52
  %v185 = vunpack.c.l.b16 %v53
  %v186 = vunpack.c.l.b16 %v54
  %v187 = vunpack.c.l.b16 %v55
  %v188 = vunpack.c.l.b16 %v56
  %v189 = vunpack.c.l.b16 %v57
  %v190 = vunpack.c.l.b16 %v58
  %v191 = vunpack.c.l.b16 %v59
  %v192 = vunpack.c.l.b16 %v60
  %v193 = vunpack.c.l.b16 %v61
  %v194 = vunpack.c.l.b16 %v62
  %v195 = vunpack.c.l.b16 %v63
  %v196 = vunpack.c.l.b16 %v64
  %v197 = vunpack.c.l.b16 %v65
  %v198 = vunpack.c.l.b16 %v66
  %v199 = vunpack.c.l.b16 %v67
  %v200 = vunpack.c.l.b16 %v68
  %v201 = vunpack.c.l.b16 %v69
  %v202 = vunpack.c.l.b16 %v70
  %v203 = vunpack.c.l.b16 %v71
  %v204 = vunpack.c.l.b16 %v72
  %v205 = vunpack.c.l.b16 %v73
  %v206 = vunpack.c.l.b16 %v74
  %v207 = vunpack.c.l.b16 %v75
  %v208 = vunpack.c.l.b16 %v76
  %v209 = vunpack.c.l.b16 %v77
  %v210 = vpack.c.b16 %v147, %v146
  %v211 = vpack.c.b16 %v149, %v148
  %v212 = vpack.c.b16 %v151, %v150
  %v213 = vpack.c.b16 %v153, %v152
  %v214 = vpack.c.b16 %v155, %v154
  %v215 = vpack.c.b16 %v157, %v156
  %v216 = vpack.c.b16 %v159, %v158
  %v217 = vpack.c.b16 %v161, %v160
  %v218 = vpack.c.b16 %v163, %v162
  %v219 = vpack.c.b16 %v165, %v164
  %v220 = vpack.c.b16 %v167, %v166
  %v221 = vpack.c.b16 %v169, %v168
  %v222 = vpack.c.b16 %v171, %v170
  %v223 = vpack.c.b16 %v173, %v172
  %v224 = vpack.c.b16 %v175, %v174
  %v225 = vpack.c.b16 %v177, %v176
  %v226 = vpack.c.b16 %v179, %v178
  %v227 = vpack.c.b16 %v181, %v180
  %v228 = vpack.c.b16 %v183, %v182
  %v229 = vpack.c.b16 %v185, %v184
  %v230 = vpack.c.b16 %v187, %v186
  %v231 = vpack.c.b16 %v189, %v188
  %v232 = vpack.c.b16 %v191, %v190
  %v233 = vpack.c.b16 %v193, %v192
  %v234 = vpack.c.b16 %v195, %v194
  %v235 = vpack.c.b16 %v197, %v196
  %v236 = vpack.c.b16 %v199, %v198
  %v237 = vpack.c.b16 %v201, %v200
  %v238 = vpack.c.b16 %v203, %v202
  %v239 = vpack.c.b16 %v205, %v204
  %v240 = vpack.c.b16 %v207, %v206
  %v241 = vpack.c.b16 %v209, %v208
  %v246 = vunpack.c.l.b16 %v78
  %v247 = vunpack.c.l.b16 %v79
  %v248 = vunpack.c.l.b16 %v80
  %v249 = vunpack.c.l.b16 %v81
  %v250 = vpack.c.b16 %v247, %v246
  %v251 = vpack.c.b16 %v249, %v248
  %vm254 = vcmask 261120
  %v256 = vsel %vm254, %v210, 0
  %v259 = vsel %vm254, %v211, 0
  %v262 = vsel %vm254, %v212, 0
  %v265 = vsel %vm254, %v213, 0
  %v268 = vsel %vm254, %v214, 0
  %v271 = vsel %vm254, %v215, 0
  %v274 = vsel %vm254, %v216, 0
  %v277 = vsel %vm254, %v217, 0
  %v280 = vsel %vm254, %v218, 0
  %v283 = vsel %vm254, %v219, 0
  %v286 = vsel %vm254, %v220, 0
  %v289 = vsel %vm254, %v221, 0
  %v292 = vsel %vm254, %v222, 0
  %v295 = vsel %vm254, %v223, 0
  %v298 = vsel %vm254, %v224, 0
  %v301 = vsel %vm254, %v225, 0
  %v304 = vsel %vm254, %v226, 0
  %v307 = vsel %vm254, %v227, 0
  %v310 = vsel %vm254, %v228, 0
  %v313 = vsel %vm254, %v229, 0
  %v316 = vsel %vm254, %v230, 0
  %v319 = vsel %vm254, %v231, 0
  %v322 = vsel %vm254, %v232, 0
  %v325 = vsel %vm254, %v233, 0
  %v328 = vsel %vm254, %v234, 0
  %v331 = vsel %vm254, %v235, 0
  %v334 = vsel %vm254, %v236, 0
  %v337 = vsel %vm254, %v237, 0
  %v340 = vsel %vm254, %v238, 0
  %v343 = vsel %vm254, %v239, 0
  %v346 = vsel %vm254, %v240, 0
  %v349 = vsel %vm254, %v241, 0
  %351 = vmatprep.subr.bf16.mxu0 0
  %352 = vmatpush1.bf16.msra.mxu0 %v250
  %353 = vmatprep.subr.bf16.mxu0 0
  %354 = vmatpush1.bf16.msra.mxu0 %v251
  %355 = vmatprep.subr.bf16.mxu0 0
  %356 = vmatpush1.bf16.msra.mxu0 0
  %357 = vmatprep.subr.bf16.mxu0 0
  %358 = vmatpush1.bf16.msra.mxu0 0
  %359 = vmatprep.subr.bf16.mxu0 0
  %360 = vmatpush1.bf16.msra.mxu0 0
  %361 = vmatprep.subr.bf16.mxu0 0
  %362 = vmatpush1.bf16.msra.mxu0 0
  %363 = vmatprep.subr.bf16.mxu0 0
  %364 = vmatpush1.bf16.msra.mxu0 0
  %365 = vmatprep.subr.bf16.mxu0 0
  %366 = vmatpush1.bf16.msra.mxu0 0
  %367 = vmatprep.subr.bf16.mxu0 0
  %368 = vmatpush1.bf16.msra.mxu0 0
  %369 = vmatprep.subr.bf16.mxu0 0
  %370 = vmatpush1.bf16.msra.mxu0 0
  %371 = vmatprep.subr.bf16.mxu0 0
  %372 = vmatpush1.bf16.msra.mxu0 0
  %373 = vmatprep.subr.bf16.mxu0 0
  %374 = vmatpush1.bf16.msra.mxu0 0
  %375 = vmatprep.subr.bf16.mxu0 0
  %376 = vmatpush1.bf16.msra.mxu0 0
  %377 = vmatprep.subr.bf16.mxu0 0
  %378 = vmatpush1.bf16.msra.mxu0 0
  %379 = vmatprep.subr.bf16.mxu0 0
  %380 = vmatpush1.bf16.msra.mxu0 0
  %381 = vmatprep.subr.bf16.mxu0 0
  %382 = vmatpush1.bf16.msra.mxu0 0
  %383 = vmatprep.mubr.bf16.mxu0 0
  %384 = vmatmul.mubr.bf16.gmra.mrb[0].mxu0 %v256
  %v385 = vpop.f32.mrb[0].mxu0
  %v386 = vadd.f32 0.0, %v385
  %v387 = vpop.f32.mrb[0].mxu0
  %v388 = vpop.f32.mrb[0].mxu0
  %v389 = vadd.f32 0.0, %v388
  %v390 = vpop.f32.mrb[0].mxu0
  %391 = vmatprep.mubr.bf16.mxu0 0
  %392 = vmatmul.mubr.bf16.gmra.mrb[0].mxu0 %v259
  %v393 = vpop.f32.mrb[0].mxu0
  %v394 = vadd.f32 0.0, %v393
  %v395 = vpop.f32.mrb[0].mxu0
  %v396 = vpop.f32.mrb[0].mxu0
  %v397 = vadd.f32 0.0, %v396
  %v398 = vpop.f32.mrb[0].mxu0
  %399 = vmatprep.mubr.bf16.mxu0 0
  %400 = vmatmul.mubr.bf16.gmra.mrb[0].mxu0 %v262
  %v401 = vpop.f32.mrb[0].mxu0
  %v402 = vadd.f32 0.0, %v401
  %v403 = vpop.f32.mrb[0].mxu0
  %v404 = vpop.f32.mrb[0].mxu0
  %v405 = vadd.f32 0.0, %v404
  %v406 = vpop.f32.mrb[0].mxu0
  %407 = vmatprep.mubr.bf16.mxu0 0
  %408 = vmatmul.mubr.bf16.gmra.mrb[0].mxu0 %v265
  %v409 = vpop.f32.mrb[0].mxu0
  %v410 = vadd.f32 0.0, %v409
  %v411 = vpop.f32.mrb[0].mxu0
  %v412 = vpop.f32.mrb[0].mxu0
  %v413 = vadd.f32 0.0, %v412
  %v414 = vpop.f32.mrb[0].mxu0
  %415 = vmatprep.mubr.bf16.mxu0 0
  %416 = vmatmul.mubr.bf16.gmra.mrb[0].mxu0 %v268
  %v417 = vpop.f32.mrb[0].mxu0
  %v418 = vadd.f32 0.0, %v417
  %v419 = vpop.f32.mrb[0].mxu0
  %v420 = vpop.f32.mrb[0].mxu0
  %v421 = vadd.f32 0.0, %v420
  %v422 = vpop.f32.mrb[0].mxu0
  %423 = vmatprep.mubr.bf16.mxu0 0
  %424 = vmatmul.mubr.bf16.gmra.mrb[0].mxu0 %v271
  %v425 = vpop.f32.mrb[0].mxu0
  %v426 = vadd.f32 0.0, %v425
  %v427 = vpop.f32.mrb[0].mxu0
  %v428 = vpop.f32.mrb[0].mxu0
  %v429 = vadd.f32 0.0, %v428
  %v430 = vpop.f32.mrb[0].mxu0
  %431 = vmatprep.mubr.bf16.mxu0 0
  %432 = vmatmul.mubr.bf16.gmra.mrb[0].mxu0 %v274
  %v433 = vpop.f32.mrb[0].mxu0
  %v434 = vadd.f32 0.0, %v433
  %v435 = vpop.f32.mrb[0].mxu0
  %v436 = vpop.f32.mrb[0].mxu0
  %v437 = vadd.f32 0.0, %v436
  %v438 = vpop.f32.mrb[0].mxu0
  %439 = vmatprep.mubr.bf16.mxu0 0
  %440 = vmatmul.mubr.bf16.gmra.mrb[0].mxu0 %v277
  %v441 = vpop.f32.mrb[0].mxu0
  %v442 = vadd.f32 0.0, %v441
  %v443 = vpop.f32.mrb[0].mxu0
  %v444 = vpop.f32.mrb[0].mxu0
  %v445 = vadd.f32 0.0, %v444
  %v446 = vpop.f32.mrb[0].mxu0
  %447 = vmatprep.mubr.bf16.mxu0 0
  %448 = vmatmul.mubr.bf16.gmra.mrb[0].mxu0 %v280
  %v449 = vpop.f32.mrb[0].mxu0
  %v450 = vadd.f32 0.0, %v449
  %v451 = vpop.f32.mrb[0].mxu0
  %v452 = vpop.f32.mrb[0].mxu0
  %v453 = vadd.f32 0.0, %v452
  %v454 = vpop.f32.mrb[0].mxu0
  %455 = vmatprep.mubr.bf16.mxu0 0
  %456 = vmatmul.mubr.bf16.gmra.mrb[0].mxu0 %v283
  %v457 = vpop.f32.mrb[0].mxu0
  %v458 = vadd.f32 0.0, %v457
  %v459 = vpop.f32.mrb[0].mxu0
  %v460 = vpop.f32.mrb[0].mxu0
  %v461 = vadd.f32 0.0, %v460
  %v462 = vpop.f32.mrb[0].mxu0
  %463 = vmatprep.mubr.bf16.mxu0 0
  %464 = vmatmul.mubr.bf16.gmra.mrb[0].mxu0 %v286
  %v465 = vpop.f32.mrb[0].mxu0
  %v466 = vadd.f32 0.0, %v465
  %v467 = vpop.f32.mrb[0].mxu0
  %v468 = vpop.f32.mrb[0].mxu0
  %v469 = vadd.f32 0.0, %v468
  %v470 = vpop.f32.mrb[0].mxu0
  %471 = vmatprep.mubr.bf16.mxu0 0
  %472 = vmatmul.mubr.bf16.gmra.mrb[0].mxu0 %v289
  %v473 = vpop.f32.mrb[0].mxu0
  %v474 = vadd.f32 0.0, %v473
  %v475 = vpop.f32.mrb[0].mxu0
  %v476 = vpop.f32.mrb[0].mxu0
  %v477 = vadd.f32 0.0, %v476
  %v478 = vpop.f32.mrb[0].mxu0
  %479 = vmatprep.mubr.bf16.mxu0 0
  %480 = vmatmul.mubr.bf16.gmra.mrb[0].mxu0 %v292
  %v481 = vpop.f32.mrb[0].mxu0
  %v482 = vadd.f32 0.0, %v481
  %v483 = vpop.f32.mrb[0].mxu0
  %v484 = vpop.f32.mrb[0].mxu0
  %v485 = vadd.f32 0.0, %v484
  %v486 = vpop.f32.mrb[0].mxu0
  %487 = vmatprep.mubr.bf16.mxu0 0
  %488 = vmatmul.mubr.bf16.gmra.mrb[0].mxu0 %v295
  %v489 = vpop.f32.mrb[0].mxu0
  %v490 = vadd.f32 0.0, %v489
  %v491 = vpop.f32.mrb[0].mxu0
  %v492 = vpop.f32.mrb[0].mxu0
  %v493 = vadd.f32 0.0, %v492
  %v494 = vpop.f32.mrb[0].mxu0
  %495 = vmatprep.mubr.bf16.mxu0 0
  %496 = vmatmul.mubr.bf16.gmra.mrb[0].mxu0 %v298
  %v497 = vpop.f32.mrb[0].mxu0
  %v498 = vadd.f32 0.0, %v497
  %v499 = vpop.f32.mrb[0].mxu0
  %v500 = vpop.f32.mrb[0].mxu0
  %v501 = vadd.f32 0.0, %v500
  %v502 = vpop.f32.mrb[0].mxu0
  %503 = vmatprep.mubr.bf16.mxu0 0
  %504 = vmatmul.mubr.bf16.gmra.mrb[0].mxu0 %v301
  %v505 = vpop.f32.mrb[0].mxu0
  %v506 = vadd.f32 0.0, %v505
  %v507 = vpop.f32.mrb[0].mxu0
  %v508 = vpop.f32.mrb[0].mxu0
  %v509 = vadd.f32 0.0, %v508
  %v510 = vpop.f32.mrb[0].mxu0
  %511 = vmatprep.mubr.bf16.mxu0 0
  %512 = vmatmul.mubr.bf16.gmra.mrb[0].mxu0 %v304
  %v513 = vpop.f32.mrb[0].mxu0
  %v514 = vadd.f32 0.0, %v513
  %v515 = vpop.f32.mrb[0].mxu0
  %v516 = vpop.f32.mrb[0].mxu0
  %v517 = vadd.f32 0.0, %v516
  %v518 = vpop.f32.mrb[0].mxu0
  %519 = vmatprep.mubr.bf16.mxu0 0
  %520 = vmatmul.mubr.bf16.gmra.mrb[0].mxu0 %v307
  %v521 = vpop.f32.mrb[0].mxu0
  %v522 = vadd.f32 0.0, %v521
  %v523 = vpop.f32.mrb[0].mxu0
  %v524 = vpop.f32.mrb[0].mxu0
  %v525 = vadd.f32 0.0, %v524
  %v526 = vpop.f32.mrb[0].mxu0
  %527 = vmatprep.mubr.bf16.mxu0 0
  %528 = vmatmul.mubr.bf16.gmra.mrb[0].mxu0 %v310
  %v529 = vpop.f32.mrb[0].mxu0
  %v530 = vadd.f32 0.0, %v529
  %v531 = vpop.f32.mrb[0].mxu0
  %v532 = vpop.f32.mrb[0].mxu0
  %v533 = vadd.f32 0.0, %v532
  %v534 = vpop.f32.mrb[0].mxu0
  %535 = vmatprep.mubr.bf16.mxu0 0
  %536 = vmatmul.mubr.bf16.gmra.mrb[0].mxu0 %v313
  %v537 = vpop.f32.mrb[0].mxu0
  %v538 = vadd.f32 0.0, %v537
  %v539 = vpop.f32.mrb[0].mxu0
  %v540 = vpop.f32.mrb[0].mxu0
  %v541 = vadd.f32 0.0, %v540
  %v542 = vpop.f32.mrb[0].mxu0
  %543 = vmatprep.mubr.bf16.mxu0 0
  %544 = vmatmul.mubr.bf16.gmra.mrb[0].mxu0 %v316
  %v545 = vpop.f32.mrb[0].mxu0
  %v546 = vadd.f32 0.0, %v545
  %v547 = vpop.f32.mrb[0].mxu0
  %v548 = vpop.f32.mrb[0].mxu0
  %v549 = vadd.f32 0.0, %v548
  %v550 = vpop.f32.mrb[0].mxu0
  %551 = vmatprep.mubr.bf16.mxu0 0
  %552 = vmatmul.mubr.bf16.gmra.mrb[0].mxu0 %v319
  %v553 = vpop.f32.mrb[0].mxu0
  %v554 = vadd.f32 0.0, %v553
  %v555 = vpop.f32.mrb[0].mxu0
  %v556 = vpop.f32.mrb[0].mxu0
  %v557 = vadd.f32 0.0, %v556
  %v558 = vpop.f32.mrb[0].mxu0
  %559 = vmatprep.mubr.bf16.mxu0 0
  %560 = vmatmul.mubr.bf16.gmra.mrb[0].mxu0 %v322
  %v561 = vpop.f32.mrb[0].mxu0
  %v562 = vadd.f32 0.0, %v561
  %v563 = vpop.f32.mrb[0].mxu0
  %v564 = vpop.f32.mrb[0].mxu0
  %v565 = vadd.f32 0.0, %v564
  %v566 = vpop.f32.mrb[0].mxu0
  %567 = vmatprep.mubr.bf16.mxu0 0
  %568 = vmatmul.mubr.bf16.gmra.mrb[0].mxu0 %v325
  %v569 = vpop.f32.mrb[0].mxu0
  %v570 = vadd.f32 0.0, %v569
  %v571 = vpop.f32.mrb[0].mxu0
  %v572 = vpop.f32.mrb[0].mxu0
  %v573 = vadd.f32 0.0, %v572
  %v574 = vpop.f32.mrb[0].mxu0
  %575 = vmatprep.mubr.bf16.mxu0 0
  %576 = vmatmul.mubr.bf16.gmra.mrb[0].mxu0 %v328
  %v577 = vpop.f32.mrb[0].mxu0
  %v578 = vadd.f32 0.0, %v577
  %v579 = vpop.f32.mrb[0].mxu0
  %v580 = vpop.f32.mrb[0].mxu0
  %v581 = vadd.f32 0.0, %v580
  %v582 = vpop.f32.mrb[0].mxu0
  %583 = vmatprep.mubr.bf16.mxu0 0
  %584 = vmatmul.mubr.bf16.gmra.mrb[0].mxu0 %v331
  %v585 = vpop.f32.mrb[0].mxu0
  %v586 = vadd.f32 0.0, %v585
  %v587 = vpop.f32.mrb[0].mxu0
  %v588 = vpop.f32.mrb[0].mxu0
  %v589 = vadd.f32 0.0, %v588
  %v590 = vpop.f32.mrb[0].mxu0
  %591 = vmatprep.mubr.bf16.mxu0 0
  %592 = vmatmul.mubr.bf16.gmra.mrb[0].mxu0 %v334
  %v593 = vpop.f32.mrb[0].mxu0
  %v594 = vadd.f32 0.0, %v593
  %v595 = vpop.f32.mrb[0].mxu0
  %v596 = vpop.f32.mrb[0].mxu0
  %v597 = vadd.f32 0.0, %v596
  %v598 = vpop.f32.mrb[0].mxu0
  %599 = vmatprep.mubr.bf16.mxu0 0
  %600 = vmatmul.mubr.bf16.gmra.mrb[0].mxu0 %v337
  %v601 = vpop.f32.mrb[0].mxu0
  %v602 = vadd.f32 0.0, %v601
  %v603 = vpop.f32.mrb[0].mxu0
  %v604 = vpop.f32.mrb[0].mxu0
  %v605 = vadd.f32 0.0, %v604
  %v606 = vpop.f32.mrb[0].mxu0
  %607 = vmatprep.mubr.bf16.mxu0 0
  %608 = vmatmul.mubr.bf16.gmra.mrb[0].mxu0 %v340
  %v609 = vpop.f32.mrb[0].mxu0
  %v610 = vadd.f32 0.0, %v609
  %v611 = vpop.f32.mrb[0].mxu0
  %v612 = vpop.f32.mrb[0].mxu0
  %v613 = vadd.f32 0.0, %v612
  %v614 = vpop.f32.mrb[0].mxu0
  %615 = vmatprep.mubr.bf16.mxu0 0
  %616 = vmatmul.mubr.bf16.gmra.mrb[0].mxu0 %v343
  %v617 = vpop.f32.mrb[0].mxu0
  %v618 = vadd.f32 0.0, %v617
  %v619 = vpop.f32.mrb[0].mxu0
  %v620 = vpop.f32.mrb[0].mxu0
  %v621 = vadd.f32 0.0, %v620
  %v622 = vpop.f32.mrb[0].mxu0
  %623 = vmatprep.mubr.bf16.mxu0 0
  %624 = vmatmul.mubr.bf16.gmra.mrb[0].mxu0 %v346
  %v625 = vpop.f32.mrb[0].mxu0
  %v626 = vadd.f32 0.0, %v625
  %v627 = vpop.f32.mrb[0].mxu0
  %v628 = vpop.f32.mrb[0].mxu0
  %v629 = vadd.f32 0.0, %v628
  %v630 = vpop.f32.mrb[0].mxu0
  %631 = vmatprep.mubr.bf16.mxu0 0
  %632 = vmatmul.mubr.bf16.gmra.mrb[0].mxu0 %v349
  %v633 = vpop.f32.mrb[0].mxu0
  %v634 = vadd.f32 0.0, %v633
  %v635 = vpop.f32.mrb[0].mxu0
  %v636 = vpop.f32.mrb[0].mxu0
  %v637 = vadd.f32 0.0, %v636
  %v638 = vpop.f32.mrb[0].mxu0
  %639 = vdwg.mxu0
  %v640 = vpack.c.bf16 %v389, %v386
  %v641 = vpack.c.bf16 %v397, %v394
  %v642 = vpack.c.bf16 %v405, %v402
  %v643 = vpack.c.bf16 %v413, %v410
  %v644 = vpack.c.bf16 %v421, %v418
  %v645 = vpack.c.bf16 %v429, %v426
  %v646 = vpack.c.bf16 %v437, %v434
  %v647 = vpack.c.bf16 %v445, %v442
  %v648 = vpack.c.bf16 %v453, %v450
  %v649 = vpack.c.bf16 %v461, %v458
  %v650 = vpack.c.bf16 %v469, %v466
  %v651 = vpack.c.bf16 %v477, %v474
  %v652 = vpack.c.bf16 %v485, %v482
  %v653 = vpack.c.bf16 %v493, %v490
  %v654 = vpack.c.bf16 %v501, %v498
  %v655 = vpack.c.bf16 %v509, %v506
  %v656 = vpack.c.bf16 %v517, %v514
  %v657 = vpack.c.bf16 %v525, %v522
  %v658 = vpack.c.bf16 %v533, %v530
  %v659 = vpack.c.bf16 %v541, %v538
  %v660 = vpack.c.bf16 %v549, %v546
  %v661 = vpack.c.bf16 %v557, %v554
  %v662 = vpack.c.bf16 %v565, %v562
  %v663 = vpack.c.bf16 %v573, %v570
  %v664 = vpack.c.bf16 %v581, %v578
  %v665 = vpack.c.bf16 %v589, %v586
  %v666 = vpack.c.bf16 %v597, %v594
  %v667 = vpack.c.bf16 %v605, %v602
  %v668 = vpack.c.bf16 %v613, %v610
  %v669 = vpack.c.bf16 %v621, %v618
  %v670 = vpack.c.bf16 %v629, %v626
  %v671 = vpack.c.bf16 %v637, %v634
  %v704 = vunpack.c.l.b16 %v640
  %v705 = vunpack.c.h.b16 %v640
  %v706 = vunpack.c.l.b16 %v641
  %v707 = vunpack.c.h.b16 %v641
  %v708 = vunpack.c.l.b16 %v642
  %v709 = vunpack.c.h.b16 %v642
  %v710 = vunpack.c.l.b16 %v643
  %v711 = vunpack.c.h.b16 %v643
  %v712 = vunpack.c.l.b16 %v644
  %v713 = vunpack.c.h.b16 %v644
  %v714 = vunpack.c.l.b16 %v645
  %v715 = vunpack.c.h.b16 %v645
  %v716 = vunpack.c.l.b16 %v646
  %v717 = vunpack.c.h.b16 %v646
  %v718 = vunpack.c.l.b16 %v647
  %v719 = vunpack.c.h.b16 %v647
  %v720 = vunpack.c.l.b16 %v648
  %v721 = vunpack.c.h.b16 %v648
  %v722 = vunpack.c.l.b16 %v649
  %v723 = vunpack.c.h.b16 %v649
  %v724 = vunpack.c.l.b16 %v650
  %v725 = vunpack.c.h.b16 %v650
  %v726 = vunpack.c.l.b16 %v651
  %v727 = vunpack.c.h.b16 %v651
  %v728 = vunpack.c.l.b16 %v652
  %v729 = vunpack.c.h.b16 %v652
  %v730 = vunpack.c.l.b16 %v653
  %v731 = vunpack.c.h.b16 %v653
  %v732 = vunpack.c.l.b16 %v654
  %v733 = vunpack.c.h.b16 %v654
  %v734 = vunpack.c.l.b16 %v655
  %v735 = vunpack.c.h.b16 %v655
  %v736 = vunpack.c.l.b16 %v656
  %v737 = vunpack.c.h.b16 %v656
  %v738 = vunpack.c.l.b16 %v657
  %v739 = vunpack.c.h.b16 %v657
  %v740 = vunpack.c.l.b16 %v658
  %v741 = vunpack.c.h.b16 %v658
  %v742 = vunpack.c.l.b16 %v659
  %v743 = vunpack.c.h.b16 %v659
  %v744 = vunpack.c.l.b16 %v660
  %v745 = vunpack.c.h.b16 %v660
  %v746 = vunpack.c.l.b16 %v661
  %v747 = vunpack.c.h.b16 %v661
  %v748 = vunpack.c.l.b16 %v662
  %v749 = vunpack.c.h.b16 %v662
  %v750 = vunpack.c.l.b16 %v663
  %v751 = vunpack.c.h.b16 %v663
  %v752 = vunpack.c.l.b16 %v664
  %v753 = vunpack.c.h.b16 %v664
  %v754 = vunpack.c.l.b16 %v665
  %v755 = vunpack.c.h.b16 %v665
  %v756 = vunpack.c.l.b16 %v666
  %v757 = vunpack.c.h.b16 %v666
  %v758 = vunpack.c.l.b16 %v667
  %v759 = vunpack.c.h.b16 %v667
  %v760 = vunpack.c.l.b16 %v668
  %v761 = vunpack.c.h.b16 %v668
  %v762 = vunpack.c.l.b16 %v669
  %v763 = vunpack.c.h.b16 %v669
  %v764 = vunpack.c.l.b16 %v670
  %v765 = vunpack.c.h.b16 %v670
  %v766 = vunpack.c.l.b16 %v671
  %v767 = vunpack.c.h.b16 %v671
  %v768 = vpack.c.b16 %v704, %v704
  %v769 = vpack.c.b16 %v705, %v705
  %v770 = vpack.c.b16 %v706, %v706
  %v771 = vpack.c.b16 %v707, %v707
  %v772 = vpack.c.b16 %v708, %v708
  %v773 = vpack.c.b16 %v709, %v709
  %v774 = vpack.c.b16 %v710, %v710
  %v775 = vpack.c.b16 %v711, %v711
  %v776 = vpack.c.b16 %v712, %v712
  %v777 = vpack.c.b16 %v713, %v713
  %v778 = vpack.c.b16 %v714, %v714
  %v779 = vpack.c.b16 %v715, %v715
  %v780 = vpack.c.b16 %v716, %v716
  %v781 = vpack.c.b16 %v717, %v717
  %v782 = vpack.c.b16 %v718, %v718
  %v783 = vpack.c.b16 %v719, %v719
  %v784 = vpack.c.b16 %v720, %v720
  %v785 = vpack.c.b16 %v721, %v721
  %v786 = vpack.c.b16 %v722, %v722
  %v787 = vpack.c.b16 %v723, %v723
  %v788 = vpack.c.b16 %v724, %v724
  %v789 = vpack.c.b16 %v725, %v725
  %v790 = vpack.c.b16 %v726, %v726
  %v791 = vpack.c.b16 %v727, %v727
  %v792 = vpack.c.b16 %v728, %v728
  %v793 = vpack.c.b16 %v729, %v729
  %v794 = vpack.c.b16 %v730, %v730
  %v795 = vpack.c.b16 %v731, %v731
  %v796 = vpack.c.b16 %v732, %v732
  %v797 = vpack.c.b16 %v733, %v733
  %v798 = vpack.c.b16 %v734, %v734
  %v799 = vpack.c.b16 %v735, %v735
  %v800 = vpack.c.b16 %v736, %v736
  %v801 = vpack.c.b16 %v737, %v737
  %v802 = vpack.c.b16 %v738, %v738
  %v803 = vpack.c.b16 %v739, %v739
  %v804 = vpack.c.b16 %v740, %v740
  %v805 = vpack.c.b16 %v741, %v741
  %v806 = vpack.c.b16 %v742, %v742
  %v807 = vpack.c.b16 %v743, %v743
  %v808 = vpack.c.b16 %v744, %v744
  %v809 = vpack.c.b16 %v745, %v745
  %v810 = vpack.c.b16 %v746, %v746
  %v811 = vpack.c.b16 %v747, %v747
  %v812 = vpack.c.b16 %v748, %v748
  %v813 = vpack.c.b16 %v749, %v749
  %v814 = vpack.c.b16 %v750, %v750
  %v815 = vpack.c.b16 %v751, %v751
  %v816 = vpack.c.b16 %v752, %v752
  %v817 = vpack.c.b16 %v753, %v753
  %v818 = vpack.c.b16 %v754, %v754
  %v819 = vpack.c.b16 %v755, %v755
  %v820 = vpack.c.b16 %v756, %v756
  %v821 = vpack.c.b16 %v757, %v757
  %v822 = vpack.c.b16 %v758, %v758
  %v823 = vpack.c.b16 %v759, %v759
  %v824 = vpack.c.b16 %v760, %v760
  %v825 = vpack.c.b16 %v761, %v761
  %v826 = vpack.c.b16 %v762, %v762
  %v827 = vpack.c.b16 %v763, %v763
  %v828 = vpack.c.b16 %v764, %v764
  %v829 = vpack.c.b16 %v765, %v765
  %v830 = vpack.c.b16 %v766, %v766
  %v831 = vpack.c.b16 %v767, %v767
  %vm896 = vcmask 125952
  %897 = vst.msk [vmem:[%s2] sm:$0xf] %vm896, %v768
  %898 = vst.msk [vmem:[%s2 + $0x4] sm:$0xf] %vm896, %v769
  %899 = vst.msk [vmem:[%s2 + $0x8] sm:$0xf] %vm896, %v770
  %900 = vst.msk [vmem:[%s2 + $0xc] sm:$0xf] %vm896, %v771
  %901 = vst.msk [vmem:[%s2 + $0x10] sm:$0xf] %vm896, %v772
  %902 = vst.msk [vmem:[%s2 + $0x14] sm:$0xf] %vm896, %v773
  %903 = vst.msk [vmem:[%s2 + $0x18] sm:$0xf] %vm896, %v774
  %904 = vst.msk [vmem:[%s2 + $0x1c] sm:$0xf] %vm896, %v775
  %905 = vst.msk [vmem:[%s2 + $0x20] sm:$0xf] %vm896, %v776
  %906 = vst.msk [vmem:[%s2 + $0x24] sm:$0xf] %vm896, %v777
  %907 = vst.msk [vmem:[%s2 + $0x28] sm:$0xf] %vm896, %v778
  %908 = vst.msk [vmem:[%s2 + $0x2c] sm:$0xf] %vm896, %v779
  %909 = vst.msk [vmem:[%s2 + $0x30] sm:$0xf] %vm896, %v780
  %910 = vst.msk [vmem:[%s2 + $0x34] sm:$0xf] %vm896, %v781
  %911 = vst.msk [vmem:[%s2 + $0x38] sm:$0xf] %vm896, %v782
  %912 = vst.msk [vmem:[%s2 + $0x3c] sm:$0xf] %vm896, %v783
  %913 = vst.msk [vmem:[%s2 + $0x40] sm:$0xf] %vm896, %v784
  %914 = vst.msk [vmem:[%s2 + $0x44] sm:$0xf] %vm896, %v785
  %915 = vst.msk [vmem:[%s2 + $0x48] sm:$0xf] %vm896, %v786
  %916 = vst.msk [vmem:[%s2 + $0x4c] sm:$0xf] %vm896, %v787
  %917 = vst.msk [vmem:[%s2 + $0x50] sm:$0xf] %vm896, %v788
  %918 = vst.msk [vmem:[%s2 + $0x54] sm:$0xf] %vm896, %v789
  %919 = vst.msk [vmem:[%s2 + $0x58] sm:$0xf] %vm896, %v790
  %920 = vst.msk [vmem:[%s2 + $0x5c] sm:$0xf] %vm896, %v791
  %921 = vst.msk [vmem:[%s2 + $0x60] sm:$0xf] %vm896, %v792
  %922 = vst.msk [vmem:[%s2 + $0x64] sm:$0xf] %vm896, %v793
  %923 = vst.msk [vmem:[%s2 + $0x68] sm:$0xf] %vm896, %v794
  %924 = vst.msk [vmem:[%s2 + $0x6c] sm:$0xf] %vm896, %v795
  %925 = vst.msk [vmem:[%s2 + $0x70] sm:$0xf] %vm896, %v796
  %926 = vst.msk [vmem:[%s2 + $0x74] sm:$0xf] %vm896, %v797
  %927 = vst.msk [vmem:[%s2 + $0x78] sm:$0xf] %vm896, %v798
  %928 = vst.msk [vmem:[%s2 + $0x7c] sm:$0xf] %vm896, %v799
  %929 = vst.msk [vmem:[%s2 + $0x80] sm:$0xf] %vm896, %v800
  %930 = vst.msk [vmem:[%s2 + $0x84] sm:$0xf] %vm896, %v801
  %931 = vst.msk [vmem:[%s2 + $0x88] sm:$0xf] %vm896, %v802
  %932 = vst.msk [vmem:[%s2 + $0x8c] sm:$0xf] %vm896, %v803
  %933 = vst.msk [vmem:[%s2 + $0x90] sm:$0xf] %vm896, %v804
  %934 = vst.msk [vmem:[%s2 + $0x94] sm:$0xf] %vm896, %v805
  %935 = vst.msk [vmem:[%s2 + $0x98] sm:$0xf] %vm896, %v806
  %936 = vst.msk [vmem:[%s2 + $0x9c] sm:$0xf] %vm896, %v807
  %937 = vst.msk [vmem:[%s2 + $0xa0] sm:$0xf] %vm896, %v808
  %938 = vst.msk [vmem:[%s2 + $0xa4] sm:$0xf] %vm896, %v809
  %939 = vst.msk [vmem:[%s2 + $0xa8] sm:$0xf] %vm896, %v810
  %940 = vst.msk [vmem:[%s2 + $0xac] sm:$0xf] %vm896, %v811
  %941 = vst.msk [vmem:[%s2 + $0xb0] sm:$0xf] %vm896, %v812
  %942 = vst.msk [vmem:[%s2 + $0xb4] sm:$0xf] %vm896, %v813
  %943 = vst.msk [vmem:[%s2 + $0xb8] sm:$0xf] %vm896, %v814
  %944 = vst.msk [vmem:[%s2 + $0xbc] sm:$0xf] %vm896, %v815
  %945 = vst.msk [vmem:[%s2 + $0xc0] sm:$0xf] %vm896, %v816
  %946 = vst.msk [vmem:[%s2 + $0xc4] sm:$0xf] %vm896, %v817
  %947 = vst.msk [vmem:[%s2 + $0xc8] sm:$0xf] %vm896, %v818
  %948 = vst.msk [vmem:[%s2 + $0xcc] sm:$0xf] %vm896, %v819
  %949 = vst.msk [vmem:[%s2 + $0xd0] sm:$0xf] %vm896, %v820
  %950 = vst.msk [vmem:[%s2 + $0xd4] sm:$0xf] %vm896, %v821
  %951 = vst.msk [vmem:[%s2 + $0xd8] sm:$0xf] %vm896, %v822
  %952 = vst.msk [vmem:[%s2 + $0xdc] sm:$0xf] %vm896, %v823
  %953 = vst.msk [vmem:[%s2 + $0xe0] sm:$0xf] %vm896, %v824
  %954 = vst.msk [vmem:[%s2 + $0xe4] sm:$0xf] %vm896, %v825
  %955 = vst.msk [vmem:[%s2 + $0xe8] sm:$0xf] %vm896, %v826
  %956 = vst.msk [vmem:[%s2 + $0xec] sm:$0xf] %vm896, %v827
  %957 = vst.msk [vmem:[%s2 + $0xf0] sm:$0xf] %vm896, %v828
  %958 = vst.msk [vmem:[%s2 + $0xf4] sm:$0xf] %vm896, %v829
  %959 = vst.msk [vmem:[%s2 + $0xf8] sm:$0xf] %vm896, %v830
  %960 = vst.msk [vmem:[%s2 + $0xfc] sm:$0xf] %vm896, %v831
  %vm961 = vcmask 130048
  %v962 = vsel %vm961, %v386, 0.0
  %v963 = vsel %vm961, %v389, 0.0
  %v964 = vadd.f32 %v962, %v963
  %v965 = vsel %vm961, %v394, 0.0
  %v966 = vadd.f32 %v964, %v965
  %v967 = vsel %vm961, %v397, 0.0
  %v968 = vadd.f32 %v966, %v967
  %v969 = vsel %vm961, %v402, 0.0
  %v970 = vadd.f32 %v968, %v969
  %v971 = vsel %vm961, %v405, 0.0
  %v972 = vadd.f32 %v970, %v971
  %v973 = vsel %vm961, %v410, 0.0
  %v974 = vadd.f32 %v972, %v973
  %v975 = vsel %vm961, %v413, 0.0
  %v976 = vadd.f32 %v974, %v975
  %v977 = vsel %vm961, %v418, 0.0
  %v978 = vadd.f32 %v976, %v977
  %v979 = vsel %vm961, %v421, 0.0
  %v980 = vadd.f32 %v978, %v979
  %v981 = vsel %vm961, %v426, 0.0
  %v982 = vadd.f32 %v980, %v981
  %v983 = vsel %vm961, %v429, 0.0
  %v984 = vadd.f32 %v982, %v983
  %v985 = vsel %vm961, %v434, 0.0
  %v986 = vadd.f32 %v984, %v985
  %v987 = vsel %vm961, %v437, 0.0
  %v988 = vadd.f32 %v986, %v987
  %v989 = vsel %vm961, %v442, 0.0
  %v990 = vadd.f32 %v988, %v989
  %v991 = vsel %vm961, %v445, 0.0
  %v992 = vadd.f32 %v990, %v991
  %v993 = vsel %vm961, %v450, 0.0
  %v994 = vadd.f32 %v992, %v993
  %v995 = vsel %vm961, %v453, 0.0
  %v996 = vadd.f32 %v994, %v995
  %v997 = vsel %vm961, %v458, 0.0
  %v998 = vadd.f32 %v996, %v997
  %v999 = vsel %vm961, %v461, 0.0
  %v1000 = vadd.f32 %v998, %v999
  %v1001 = vsel %vm961, %v466, 0.0
  %v1002 = vadd.f32 %v1000, %v1001
  %v1003 = vsel %vm961, %v469, 0.0
  %v1004 = vadd.f32 %v1002, %v1003
  %v1005 = vsel %vm961, %v474, 0.0
  %v1006 = vadd.f32 %v1004, %v1005
  %v1007 = vsel %vm961, %v477, 0.0
  %v1008 = vadd.f32 %v1006, %v1007
  %v1009 = vsel %vm961, %v482, 0.0
  %v1010 = vadd.f32 %v1008, %v1009
  %v1011 = vsel %vm961, %v485, 0.0
  %v1012 = vadd.f32 %v1010, %v1011
  %v1013 = vsel %vm961, %v490, 0.0
  %v1014 = vadd.f32 %v1012, %v1013
  %v1015 = vsel %vm961, %v493, 0.0
  %v1016 = vadd.f32 %v1014, %v1015
  %v1017 = vsel %vm961, %v498, 0.0
  %v1018 = vadd.f32 %v1016, %v1017
  %v1019 = vsel %vm961, %v501, 0.0
  %v1020 = vadd.f32 %v1018, %v1019
  %v1021 = vsel %vm961, %v506, 0.0
  %v1022 = vadd.f32 %v1020, %v1021
  %v1023 = vsel %vm961, %v509, 0.0
  %v1024 = vadd.f32 %v1022, %v1023
  %v1025 = vsel %vm961, %v514, 0.0
  %v1026 = vadd.f32 %v1024, %v1025
  %v1027 = vsel %vm961, %v517, 0.0
  %v1028 = vadd.f32 %v1026, %v1027
  %v1029 = vsel %vm961, %v522, 0.0
  %v1030 = vadd.f32 %v1028, %v1029
  %v1031 = vsel %vm961, %v525, 0.0
  %v1032 = vadd.f32 %v1030, %v1031
  %v1033 = vsel %vm961, %v530, 0.0
  %v1034 = vadd.f32 %v1032, %v1033
  %v1035 = vsel %vm961, %v533, 0.0
  %v1036 = vadd.f32 %v1034, %v1035
  %v1037 = vsel %vm961, %v538, 0.0
  %v1038 = vadd.f32 %v1036, %v1037
  %v1039 = vsel %vm961, %v541, 0.0
  %v1040 = vadd.f32 %v1038, %v1039
  %v1041 = vsel %vm961, %v546, 0.0
  %v1042 = vadd.f32 %v1040, %v1041
  %v1043 = vsel %vm961, %v549, 0.0
  %v1044 = vadd.f32 %v1042, %v1043
  %v1045 = vsel %vm961, %v554, 0.0
  %v1046 = vadd.f32 %v1044, %v1045
  %v1047 = vsel %vm961, %v557, 0.0
  %v1048 = vadd.f32 %v1046, %v1047
  %v1049 = vsel %vm961, %v562, 0.0
  %v1050 = vadd.f32 %v1048, %v1049
  %v1051 = vsel %vm961, %v565, 0.0
  %v1052 = vadd.f32 %v1050, %v1051
  %v1053 = vsel %vm961, %v570, 0.0
  %v1054 = vadd.f32 %v1052, %v1053
  %v1055 = vsel %vm961, %v573, 0.0
  %v1056 = vadd.f32 %v1054, %v1055
  %v1057 = vsel %vm961, %v578, 0.0
  %v1058 = vadd.f32 %v1056, %v1057
  %v1059 = vsel %vm961, %v581, 0.0
  %v1060 = vadd.f32 %v1058, %v1059
  %v1061 = vsel %vm961, %v586, 0.0
  %v1062 = vadd.f32 %v1060, %v1061
  %v1063 = vsel %vm961, %v589, 0.0
  %v1064 = vadd.f32 %v1062, %v1063
  %v1065 = vsel %vm961, %v594, 0.0
  %v1066 = vadd.f32 %v1064, %v1065
  %v1067 = vsel %vm961, %v597, 0.0
  %v1068 = vadd.f32 %v1066, %v1067
  %v1069 = vsel %vm961, %v602, 0.0
  %v1070 = vadd.f32 %v1068, %v1069
  %v1071 = vsel %vm961, %v605, 0.0
  %v1072 = vadd.f32 %v1070, %v1071
  %v1073 = vsel %vm961, %v610, 0.0
  %v1074 = vadd.f32 %v1072, %v1073
  %v1075 = vsel %vm961, %v613, 0.0
  %v1076 = vadd.f32 %v1074, %v1075
  %v1077 = vsel %vm961, %v618, 0.0
  %v1078 = vadd.f32 %v1076, %v1077
  %v1079 = vsel %vm961, %v621, 0.0
  %v1080 = vadd.f32 %v1078, %v1079
  %v1081 = vsel %vm961, %v626, 0.0
  %v1082 = vadd.f32 %v1080, %v1081
  %v1083 = vsel %vm961, %v629, 0.0
  %v1084 = vadd.f32 %v1082, %v1083
  %v1085 = vsel %vm961, %v634, 0.0
  %v1086 = vadd.f32 %v1084, %v1085
  %v1087 = vsel %vm961, %v637, 0.0
  %v1088 = vadd.f32 %v1086, %v1087
  %v1089 = vrot.slane %v1088, 4
  %v1090 = vadd.f32 %v1088, %v1089
  %v1091 = vrot.slane %v1090, 2
  %v1092 = vadd.f32 %v1090, %v1091
  %v1093 = vrot.slane %v1092, 1
  %v1094 = vadd.f32 %v1092, %v1093
  %v1095 = vmul.f32 %v386, %v386
  %v1096 = vmul.f32 %v389, %v389
  %v1097 = vmul.f32 %v394, %v394
  %v1098 = vmul.f32 %v397, %v397
  %v1099 = vmul.f32 %v402, %v402
  %v1100 = vmul.f32 %v405, %v405
  %v1101 = vmul.f32 %v410, %v410
  %v1102 = vmul.f32 %v413, %v413
  %v1103 = vmul.f32 %v418, %v418
  %v1104 = vmul.f32 %v421, %v421
  %v1105 = vmul.f32 %v426, %v426
  %v1106 = vmul.f32 %v429, %v429
  %v1107 = vmul.f32 %v434, %v434
  %v1108 = vmul.f32 %v437, %v437
  %v1109 = vmul.f32 %v442, %v442
  %v1110 = vmul.f32 %v445, %v445
  %v1111 = vmul.f32 %v450, %v450
  %v1112 = vmul.f32 %v453, %v453
  %v1113 = vmul.f32 %v458, %v458
  %v1114 = vmul.f32 %v461, %v461
  %v1115 = vmul.f32 %v466, %v466
  %v1116 = vmul.f32 %v469, %v469
  %v1117 = vmul.f32 %v474, %v474
  %v1118 = vmul.f32 %v477, %v477
  %v1119 = vmul.f32 %v482, %v482
  %v1120 = vmul.f32 %v485, %v485
  %v1121 = vmul.f32 %v490, %v490
  %v1122 = vmul.f32 %v493, %v493
  %v1123 = vmul.f32 %v498, %v498
  %v1124 = vmul.f32 %v501, %v501
  %v1125 = vmul.f32 %v506, %v506
  %v1126 = vmul.f32 %v509, %v509
  %v1127 = vmul.f32 %v514, %v514
  %v1128 = vmul.f32 %v517, %v517
  %v1129 = vmul.f32 %v522, %v522
  %v1130 = vmul.f32 %v525, %v525
  %v1131 = vmul.f32 %v530, %v530
  %v1132 = vmul.f32 %v533, %v533
  %v1133 = vmul.f32 %v538, %v538
  %v1134 = vmul.f32 %v541, %v541
  %v1135 = vmul.f32 %v546, %v546
  %v1136 = vmul.f32 %v549, %v549
  %v1137 = vmul.f32 %v554, %v554
  %v1138 = vmul.f32 %v557, %v557
  %v1139 = vmul.f32 %v562, %v562
  %v1140 = vmul.f32 %v565, %v565
  %v1141 = vmul.f32 %v570, %v570
  %v1142 = vmul.f32 %v573, %v573
  %v1143 = vmul.f32 %v578, %v578
  %v1144 = vmul.f32 %v581, %v581
  %v1145 = vmul.f32 %v586, %v586
  %v1146 = vmul.f32 %v589, %v589
  %v1147 = vmul.f32 %v594, %v594
  %v1148 = vmul.f32 %v597, %v597
  %v1149 = vmul.f32 %v602, %v602
  %v1150 = vmul.f32 %v605, %v605
  %v1151 = vmul.f32 %v610, %v610
  %v1152 = vmul.f32 %v613, %v613
  %v1153 = vmul.f32 %v618, %v618
  %v1154 = vmul.f32 %v621, %v621
  %v1155 = vmul.f32 %v626, %v626
  %v1156 = vmul.f32 %v629, %v629
  %v1157 = vmul.f32 %v634, %v634
  %v1158 = vmul.f32 %v637, %v637
  %v1159 = vsel %vm961, %v1095, 0.0
  %v1160 = vsel %vm961, %v1096, 0.0
  %v1161 = vadd.f32 %v1159, %v1160
  %v1162 = vsel %vm961, %v1097, 0.0
  %v1163 = vadd.f32 %v1161, %v1162
  %v1164 = vsel %vm961, %v1098, 0.0
  %v1165 = vadd.f32 %v1163, %v1164
  %v1166 = vsel %vm961, %v1099, 0.0
  %v1167 = vadd.f32 %v1165, %v1166
  %v1168 = vsel %vm961, %v1100, 0.0
  %v1169 = vadd.f32 %v1167, %v1168
  %v1170 = vsel %vm961, %v1101, 0.0
  %v1171 = vadd.f32 %v1169, %v1170
  %v1172 = vsel %vm961, %v1102, 0.0
  %v1173 = vadd.f32 %v1171, %v1172
  %v1174 = vsel %vm961, %v1103, 0.0
  %v1175 = vadd.f32 %v1173, %v1174
  %v1176 = vsel %vm961, %v1104, 0.0
  %v1177 = vadd.f32 %v1175, %v1176
  %v1178 = vsel %vm961, %v1105, 0.0
  %v1179 = vadd.f32 %v1177, %v1178
  %v1180 = vsel %vm961, %v1106, 0.0
  %v1181 = vadd.f32 %v1179, %v1180
  %v1182 = vsel %vm961, %v1107, 0.0
  %v1183 = vadd.f32 %v1181, %v1182
  %v1184 = vsel %vm961, %v1108, 0.0
  %v1185 = vadd.f32 %v1183, %v1184
  %v1186 = vsel %vm961, %v1109, 0.0
  %v1187 = vadd.f32 %v1185, %v1186
  %v1188 = vsel %vm961, %v1110, 0.0
  %v1189 = vadd.f32 %v1187, %v1188
  %v1190 = vsel %vm961, %v1111, 0.0
  %v1191 = vadd.f32 %v1189, %v1190
  %v1192 = vsel %vm961, %v1112, 0.0
  %v1193 = vadd.f32 %v1191, %v1192
  %v1194 = vsel %vm961, %v1113, 0.0
  %v1195 = vadd.f32 %v1193, %v1194
  %v1196 = vsel %vm961, %v1114, 0.0
  %v1197 = vadd.f32 %v1195, %v1196
  %v1198 = vsel %vm961, %v1115, 0.0
  %v1199 = vadd.f32 %v1197, %v1198
  %v1200 = vsel %vm961, %v1116, 0.0
  %v1201 = vadd.f32 %v1199, %v1200
  %v1202 = vsel %vm961, %v1117, 0.0
  %v1203 = vadd.f32 %v1201, %v1202
  %v1204 = vsel %vm961, %v1118, 0.0
  %v1205 = vadd.f32 %v1203, %v1204
  %v1206 = vsel %vm961, %v1119, 0.0
  %v1207 = vadd.f32 %v1205, %v1206
  %v1208 = vsel %vm961, %v1120, 0.0
  %v1209 = vadd.f32 %v1207, %v1208
  %v1210 = vsel %vm961, %v1121, 0.0
  %v1211 = vadd.f32 %v1209, %v1210
  %v1212 = vsel %vm961, %v1122, 0.0
  %v1213 = vadd.f32 %v1211, %v1212
  %v1214 = vsel %vm961, %v1123, 0.0
  %v1215 = vadd.f32 %v1213, %v1214
  %v1216 = vsel %vm961, %v1124, 0.0
  %v1217 = vadd.f32 %v1215, %v1216
  %v1218 = vsel %vm961, %v1125, 0.0
  %v1219 = vadd.f32 %v1217, %v1218
  %v1220 = vsel %vm961, %v1126, 0.0
  %v1221 = vadd.f32 %v1219, %v1220
  %v1222 = vsel %vm961, %v1127, 0.0
  %v1223 = vadd.f32 %v1221, %v1222
  %v1224 = vsel %vm961, %v1128, 0.0
  %v1225 = vadd.f32 %v1223, %v1224
  %v1226 = vsel %vm961, %v1129, 0.0
  %v1227 = vadd.f32 %v1225, %v1226
  %v1228 = vsel %vm961, %v1130, 0.0
  %v1229 = vadd.f32 %v1227, %v1228
  %v1230 = vsel %vm961, %v1131, 0.0
  %v1231 = vadd.f32 %v1229, %v1230
  %v1232 = vsel %vm961, %v1132, 0.0
  %v1233 = vadd.f32 %v1231, %v1232
  %v1234 = vsel %vm961, %v1133, 0.0
  %v1235 = vadd.f32 %v1233, %v1234
  %v1236 = vsel %vm961, %v1134, 0.0
  %v1237 = vadd.f32 %v1235, %v1236
  %v1238 = vsel %vm961, %v1135, 0.0
  %v1239 = vadd.f32 %v1237, %v1238
  %v1240 = vsel %vm961, %v1136, 0.0
  %v1241 = vadd.f32 %v1239, %v1240
  %v1242 = vsel %vm961, %v1137, 0.0
  %v1243 = vadd.f32 %v1241, %v1242
  %v1244 = vsel %vm961, %v1138, 0.0
  %v1245 = vadd.f32 %v1243, %v1244
  %v1246 = vsel %vm961, %v1139, 0.0
  %v1247 = vadd.f32 %v1245, %v1246
  %v1248 = vsel %vm961, %v1140, 0.0
  %v1249 = vadd.f32 %v1247, %v1248
  %v1250 = vsel %vm961, %v1141, 0.0
  %v1251 = vadd.f32 %v1249, %v1250
  %v1252 = vsel %vm961, %v1142, 0.0
  %v1253 = vadd.f32 %v1251, %v1252
  %v1254 = vsel %vm961, %v1143, 0.0
  %v1255 = vadd.f32 %v1253, %v1254
  %v1256 = vsel %vm961, %v1144, 0.0
  %v1257 = vadd.f32 %v1255, %v1256
  %v1258 = vsel %vm961, %v1145, 0.0
  %v1259 = vadd.f32 %v1257, %v1258
  %v1260 = vsel %vm961, %v1146, 0.0
  %v1261 = vadd.f32 %v1259, %v1260
  %v1262 = vsel %vm961, %v1147, 0.0
  %v1263 = vadd.f32 %v1261, %v1262
  %v1264 = vsel %vm961, %v1148, 0.0
  %v1265 = vadd.f32 %v1263, %v1264
  %v1266 = vsel %vm961, %v1149, 0.0
  %v1267 = vadd.f32 %v1265, %v1266
  %v1268 = vsel %vm961, %v1150, 0.0
  %v1269 = vadd.f32 %v1267, %v1268
  %v1270 = vsel %vm961, %v1151, 0.0
  %v1271 = vadd.f32 %v1269, %v1270
  %v1272 = vsel %vm961, %v1152, 0.0
  %v1273 = vadd.f32 %v1271, %v1272
  %v1274 = vsel %vm961, %v1153, 0.0
  %v1275 = vadd.f32 %v1273, %v1274
  %v1276 = vsel %vm961, %v1154, 0.0
  %v1277 = vadd.f32 %v1275, %v1276
  %v1278 = vsel %vm961, %v1155, 0.0
  %v1279 = vadd.f32 %v1277, %v1278
  %v1280 = vsel %vm961, %v1156, 0.0
  %v1281 = vadd.f32 %v1279, %v1280
  %v1282 = vsel %vm961, %v1157, 0.0
  %v1283 = vadd.f32 %v1281, %v1282
  %v1284 = vsel %vm961, %v1158, 0.0
  %v1285 = vadd.f32 %v1283, %v1284
  %v1286 = vrot.slane %v1285, 4
  %v1287 = vadd.f32 %v1285, %v1286
  %v1288 = vrot.slane %v1287, 2
  %v1289 = vadd.f32 %v1287, %v1288
  %v1290 = vrot.slane %v1289, 1
  %v1291 = vadd.f32 %v1289, %v1290
  %v1292 = vlaneseq
  %v1293 = vshrl.u32 %v1292, 7
  %vm1294 = vcmp.eq.s32.totalorder %v1293, 0
  %vm1295 = vcmp.eq.s32.totalorder %v1293, 1
  %v1296 = vsel %vm1295, %v1291, 0.0
  %v1297 = vsel %vm1294, %v1094, %v1296
  %1298 = vst.msk [vmem:[%s3] sm:$0xff] %vm961, %v1297
  // Predicated region
  $region10: #{fwd.9} parent=0 // pred_check
    _
  $region11: #{fwd.9} parent=0 // pred_check_branch
    %1300 = sbr.rel (0) target = $region13
  $region12: #{fwd.9} parent=0 // pred_region
    _
  $region13: #{fwd.9} parent=0 // pred_fallthru
    _
  // Predicated region
  $region14: #{fwd.9} parent=0 // pred_check
    _
  $region15: #{fwd.9} parent=0 // pred_check_branch
    %1302 = sbr.rel (0) target = $region17
  $region16: #{fwd.9} parent=0 // pred_region
    _
  $region17: #{fwd.9} parent=0 // pred_fallthru
    _
  // Predicated region
  $region18: #{fwd.9} parent=0 // pred_check
    _
  $region19: #{fwd.9} parent=0 // pred_check_branch
    %1304 = sbr.rel (0) target = $region21
  $region20: #{fwd.9} parent=0 // pred_region
    _
  $region21: #{fwd.9} parent=0 // pred_fallthru
    _
  // Predicated region
  $region22: #{fwd.9} parent=0 // pred_check
    _
  $region23: #{fwd.9} parent=0 // pred_check_branch
    %1306 = sbr.rel (0) target = $region25
  $region24: #{fwd.9} parent=0 // pred_region
    _
  $region25: #{fwd.9} parent=0 // pred_fallthru
    _

// kernel: fwd.10
$region0: #{fwd.10}
  #allocation0 [shape = 'u32[]', space=smem, size = 0x4, offset = 0x4, fixed_abs, tag = 'smem constant byte address 0x4 - core index']
  #allocation1 [shape = 'u32[144,128]{1,0:T(1,128)}', space=vmem, size = 0x12000, scoped, tag = 'internal scratch']
  %s0 = inlined_call_operand.vmem [shape: bf16[128,144], index: 0, kind: input, shape index: {}]
  %s1 = inlined_call_operand.vmem [shape: bf16[144,16], index: 1, kind: input, shape index: {}]
  %s2 = inlined_call_operand.vmem [shape: bf16[128,16], index: 2, kind: output, shape index: {0}]
  %s3 = inlined_call_operand.vmem [shape: f32[1,8,16], index: 3, kind: output, shape index: {1}]
  %4 = xla_tuple %s2, %s3
  %s5 = sld [smem:[#allocation0]]
  $region26: #{fwd.10} parent=0
    _
  %s7 = ssub.s32 1, %s5
  %s8 = scalar_select 0, %s7, %s5
  // Predicated region
  $region2: #{fwd.10} parent=0 // pred_check
    _
  $region3: #{fwd.10} parent=0 // pred_check_branch
    %10 = sbr.rel (0) target = $region5
  $region4: #{fwd.10} parent=0 // pred_region
    _
  $region5: #{fwd.10} parent=0 // pred_fallthru
    _
  // Predicated region
  $region6: #{fwd.10} parent=0 // pred_check
    _
  $region7: #{fwd.10} parent=0 // pred_check_branch
    %12 = sbr.rel (0) target = $region9
  $region8: #{fwd.10} parent=0 // pred_region
    _
  $region9: #{fwd.10} parent=0 // pred_fallthru
    _
  %v14 = vld [vmem:[%s0] sm:$0xff]
  %v15 = vld [vmem:[%s0 + $0x8] sm:$0xff]
  %v16 = vld [vmem:[%s0 + $0x10] sm:$0xff]
  %v17 = vld [vmem:[%s0 + $0x18] sm:$0xff]
  %v18 = vld [vmem:[%s0 + $0x20] sm:$0xff]
  %v19 = vld [vmem:[%s0 + $0x28] sm:$0xff]
  %v20 = vld [vmem:[%s0 + $0x30] sm:$0xff]
  %v21 = vld [vmem:[%s0 + $0x38] sm:$0xff]
  %v22 = vld [vmem:[%s0 + $0x40] sm:$0xff]
  %v23 = vld [vmem:[%s0 + $0x48] sm:$0xff]
  %v24 = vld [vmem:[%s0 + $0x50] sm:$0xff]
  %v25 = vld [vmem:[%s0 + $0x58] sm:$0xff]
  %v26 = vld [vmem:[%s0 + $0x60] sm:$0xff]
  %v27 = vld [vmem:[%s0 + $0x68] sm:$0xff]
  %v28 = vld [vmem:[%s0 + $0x70] sm:$0xff]
  %v29 = vld [vmem:[%s0 + $0x78] sm:$0xff]
  %v30 = vld [vmem:[%s1] sm:$0xf]
  %v31 = vld [vmem:[%s1 + $0x4] sm:$0xf]
  %v32 = vld [vmem:[%s1 + $0x8] sm:$0xf]
  %v33 = vld [vmem:[%s1 + $0xc] sm:$0xf]
  %v34 = vld [vmem:[%s1 + $0x10] sm:$0xf]
  %v35 = vld [vmem:[%s1 + $0x14] sm:$0xf]
  %v36 = vld [vmem:[%s1 + $0x18] sm:$0xf]
  %v37 = vld [vmem:[%s1 + $0x1c] sm:$0xf]
  %v38 = vld [vmem:[%s1 + $0x20] sm:$0xf]
  %v39 = vld [vmem:[%s1 + $0x24] sm:$0xf]
  %v40 = vld [vmem:[%s1 + $0x28] sm:$0xf]
  %v41 = vld [vmem:[%s1 + $0x2c] sm:$0xf]
  %v42 = vld [vmem:[%s1 + $0x30] sm:$0xf]
  %v43 = vld [vmem:[%s1 + $0x34] sm:$0xf]
  %v44 = vld [vmem:[%s1 + $0x38] sm:$0xf]
  %v45 = vld [vmem:[%s1 + $0x3c] sm:$0xf]
  %v46 = vld [vmem:[%s1 + $0x40] sm:$0xf]
  %v47 = vld [vmem:[%s1 + $0x44] sm:$0xf]
  %v64 = vunpack.c.l.b16 %v14
  %v65 = vunpack.c.h.b16 %v14
  %v66 = vunpack.c.l.b16 %v15
  %v67 = vunpack.c.h.b16 %v15
  %v68 = vunpack.c.l.b16 %v16
  %v69 = vunpack.c.h.b16 %v16
  %v70 = vunpack.c.l.b16 %v17
  %v71 = vunpack.c.h.b16 %v17
  %v72 = vunpack.c.l.b16 %v18
  %v73 = vunpack.c.h.b16 %v18
  %v74 = vunpack.c.l.b16 %v19
  %v75 = vunpack.c.h.b16 %v19
  %v76 = vunpack.c.l.b16 %v20
  %v77 = vunpack.c.h.b16 %v20
  %v78 = vunpack.c.l.b16 %v21
  %v79 = vunpack.c.h.b16 %v21
  %v80 = vunpack.c.l.b16 %v22
  %v81 = vunpack.c.h.b16 %v22
  %v82 = vunpack.c.l.b16 %v23
  %v83 = vunpack.c.h.b16 %v23
  %v84 = vunpack.c.l.b16 %v24
  %v85 = vunpack.c.h.b16 %v24
  %v86 = vunpack.c.l.b16 %v25
  %v87 = vunpack.c.h.b16 %v25
  %v88 = vunpack.c.l.b16 %v26
  %v89 = vunpack.c.h.b16 %v26
  %v90 = vunpack.c.l.b16 %v27
  %v91 = vunpack.c.h.b16 %v27
  %v92 = vunpack.c.l.b16 %v28
  %v93 = vunpack.c.h.b16 %v28
  %v94 = vunpack.c.l.b16 %v29
  %v95 = vunpack.c.h.b16 %v29
  %v96 = vpack.c.b16 %v66, %v64
  %v97 = vpack.c.b16 %v67, %v65
  %v98 = vpack.c.b16 %v70, %v68
  %v99 = vpack.c.b16 %v71, %v69
  %v100 = vpack.c.b16 %v74, %v72
  %v101 = vpack.c.b16 %v75, %v73
  %v102 = vpack.c.b16 %v78, %v76
  %v103 = vpack.c.b16 %v79, %v77
  %v104 = vpack.c.b16 %v82, %v80
  %v105 = vpack.c.b16 %v83, %v81
  %v106 = vpack.c.b16 %v86, %v84
  %v107 = vpack.c.b16 %v87, %v85
  %v108 = vpack.c.b16 %v90, %v88
  %v109 = vpack.c.b16 %v91, %v89
  %v110 = vpack.c.b16 %v94, %v92
  %v111 = vpack.c.b16 %v95, %v93
  %v138 = vunpack.c.l.b16 %v30
  %v139 = vunpack.c.l.b16 %v31
  %v140 = vunpack.c.l.b16 %v32
  %v141 = vunpack.c.l.b16 %v33
  %v142 = vunpack.c.l.b16 %v34
  %v143 = vunpack.c.l.b16 %v35
  %v144 = vunpack.c.l.b16 %v36
  %v145 = vunpack.c.l.b16 %v37
  %v146 = vunpack.c.l.b16 %v38
  %v147 = vunpack.c.l.b16 %v39
  %v148 = vunpack.c.l.b16 %v40
  %v149 = vunpack.c.l.b16 %v41
  %v150 = vunpack.c.l.b16 %v42
  %v151 = vunpack.c.l.b16 %v43
  %v152 = vunpack.c.l.b16 %v44
  %v153 = vunpack.c.l.b16 %v45
  %v154 = vunpack.c.l.b16 %v46
  %v155 = vunpack.c.l.b16 %v47
  %v156 = vpack.c.b16 %v139, %v138
  %v157 = vpack.c.b16 %v141, %v140
  %v158 = vpack.c.b16 %v143, %v142
  %v159 = vpack.c.b16 %v145, %v144
  %v160 = vpack.c.b16 %v147, %v146
  %v161 = vpack.c.b16 %v149, %v148
  %v162 = vpack.c.b16 %v151, %v150
  %v163 = vpack.c.b16 %v153, %v152
  %v164 = vpack.c.b16 %v155, %v154
  %vm174 = vcmask 130048
  %v176 = vsel %vm174, %v97, 0
  %v179 = vsel %vm174, %v99, 0
  %v182 = vsel %vm174, %v101, 0
  %v185 = vsel %vm174, %v103, 0
  %v188 = vsel %vm174, %v105, 0
  %v191 = vsel %vm174, %v107, 0
  %v194 = vsel %vm174, %v109, 0
  %v197 = vsel %vm174, %v111, 0
  %199 = vmatprep.subr.bf16.mxu0 0
  %200 = vmatpush1.bf16.msra.mxu0 %v156
  %201 = vmatprep.subr.bf16.mxu0 0
  %202 = vmatpush1.bf16.msra.mxu0 %v157
  %203 = vmatprep.subr.bf16.mxu0 0
  %204 = vmatpush1.bf16.msra.mxu0 %v158
  %205 = vmatprep.subr.bf16.mxu0 0
  %206 = vmatpush1.bf16.msra.mxu0 %v159
  %207 = vmatprep.subr.bf16.mxu0 0
  %208 = vmatpush1.bf16.msra.mxu0 %v160
  %209 = vmatprep.subr.bf16.mxu0 0
  %210 = vmatpush1.bf16.msra.mxu0 %v161
  %211 = vmatprep.subr.bf16.mxu0 0
  %212 = vmatpush1.bf16.msra.mxu0 %v162
  %213 = vmatprep.subr.bf16.mxu0 0
  %214 = vmatpush1.bf16.msra.mxu0 %v163
  %215 = vmatprep.subr.bf16.mxu0 0
  %216 = vmatpush1.bf16.msra.mxu0 %v164
  %217 = vmatprep.subr.bf16.mxu0 0
  %218 = vmatpush1.bf16.msra.mxu0 0
  %219 = vmatprep.subr.bf16.mxu0 0
  %220 = vmatpush1.bf16.msra.mxu0 0
  %221 = vmatprep.subr.bf16.mxu0 0
  %222 = vmatpush1.bf16.msra.mxu0 0
  %223 = vmatprep.subr.bf16.mxu0 0
  %224 = vmatpush1.bf16.msra.mxu0 0
  %225 = vmatprep.subr.bf16.mxu0 0
  %226 = vmatpush1.bf16.msra.mxu0 0
  %227 = vmatprep.subr.bf16.mxu0 0
  %228 = vmatpush1.bf16.msra.mxu0 0
  %229 = vmatprep.subr.bf16.mxu0 0
  %230 = vmatpush1.bf16.msra.mxu0 0
  %231 = vmatprep.mubr.bf16.mxu0 %v176
  %232 = vmatmul.mubr.bf16.gmra.mrb[0].mxu0 %v96
  %v233 = vpop.f32.mrb[0].mxu0
  %v234 = vadd.f32 0.0, %v233
  %v235 = vpop.f32.mrb[0].mxu0
  %v236 = vpop.f32.mrb[0].mxu0
  %v237 = vadd.f32 0.0, %v236
  %v238 = vpop.f32.mrb[0].mxu0
  %239 = vmatprep.mubr.bf16.mxu0 %v179
  %240 = vmatmul.mubr.bf16.gmra.mrb[0].mxu0 %v98
  %v241 = vpop.f32.mrb[0].mxu0
  %v242 = vadd.f32 0.0, %v241
  %v243 = vpop.f32.mrb[0].mxu0
  %v244 = vpop.f32.mrb[0].mxu0
  %v245 = vadd.f32 0.0, %v244
  %v246 = vpop.f32.mrb[0].mxu0
  %247 = vmatprep.mubr.bf16.mxu0 %v182
  %248 = vmatmul.mubr.bf16.gmra.mrb[0].mxu0 %v100
  %v249 = vpop.f32.mrb[0].mxu0
  %v250 = vadd.f32 0.0, %v249
  %v251 = vpop.f32.mrb[0].mxu0
  %v252 = vpop.f32.mrb[0].mxu0
  %v253 = vadd.f32 0.0, %v252
  %v254 = vpop.f32.mrb[0].mxu0
  %255 = vmatprep.mubr.bf16.mxu0 %v185
  %256 = vmatmul.mubr.bf16.gmra.mrb[0].mxu0 %v102
  %v257 = vpop.f32.mrb[0].mxu0
  %v258 = vadd.f32 0.0, %v257
  %v259 = vpop.f32.mrb[0].mxu0
  %v260 = vpop.f32.mrb[0].mxu0
  %v261 = vadd.f32 0.0, %v260
  %v262 = vpop.f32.mrb[0].mxu0
  %263 = vmatprep.mubr.bf16.mxu0 %v188
  %264 = vmatmul.mubr.bf16.gmra.mrb[0].mxu0 %v104
  %v265 = vpop.f32.mrb[0].mxu0
  %v266 = vadd.f32 0.0, %v265
  %v267 = vpop.f32.mrb[0].mxu0
  %v268 = vpop.f32.mrb[0].mxu0
  %v269 = vadd.f32 0.0, %v268
  %v270 = vpop.f32.mrb[0].mxu0
  %271 = vmatprep.mubr.bf16.mxu0 %v191
  %272 = vmatmul.mubr.bf16.gmra.mrb[0].mxu0 %v106
  %v273 = vpop.f32.mrb[0].mxu0
  %v274 = vadd.f32 0.0, %v273
  %v275 = vpop.f32.mrb[0].mxu0
  %v276 = vpop.f32.mrb[0].mxu0
  %v277 = vadd.f32 0.0, %v276
  %v278 = vpop.f32.mrb[0].mxu0
  %279 = vmatprep.mubr.bf16.mxu0 %v194
  %280 = vmatmul.mubr.bf16.gmra.mrb[0].mxu0 %v108
  %v281 = vpop.f32.mrb[0].mxu0
  %v282 = vadd.f32 0.0, %v281
  %v283 = vpop.f32.mrb[0].mxu0
  %v284 = vpop.f32.mrb[0].mxu0
  %v285 = vadd.f32 0.0, %v284
  %v286 = vpop.f32.mrb[0].mxu0
  %287 = vmatprep.mubr.bf16.mxu0 %v197
  %288 = vmatmul.mubr.bf16.gmra.mrb[0].mxu0 %v110
  %v289 = vpop.f32.mrb[0].mxu0
  %v290 = vadd.f32 0.0, %v289
  %v291 = vpop.f32.mrb[0].mxu0
  %v292 = vpop.f32.mrb[0].mxu0
  %v293 = vadd.f32 0.0, %v292
  %v294 = vpop.f32.mrb[0].mxu0
  %295 = vdwg.mxu0
  %v296 = vpack.c.bf16 %v237, %v234
  %v297 = vpack.c.bf16 %v245, %v242
  %v298 = vpack.c.bf16 %v253, %v250
  %v299 = vpack.c.bf16 %v261, %v258
  %v300 = vpack.c.bf16 %v269, %v266
  %v301 = vpack.c.bf16 %v277, %v274
  %v302 = vpack.c.bf16 %v285, %v282
  %v303 = vpack.c.bf16 %v293, %v290
  %v312 = vunpack.c.l.b16 %v296
  %v313 = vunpack.c.h.b16 %v296
  %v314 = vunpack.c.l.b16 %v297
  %v315 = vunpack.c.h.b16 %v297
  %v316 = vunpack.c.l.b16 %v298
  %v317 = vunpack.c.h.b16 %v298
  %v318 = vunpack.c.l.b16 %v299
  %v319 = vunpack.c.h.b16 %v299
  %v320 = vunpack.c.l.b16 %v300
  %v321 = vunpack.c.h.b16 %v300
  %v322 = vunpack.c.l.b16 %v301
  %v323 = vunpack.c.h.b16 %v301
  %v324 = vunpack.c.l.b16 %v302
  %v325 = vunpack.c.h.b16 %v302
  %v326 = vunpack.c.l.b16 %v303
  %v327 = vunpack.c.h.b16 %v303
  %v328 = vpack.c.b16 %v312, %v312
  %v329 = vpack.c.b16 %v313, %v313
  %v330 = vpack.c.b16 %v314, %v314
  %v331 = vpack.c.b16 %v315, %v315
  %v332 = vpack.c.b16 %v316, %v316
  %v333 = vpack.c.b16 %v317, %v317
  %v334 = vpack.c.b16 %v318, %v318
  %v335 = vpack.c.b16 %v319, %v319
  %v336 = vpack.c.b16 %v320, %v320
  %v337 = vpack.c.b16 %v321, %v321
  %v338 = vpack.c.b16 %v322, %v322
  %v339 = vpack.c.b16 %v323, %v323
  %v340 = vpack.c.b16 %v324, %v324
  %v341 = vpack.c.b16 %v325, %v325
  %v342 = vpack.c.b16 %v326, %v326
  %v343 = vpack.c.b16 %v327, %v327
  %vm360 = vcmask 125952
  %361 = vst.msk [vmem:[%s2] sm:$0xf] %vm360, %v328
  %362 = vst.msk [vmem:[%s2 + $0x4] sm:$0xf] %vm360, %v329
  %363 = vst.msk [vmem:[%s2 + $0x8] sm:$0xf] %vm360, %v330
  %364 = vst.msk [vmem:[%s2 + $0xc] sm:$0xf] %vm360, %v331
  %365 = vst.msk [vmem:[%s2 + $0x10] sm:$0xf] %vm360, %v332
  %366 = vst.msk [vmem:[%s2 + $0x14] sm:$0xf] %vm360, %v333
  %367 = vst.msk [vmem:[%s2 + $0x18] sm:$0xf] %vm360, %v334
  %368 = vst.msk [vmem:[%s2 + $0x1c] sm:$0xf] %vm360, %v335
  %369 = vst.msk [vmem:[%s2 + $0x20] sm:$0xf] %vm360, %v336
  %370 = vst.msk [vmem:[%s2 + $0x24] sm:$0xf] %vm360, %v337
  %371 = vst.msk [vmem:[%s2 + $0x28] sm:$0xf] %vm360, %v338
  %372 = vst.msk [vmem:[%s2 + $0x2c] sm:$0xf] %vm360, %v339
  %373 = vst.msk [vmem:[%s2 + $0x30] sm:$0xf] %vm360, %v340
  %374 = vst.msk [vmem:[%s2 + $0x34] sm:$0xf] %vm360, %v341
  %375 = vst.msk [vmem:[%s2 + $0x38] sm:$0xf] %vm360, %v342
  %376 = vst.msk [vmem:[%s2 + $0x3c] sm:$0xf] %vm360, %v343
  %v377 = vsel %vm174, %v234, 0.0
  %v378 = vsel %vm174, %v237, 0.0
  %v379 = vadd.f32 %v377, %v378
  %v380 = vsel %vm174, %v242, 0.0
  %v381 = vadd.f32 %v379, %v380
  %v382 = vsel %vm174, %v245, 0.0
  %v383 = vadd.f32 %v381, %v382
  %v384 = vsel %vm174, %v250, 0.0
  %v385 = vadd.f32 %v383, %v384
  %v386 = vsel %vm174, %v253, 0.0
  %v387 = vadd.f32 %v385, %v386
  %v388 = vsel %vm174, %v258, 0.0
  %v389 = vadd.f32 %v387, %v388
  %v390 = vsel %vm174, %v261, 0.0
  %v391 = vadd.f32 %v389, %v390
  %v392 = vsel %vm174, %v266, 0.0
  %v393 = vadd.f32 %v391, %v392
  %v394 = vsel %vm174, %v269, 0.0
  %v395 = vadd.f32 %v393, %v394
  %v396 = vsel %vm174, %v274, 0.0
  %v397 = vadd.f32 %v395, %v396
  %v398 = vsel %vm174, %v277, 0.0
  %v399 = vadd.f32 %v397, %v398
  %v400 = vsel %vm174, %v282, 0.0
  %v401 = vadd.f32 %v399, %v400
  %v402 = vsel %vm174, %v285, 0.0
  %v403 = vadd.f32 %v401, %v402
  %v404 = vsel %vm174, %v290, 0.0
  %v405 = vadd.f32 %v403, %v404
  %v406 = vsel %vm174, %v293, 0.0
  %v407 = vadd.f32 %v405, %v406
  %v408 = vrot.slane %v407, 4
  %v409 = vadd.f32 %v407, %v408
  %v410 = vrot.slane %v409, 2
  %v411 = vadd.f32 %v409, %v410
  %v412 = vrot.slane %v411, 1
  %v413 = vadd.f32 %v411, %v412
  %v414 = vmul.f32 %v234, %v234
  %v415 = vmul.f32 %v237, %v237
  %v416 = vmul.f32 %v242, %v242
  %v417 = vmul.f32 %v245, %v245
  %v418 = vmul.f32 %v250, %v250
  %v419 = vmul.f32 %v253, %v253
  %v420 = vmul.f32 %v258, %v258
  %v421 = vmul.f32 %v261, %v261
  %v422 = vmul.f32 %v266, %v266
  %v423 = vmul.f32 %v269, %v269
  %v424 = vmul.f32 %v274, %v274
  %v425 = vmul.f32 %v277, %v277
  %v426 = vmul.f32 %v282, %v282
  %v427 = vmul.f32 %v285, %v285
  %v428 = vmul.f32 %v290, %v290
  %v429 = vmul.f32 %v293, %v293
  %v430 = vsel %vm174, %v414, 0.0
  %v431 = vsel %vm174, %v415, 0.0
  %v432 = vadd.f32 %v430, %v431
  %v433 = vsel %vm174, %v416, 0.0
  %v434 = vadd.f32 %v432, %v433
  %v435 = vsel %vm174, %v417, 0.0
  %v436 = vadd.f32 %v434, %v435
  %v437 = vsel %vm174, %v418, 0.0
  %v438 = vadd.f32 %v436, %v437
  %v439 = vsel %vm174, %v419, 0.0
  %v440 = vadd.f32 %v438, %v439
  %v441 = vsel %vm174, %v420, 0.0
  %v442 = vadd.f32 %v440, %v441
  %v443 = vsel %vm174, %v421, 0.0
  %v444 = vadd.f32 %v442, %v443
  %v445 = vsel %vm174, %v422, 0.0
  %v446 = vadd.f32 %v444, %v445
  %v447 = vsel %vm174, %v423, 0.0
  %v448 = vadd.f32 %v446, %v447
  %v449 = vsel %vm174, %v424, 0.0
  %v450 = vadd.f32 %v448, %v449
  %v451 = vsel %vm174, %v425, 0.0
  %v452 = vadd.f32 %v450, %v451
  %v453 = vsel %vm174, %v426, 0.0
  %v454 = vadd.f32 %v452, %v453
  %v455 = vsel %vm174, %v427, 0.0
  %v456 = vadd.f32 %v454, %v455
  %v457 = vsel %vm174, %v428, 0.0
  %v458 = vadd.f32 %v456, %v457
  %v459 = vsel %vm174, %v429, 0.0
  %v460 = vadd.f32 %v458, %v459
  %v461 = vrot.slane %v460, 4
  %v462 = vadd.f32 %v460, %v461
  %v463 = vrot.slane %v462, 2
  %v464 = vadd.f32 %v462, %v463
  %v465 = vrot.slane %v464, 1
  %v466 = vadd.f32 %v464, %v465
  %v467 = vlaneseq
  %v468 = vshrl.u32 %v467, 7
  %vm469 = vcmp.eq.s32.totalorder %v468, 0
  %vm470 = vcmp.eq.s32.totalorder %v468, 1
  %v471 = vsel %vm470, %v466, 0.0
  %v472 = vsel %vm469, %v413, %v471
  %473 = vst.msk [vmem:[%s3] sm:$0xff] %vm174, %v472
  // Predicated region
  $region10: #{fwd.10} parent=0 // pred_check
    _
  $region11: #{fwd.10} parent=0 // pred_check_branch
    %475 = sbr.rel (0) target = $region13
  $region12: #{fwd.10} parent=0 // pred_region
    _
  $region13: #{fwd.10} parent=0 // pred_fallthru
    _
  // Predicated region
  $region14: #{fwd.10} parent=0 // pred_check
    _
  $region15: #{fwd.10} parent=0 // pred_check_branch
    %477 = sbr.rel (0) target = $region17
  $region16: #{fwd.10} parent=0 // pred_region
    _
  $region17: #{fwd.10} parent=0 // pred_fallthru
    _
  // Predicated region
  $region18: #{fwd.10} parent=0 // pred_check
    _
  $region19: #{fwd.10} parent=0 // pred_check_branch
    %479 = sbr.rel (0) target = $region21
  $region20: #{fwd.10} parent=0 // pred_region
    _
  $region21: #{fwd.10} parent=0 // pred_fallthru
    _
  // Predicated region
  $region22: #{fwd.10} parent=0 // pred_check
    _
  $region23: #{fwd.10} parent=0 // pred_check_branch
    %481 = sbr.rel (0) target = $region25
  $region24: #{fwd.10} parent=0 // pred_region
    _
  $region25: #{fwd.10} parent=0 // pred_fallthru
    _

// kernel: fwd.11
$region0: #{fwd.11}
  #allocation0 [shape = 'u32[]', space=smem, size = 0x4, offset = 0x4, fixed_abs, tag = 'smem constant byte address 0x4 - core index']
  #allocation1 [shape = 'u32[144,128]{1,0:T(1,128)}', space=vmem, size = 0x12000, scoped, tag = 'internal scratch']
  %s0 = inlined_call_operand.vmem [shape: bf16[128,16], index: 0, kind: input, shape index: {}]
  %s1 = inlined_call_operand.vmem [shape: f32[1,16], index: 1, kind: input, shape index: {}]
  %s2 = inlined_call_operand.vmem [shape: f32[1,16], index: 2, kind: input, shape index: {}]
  %s3 = inlined_call_operand.vmem [shape: bf16[16,64], index: 3, kind: input, shape index: {}]
  %s4 = inlined_call_operand.vmem [shape: bf16[128,64], index: 4, kind: output, shape index: {0}]
  %s5 = inlined_call_operand.vmem [shape: f32[1,8,64], index: 5, kind: output, shape index: {1}]
  %6 = xla_tuple %s4, %s5
  %s7 = sld [smem:[#allocation0]]
  $region34: #{fwd.11} parent=0
    _
  %s9 = ssub.s32 1, %s7
  %s10 = scalar_select 0, %s9, %s7
  // Predicated region
  $region2: #{fwd.11} parent=0 // pred_check
    _
  $region3: #{fwd.11} parent=0 // pred_check_branch
    %12 = sbr.rel (0) target = $region5
  $region4: #{fwd.11} parent=0 // pred_region
    _
  $region5: #{fwd.11} parent=0 // pred_fallthru
    _
  // Predicated region
  $region6: #{fwd.11} parent=0 // pred_check
    _
  $region7: #{fwd.11} parent=0 // pred_check_branch
    %14 = sbr.rel (0) target = $region9
  $region8: #{fwd.11} parent=0 // pred_region
    _
  $region9: #{fwd.11} parent=0 // pred_fallthru
    _
  // Predicated region
  $region10: #{fwd.11} parent=0 // pred_check
    _
  $region11: #{fwd.11} parent=0 // pred_check_branch
    %16 = sbr.rel (0) target = $region13
  $region12: #{fwd.11} parent=0 // pred_region
    _
  $region13: #{fwd.11} parent=0 // pred_fallthru
    _
  // Predicated region
  $region14: #{fwd.11} parent=0 // pred_check
    _
  $region15: #{fwd.11} parent=0 // pred_check_branch
    %18 = sbr.rel (0) target = $region17
  $region16: #{fwd.11} parent=0 // pred_region
    _
  $region17: #{fwd.11} parent=0 // pred_fallthru
    _
  %v20 = vld [vmem:[%s0] sm:$0xf]
  %v21 = vld [vmem:[%s0 + $0x4] sm:$0xf]
  %v22 = vld [vmem:[%s0 + $0x8] sm:$0xf]
  %v23 = vld [vmem:[%s0 + $0xc] sm:$0xf]
  %v24 = vld [vmem:[%s0 + $0x10] sm:$0xf]
  %v25 = vld [vmem:[%s0 + $0x14] sm:$0xf]
  %v26 = vld [vmem:[%s0 + $0x18] sm:$0xf]
  %v27 = vld [vmem:[%s0 + $0x1c] sm:$0xf]
  %v28 = vld [vmem:[%s0 + $0x20] sm:$0xf]
  %v29 = vld [vmem:[%s0 + $0x24] sm:$0xf]
  %v30 = vld [vmem:[%s0 + $0x28] sm:$0xf]
  %v31 = vld [vmem:[%s0 + $0x2c] sm:$0xf]
  %v32 = vld [vmem:[%s0 + $0x30] sm:$0xf]
  %v33 = vld [vmem:[%s0 + $0x34] sm:$0xf]
  %v34 = vld [vmem:[%s0 + $0x38] sm:$0xf]
  %v35 = vld [vmem:[%s0 + $0x3c] sm:$0xf]
  %v36 = vunpack.c.l.bf16 %v20
  %v37 = vunpack.c.l.bf16 %v21
  %v38 = vunpack.c.l.bf16 %v22
  %v39 = vunpack.c.l.bf16 %v23
  %v40 = vunpack.c.l.bf16 %v24
  %v41 = vunpack.c.l.bf16 %v25
  %v42 = vunpack.c.l.bf16 %v26
  %v43 = vunpack.c.l.bf16 %v27
  %v44 = vunpack.c.l.bf16 %v28
  %v45 = vunpack.c.l.bf16 %v29
  %v46 = vunpack.c.l.bf16 %v30
  %v47 = vunpack.c.l.bf16 %v31
  %v48 = vunpack.c.l.bf16 %v32
  %v49 = vunpack.c.l.bf16 %v33
  %v50 = vunpack.c.l.bf16 %v34
  %v51 = vunpack.c.l.bf16 %v35
  %v52 = vld [vmem:[%s1] sm:$0x1]
  %v54 = vlaneseq
  %v55 = vshrl.u32 %v54, 7
  %v56 = vsub.s32 0, %v55
  %v57 = vrot.slane %v52, %v56
  %v59 = vmul.f32 %v36, %v57
  %v60 = vmul.f32 %v37, %v57
  %v61 = vmul.f32 %v38, %v57
  %v62 = vmul.f32 %v39, %v57
  %v63 = vmul.f32 %v40, %v57
  %v64 = vmul.f32 %v41, %v57
  %v65 = vmul.f32 %v42, %v57
  %v66 = vmul.f32 %v43, %v57
  %v67 = vmul.f32 %v44, %v57
  %v68 = vmul.f32 %v45, %v57
  %v69 = vmul.f32 %v46, %v57
  %v70 = vmul.f32 %v47, %v57
  %v71 = vmul.f32 %v48, %v57
  %v72 = vmul.f32 %v49, %v57
  %v73 = vmul.f32 %v50, %v57
  %v74 = vmul.f32 %v51, %v57
  %v75 = vld [vmem:[%s2] sm:$0x1]
  %v77 = vlaneseq
  %v78 = vshrl.u32 %v77, 7
  %v79 = vsub.s32 0, %v78
  %v80 = vrot.slane %v75, %v79
  %v82 = vadd.f32 %v59, %v80
  %v83 = vadd.f32 %v60, %v80
  %v84 = vadd.f32 %v61, %v80
  %v85 = vadd.f32 %v62, %v80
  %v86 = vadd.f32 %v63, %v80
  %v87 = vadd.f32 %v64, %v80
  %v88 = vadd.f32 %v65, %v80
  %v89 = vadd.f32 %v66, %v80
  %v90 = vadd.f32 %v67, %v80
  %v91 = vadd.f32 %v68, %v80
  %v92 = vadd.f32 %v69, %v80
  %v93 = vadd.f32 %v70, %v80
  %v94 = vadd.f32 %v71, %v80
  %v95 = vadd.f32 %v72, %v80
  %v96 = vadd.f32 %v73, %v80
  %v97 = vadd.f32 %v74, %v80
  %v98 = vmax.f32 %v82, 0.0
  %v99 = vmax.f32 %v83, 0.0
  %v100 = vmax.f32 %v84, 0.0
  %v101 = vmax.f32 %v85, 0.0
  %v102 = vmax.f32 %v86, 0.0
  %v103 = vmax.f32 %v87, 0.0
  %v104 = vmax.f32 %v88, 0.0
  %v105 = vmax.f32 %v89, 0.0
  %v106 = vmax.f32 %v90, 0.0
  %v107 = vmax.f32 %v91, 0.0
  %v108 = vmax.f32 %v92, 0.0
  %v109 = vmax.f32 %v93, 0.0
  %v110 = vmax.f32 %v94, 0.0
  %v111 = vmax.f32 %v95, 0.0
  %v112 = vmax.f32 %v96, 0.0
  %v113 = vmax.f32 %v97, 0.0
  %v114 = vpack.c.bf16 %v99, %v98
  %v115 = vpack.c.bf16 %v101, %v100
  %v116 = vpack.c.bf16 %v103, %v102
  %v117 = vpack.c.bf16 %v105, %v104
  %v118 = vpack.c.bf16 %v107, %v106
  %v119 = vpack.c.bf16 %v109, %v108
  %v120 = vpack.c.bf16 %v111, %v110
  %v121 = vpack.c.bf16 %v113, %v112
  %v122 = vld [vmem:[%s3] sm:$0xf]
  %v123 = vld [vmem:[%s3 + $0x4] sm:$0xf]
  %v126 = vunpack.c.l.b16 %v122
  %v127 = vunpack.c.l.b16 %v123
  %v128 = vpack.c.b16 %v127, %v126
  %vm130 = vcmask 130048
  %v132 = vsel %vm130, %v114, 0
  %v135 = vsel %vm130, %v115, 0
  %v138 = vsel %vm130, %v116, 0
  %v141 = vsel %vm130, %v117, 0
  %v144 = vsel %vm130, %v118, 0
  %v147 = vsel %vm130, %v119, 0
  %v150 = vsel %vm130, %v120, 0
  %v153 = vsel %vm130, %v121, 0
  %155 = vmatprep.subr.bf16.mxu0 0
  %156 = vmatpush1.bf16.msra.mxu0 %v128
  %157 = vmatprep.subr.bf16.mxu0 0
  %158 = vmatpush1.bf16.msra.mxu0 0
  %159 = vmatprep.subr.bf16.mxu0 0
  %160 = vmatpush1.bf16.msra.mxu0 0
  %161 = vmatprep.subr.bf16.mxu0 0
  %162 = vmatpush1.bf16.msra.mxu0 0
  %163 = vmatprep.subr.bf16.mxu0 0
  %164 = vmatpush1.bf16.msra.mxu0 0
  %165 = vmatprep.subr.bf16.mxu0 0
  %166 = vmatpush1.bf16.msra.mxu0 0
  %167 = vmatprep.subr.bf16.mxu0 0
  %168 = vmatpush1.bf16.msra.mxu0 0
  %169 = vmatprep.subr.bf16.mxu0 0
  %170 = vmatpush1.bf16.msra.mxu0 0
  %171 = vmatprep.subr.bf16.mxu0 0
  %172 = vmatpush1.bf16.msra.mxu0 0
  %173 = vmatprep.subr.bf16.mxu0 0
  %174 = vmatpush1.bf16.msra.mxu0 0
  %175 = vmatprep.subr.bf16.mxu0 0
  %176 = vmatpush1.bf16.msra.mxu0 0
  %177 = vmatprep.subr.bf16.mxu0 0
  %178 = vmatpush1.bf16.msra.mxu0 0
  %179 = vmatprep.subr.bf16.mxu0 0
  %180 = vmatpush1.bf16.msra.mxu0 0
  %181 = vmatprep.subr.bf16.mxu0 0
  %182 = vmatpush1.bf16.msra.mxu0 0
  %183 = vmatprep.subr.bf16.mxu0 0
  %184 = vmatpush1.bf16.msra.mxu0 0
  %185 = vmatprep.subr.bf16.mxu0 0
  %186 = vmatpush1.bf16.msra.mxu0 0
  %187 = vmatprep.mubr.bf16.mxu0 0
  %188 = vmatmul.mubr.bf16.gmra.mrb[0].mxu0 %v132
  %v189 = vpop.f32.mrb[0].mxu0
  %v190 = vadd.f32 0.0, %v189
  %v191 = vpop.f32.mrb[0].mxu0
  %v192 = vpop.f32.mrb[0].mxu0
  %v193 = vadd.f32 0.0, %v192
  %v194 = vpop.f32.mrb[0].mxu0
  %195 = vmatprep.mubr.bf16.mxu0 0
  %196 = vmatmul.mubr.bf16.gmra.mrb[0].mxu0 %v135
  %v197 = vpop.f32.mrb[0].mxu0
  %v198 = vadd.f32 0.0, %v197
  %v199 = vpop.f32.mrb[0].mxu0
  %v200 = vpop.f32.mrb[0].mxu0
  %v201 = vadd.f32 0.0, %v200
  %v202 = vpop.f32.mrb[0].mxu0
  %203 = vmatprep.mubr.bf16.mxu0 0
  %204 = vmatmul.mubr.bf16.gmra.mrb[0].mxu0 %v138
  %v205 = vpop.f32.mrb[0].mxu0
  %v206 = vadd.f32 0.0, %v205
  %v207 = vpop.f32.mrb[0].mxu0
  %v208 = vpop.f32.mrb[0].mxu0
  %v209 = vadd.f32 0.0, %v208
  %v210 = vpop.f32.mrb[0].mxu0
  %211 = vmatprep.mubr.bf16.mxu0 0
  %212 = vmatmul.mubr.bf16.gmra.mrb[0].mxu0 %v141
  %v213 = vpop.f32.mrb[0].mxu0
  %v214 = vadd.f32 0.0, %v213
  %v215 = vpop.f32.mrb[0].mxu0
  %v216 = vpop.f32.mrb[0].mxu0
  %v217 = vadd.f32 0.0, %v216
  %v218 = vpop.f32.mrb[0].mxu0
  %219 = vmatprep.mubr.bf16.mxu0 0
  %220 = vmatmul.mubr.bf16.gmra.mrb[0].mxu0 %v144
  %v221 = vpop.f32.mrb[0].mxu0
  %v222 = vadd.f32 0.0, %v221
  %v223 = vpop.f32.mrb[0].mxu0
  %v224 = vpop.f32.mrb[0].mxu0
  %v225 = vadd.f32 0.0, %v224
  %v226 = vpop.f32.mrb[0].mxu0
  %227 = vmatprep.mubr.bf16.mxu0 0
  %228 = vmatmul.mubr.bf16.gmra.mrb[0].mxu0 %v147
  %v229 = vpop.f32.mrb[0].mxu0
  %v230 = vadd.f32 0.0, %v229
  %v231 = vpop.f32.mrb[0].mxu0
  %v232 = vpop.f32.mrb[0].mxu0
  %v233 = vadd.f32 0.0, %v232
  %v234 = vpop.f32.mrb[0].mxu0
  %235 = vmatprep.mubr.bf16.mxu0 0
  %236 = vmatmul.mubr.bf16.gmra.mrb[0].mxu0 %v150
  %v237 = vpop.f32.mrb[0].mxu0
  %v238 = vadd.f32 0.0, %v237
  %v239 = vpop.f32.mrb[0].mxu0
  %v240 = vpop.f32.mrb[0].mxu0
  %v241 = vadd.f32 0.0, %v240
  %v242 = vpop.f32.mrb[0].mxu0
  %243 = vmatprep.mubr.bf16.mxu0 0
  %244 = vmatmul.mubr.bf16.gmra.mrb[0].mxu0 %v153
  %v245 = vpop.f32.mrb[0].mxu0
  %v246 = vadd.f32 0.0, %v245
  %v247 = vpop.f32.mrb[0].mxu0
  %v248 = vpop.f32.mrb[0].mxu0
  %v249 = vadd.f32 0.0, %v248
  %v250 = vpop.f32.mrb[0].mxu0
  %251 = vdwg.mxu0
  %v252 = vpack.c.bf16 %v193, %v190
  %v253 = vpack.c.bf16 %v201, %v198
  %v254 = vpack.c.bf16 %v209, %v206
  %v255 = vpack.c.bf16 %v217, %v214
  %v256 = vpack.c.bf16 %v225, %v222
  %v257 = vpack.c.bf16 %v233, %v230
  %v258 = vpack.c.bf16 %v241, %v238
  %v259 = vpack.c.bf16 %v249, %v246
  %v268 = vunpack.c.l.b16 %v252
  %v269 = vunpack.c.h.b16 %v252
  %v270 = vunpack.c.l.b16 %v253
  %v271 = vunpack.c.h.b16 %v253
  %v272 = vunpack.c.l.b16 %v254
  %v273 = vunpack.c.h.b16 %v254
  %v274 = vunpack.c.l.b16 %v255
  %v275 = vunpack.c.h.b16 %v255
  %v276 = vunpack.c.l.b16 %v256
  %v277 = vunpack.c.h.b16 %v256
  %v278 = vunpack.c.l.b16 %v257
  %v279 = vunpack.c.h.b16 %v257
  %v280 = vunpack.c.l.b16 %v258
  %v281 = vunpack.c.h.b16 %v258
  %v282 = vunpack.c.l.b16 %v259
  %v283 = vunpack.c.h.b16 %v259
  %v284 = vpack.c.b16 %v268, %v268
  %v285 = vpack.c.b16 %v269, %v269
  %v286 = vpack.c.b16 %v270, %v270
  %v287 = vpack.c.b16 %v271, %v271
  %v288 = vpack.c.b16 %v272, %v272
  %v289 = vpack.c.b16 %v273, %v273
  %v290 = vpack.c.b16 %v274, %v274
  %v291 = vpack.c.b16 %v275, %v275
  %v292 = vpack.c.b16 %v276, %v276
  %v293 = vpack.c.b16 %v277, %v277
  %v294 = vpack.c.b16 %v278, %v278
  %v295 = vpack.c.b16 %v279, %v279
  %v296 = vpack.c.b16 %v280, %v280
  %v297 = vpack.c.b16 %v281, %v281
  %v298 = vpack.c.b16 %v282, %v282
  %v299 = vpack.c.b16 %v283, %v283
  %vm316 = vcmask 519168
  %317 = vst.msk [vmem:[%s4] sm:$0xf] %vm316, %v284
  %318 = vst.msk [vmem:[%s4 + $0x4] sm:$0xf] %vm316, %v285
  %319 = vst.msk [vmem:[%s4 + $0x8] sm:$0xf] %vm316, %v286
  %320 = vst.msk [vmem:[%s4 + $0xc] sm:$0xf] %vm316, %v287
  %321 = vst.msk [vmem:[%s4 + $0x10] sm:$0xf] %vm316, %v288
  %322 = vst.msk [vmem:[%s4 + $0x14] sm:$0xf] %vm316, %v289
  %323 = vst.msk [vmem:[%s4 + $0x18] sm:$0xf] %vm316, %v290
  %324 = vst.msk [vmem:[%s4 + $0x1c] sm:$0xf] %vm316, %v291
  %325 = vst.msk [vmem:[%s4 + $0x20] sm:$0xf] %vm316, %v292
  %326 = vst.msk [vmem:[%s4 + $0x24] sm:$0xf] %vm316, %v293
  %327 = vst.msk [vmem:[%s4 + $0x28] sm:$0xf] %vm316, %v294
  %328 = vst.msk [vmem:[%s4 + $0x2c] sm:$0xf] %vm316, %v295
  %329 = vst.msk [vmem:[%s4 + $0x30] sm:$0xf] %vm316, %v296
  %330 = vst.msk [vmem:[%s4 + $0x34] sm:$0xf] %vm316, %v297
  %331 = vst.msk [vmem:[%s4 + $0x38] sm:$0xf] %vm316, %v298
  %332 = vst.msk [vmem:[%s4 + $0x3c] sm:$0xf] %vm316, %v299
  %vm333 = vcmask 523264
  %v334 = vsel %vm333, %v190, 0.0
  %v335 = vsel %vm333, %v193, 0.0
  %v336 = vadd.f32 %v334, %v335
  %v337 = vsel %vm333, %v198, 0.0
  %v338 = vadd.f32 %v336, %v337
  %v339 = vsel %vm333, %v201, 0.0
  %v340 = vadd.f32 %v338, %v339
  %v341 = vsel %vm333, %v206, 0.0
  %v342 = vadd.f32 %v340, %v341
  %v343 = vsel %vm333, %v209, 0.0
  %v344 = vadd.f32 %v342, %v343
  %v345 = vsel %vm333, %v214, 0.0
  %v346 = vadd.f32 %v344, %v345
  %v347 = vsel %vm333, %v217, 0.0
  %v348 = vadd.f32 %v346, %v347
  %v349 = vsel %vm333, %v222, 0.0
  %v350 = vadd.f32 %v348, %v349
  %v351 = vsel %vm333, %v225, 0.0
  %v352 = vadd.f32 %v350, %v351
  %v353 = vsel %vm333, %v230, 0.0
  %v354 = vadd.f32 %v352, %v353
  %v355 = vsel %vm333, %v233, 0.0
  %v356 = vadd.f32 %v354, %v355
  %v357 = vsel %vm333, %v238, 0.0
  %v358 = vadd.f32 %v356, %v357
  %v359 = vsel %vm333, %v241, 0.0
  %v360 = vadd.f32 %v358, %v359
  %v361 = vsel %vm333, %v246, 0.0
  %v362 = vadd.f32 %v360, %v361
  %v363 = vsel %vm333, %v249, 0.0
  %v364 = vadd.f32 %v362, %v363
  %v365 = vrot.slane %v364, 4
  %v366 = vadd.f32 %v364, %v365
  %v367 = vrot.slane %v366, 2
  %v368 = vadd.f32 %v366, %v367
  %v369 = vrot.slane %v368, 1
  %v370 = vadd.f32 %v368, %v369
  %v371 = vmul.f32 %v190, %v190
  %v372 = vmul.f32 %v193, %v193
  %v373 = vmul.f32 %v198, %v198
  %v374 = vmul.f32 %v201, %v201
  %v375 = vmul.f32 %v206, %v206
  %v376 = vmul.f32 %v209, %v209
  %v377 = vmul.f32 %v214, %v214
  %v378 = vmul.f32 %v217, %v217
  %v379 = vmul.f32 %v222, %v222
  %v380 = vmul.f32 %v225, %v225
  %v381 = vmul.f32 %v230, %v230
  %v382 = vmul.f32 %v233, %v233
  %v383 = vmul.f32 %v238, %v238
  %v384 = vmul.f32 %v241, %v241
  %v385 = vmul.f32 %v246, %v246
  %v386 = vmul.f32 %v249, %v249
  %v387 = vsel %vm333, %v371, 0.0
  %v388 = vsel %vm333, %v372, 0.0
  %v389 = vadd.f32 %v387, %v388
  %v390 = vsel %vm333, %v373, 0.0
  %v391 = vadd.f32 %v389, %v390
  %v392 = vsel %vm333, %v374, 0.0
  %v393 = vadd.f32 %v391, %v392
  %v394 = vsel %vm333, %v375, 0.0
  %v395 = vadd.f32 %v393, %v394
  %v396 = vsel %vm333, %v376, 0.0
  %v397 = vadd.f32 %v395, %v396
  %v398 = vsel %vm333, %v377, 0.0
  %v399 = vadd.f32 %v397, %v398
  %v400 = vsel %vm333, %v378, 0.0
  %v401 = vadd.f32 %v399, %v400
  %v402 = vsel %vm333, %v379, 0.0
  %v403 = vadd.f32 %v401, %v402
  %v404 = vsel %vm333, %v380, 0.0
  %v405 = vadd.f32 %v403, %v404
  %v406 = vsel %vm333, %v381, 0.0
  %v407 = vadd.f32 %v405, %v406
  %v408 = vsel %vm333, %v382, 0.0
  %v409 = vadd.f32 %v407, %v408
  %v410 = vsel %vm333, %v383, 0.0
  %v411 = vadd.f32 %v409, %v410
  %v412 = vsel %vm333, %v384, 0.0
  %v413 = vadd.f32 %v411, %v412
  %v414 = vsel %vm333, %v385, 0.0
  %v415 = vadd.f32 %v413, %v414
  %v416 = vsel %vm333, %v386, 0.0
  %v417 = vadd.f32 %v415, %v416
  %v418 = vrot.slane %v417, 4
  %v419 = vadd.f32 %v417, %v418
  %v420 = vrot.slane %v419, 2
  %v421 = vadd.f32 %v419, %v420
  %v422 = vrot.slane %v421, 1
  %v423 = vadd.f32 %v421, %v422
  %v424 = vlaneseq
  %v425 = vshrl.u32 %v424, 7
  %vm426 = vcmp.eq.s32.totalorder %v425, 0
  %vm427 = vcmp.eq.s32.totalorder %v425, 1
  %v428 = vsel %vm427, %v423, 0.0
  %v429 = vsel %vm426, %v370, %v428
  %430 = vst.msk [vmem:[%s5] sm:$0xff] %vm333, %v429
  // Predicated region
  $region18: #{fwd.11} parent=0 // pred_check
    _
  $region19: #{fwd.11} parent=0 // pred_check_branch
    %432 = sbr.rel (0) target = $region21
  $region20: #{fwd.11} parent=0 // pred_region
    _
  $region21: #{fwd.11} parent=0 // pred_fallthru
    _
  // Predicated region
  $region22: #{fwd.11} parent=0 // pred_check
    _
  $region23: #{fwd.11} parent=0 // pred_check_branch
    %434 = sbr.rel (0) target = $region25
  $region24: #{fwd.11} parent=0 // pred_region
    _
  $region25: #{fwd.11} parent=0 // pred_fallthru
    _
  // Predicated region
  $region26: #{fwd.11} parent=0 // pred_check
    _
  $region27: #{fwd.11} parent=0 // pred_check_branch
    %436 = sbr.rel (0) target = $region29
  $region28: #{fwd.11} parent=0 // pred_region
    _
  $region29: #{fwd.11} parent=0 // pred_fallthru
    _
  // Predicated region
  $region30: #{fwd.11} parent=0 // pred_check
    _
  $region31: #{fwd.11} parent=0 // pred_check_branch
    %438 = sbr.rel (0) target = $region33
  $region32: #{fwd.11} parent=0 // pred_region
    _
  $region33: #{fwd.11} parent=0 // pred_fallthru
    _

// kernel: tile.37
$region0: #{tile.37}
  #allocation0 [shape = 's32[1]{0}', space=sflag, size = 0x4, scoped, tag = 'scoped memory for tile.37']
  %s0 = inlined_call_operand.vmem [shape: f32[64], index: 0, kind: input, shape index: {}]
  %s1 = inlined_call_operand.vmem [shape: f32[2,64], index: 1, kind: output, shape index: {}]
  // Predicated region
  $region2: #{tile.37} parent=0 // pred_check
    _
  $region3: #{tile.37} parent=0 // pred_check_branch
    %3 = sbr.rel (0) target = $region5
  $region4: #{tile.37} parent=0 // pred_region
    _
  $region5: #{tile.37} parent=0 // pred_fallthru
    _
  %v4 = vld [vmem:[%s0] ss:$0 sm:$0xff]
  %5 = vst [vmem:[%s1] sm:$0x3] %v4

// kernel: tile.50
$region0: #{tile.50}
  %s0 = inlined_call_operand.vmem [shape: f32[2,64], index: 0, kind: input, shape index: {}]
  %s1 = inlined_call_operand.vmem [shape: f32[1,128], index: 1, kind: output, shape index: {}]
  $region1: #{tile.50} parent=0
    #allocation0 [shape = 'u8[4096]{0}', space=vmem, size = 0x1000, scoped, tag = 'scoped mem for output reshape']
    #allocation1 [shape = 'u8[4096]{0}', space=vmem, size = 0x1000, scoped, tag = 'scoped mem for input reshape']
    %s3 = sshllo.u32 0, 2
    %v4 = vld [vmem:[%s0] sm:%s3]
    %5 = vst [vmem:[#allocation1] sm:%s3] %v4
    %v6 = vld [vmem:[#allocation1] sm:$0x1]
    %vm7 = vcmask 523264
    %8 = vst.msk [vmem:[#allocation0] sm:$0x1] %vm7, %v6
    %s9 = scalar_lea.vmem [#allocation1], 1
    %v10 = vld [vmem:[%s9] sm:$0x1]
    %11 = vrot.lane.b32.xlu0 %v10, 64
    %v12 = vpop.permute.xlu0 %11
    %vm13 = vcmask 1048064
    %14 = vst.msk [vmem:[#allocation0] sm:$0x1] %vm13, %v12
    %s16 = sshllo.u32 0, 1
    %v18 = vld [vmem:[#allocation0] sm:%s16]
    %s19 = sshllo.u32 0, 1
    %20 = vst [vmem:[%s1] sm:%s19] %v18

// kernel: fwd.12
$region0: #{fwd.12}
  #allocation0 [shape = 'u32[]', space=smem, size = 0x4, offset = 0x4, fixed_abs, tag = 'smem constant byte address 0x4 - core index']
  #allocation1 [shape = 'u32[144,128]{1,0:T(1,128)}', space=vmem, size = 0x12000, scoped, tag = 'internal scratch']
  %s0 = inlined_call_operand.vmem [shape: bf16[128,32], index: 0, kind: input, shape index: {}]
  %s1 = inlined_call_operand.vmem [shape: bf16[32,64], index: 1, kind: input, shape index: {}]
  %s2 = inlined_call_operand.vmem [shape: bf16[128,64], index: 2, kind: output, shape index: {0}]
  %s3 = inlined_call_operand.vmem [shape: f32[1,8,64], index: 3, kind: output, shape index: {1}]
  %4 = xla_tuple %s2, %s3
  %s5 = sld [smem:[#allocation0]]
  $region26: #{fwd.12} parent=0
    _
  %s7 = ssub.s32 1, %s5
  %s8 = scalar_select 0, %s7, %s5
  // Predicated region
  $region2: #{fwd.12} parent=0 // pred_check
    _
  $region3: #{fwd.12} parent=0 // pred_check_branch
    %10 = sbr.rel (0) target = $region5
  $region4: #{fwd.12} parent=0 // pred_region
    _
  $region5: #{fwd.12} parent=0 // pred_fallthru
    _
  // Predicated region
  $region6: #{fwd.12} parent=0 // pred_check
    _
  $region7: #{fwd.12} parent=0 // pred_check_branch
    %12 = sbr.rel (0) target = $region9
  $region8: #{fwd.12} parent=0 // pred_region
    _
  $region9: #{fwd.12} parent=0 // pred_fallthru
    _
  %v14 = vld [vmem:[%s0] sm:$0xf]
  %v15 = vld [vmem:[%s0 + $0x4] sm:$0xf]
  %v16 = vld [vmem:[%s0 + $0x8] sm:$0xf]
  %v17 = vld [vmem:[%s0 + $0xc] sm:$0xf]
  %v18 = vld [vmem:[%s0 + $0x10] sm:$0xf]
  %v19 = vld [vmem:[%s0 + $0x14] sm:$0xf]
  %v20 = vld [vmem:[%s0 + $0x18] sm:$0xf]
  %v21 = vld [vmem:[%s0 + $0x1c] sm:$0xf]
  %v22 = vld [vmem:[%s0 + $0x20] sm:$0xf]
  %v23 = vld [vmem:[%s0 + $0x24] sm:$0xf]
  %v24 = vld [vmem:[%s0 + $0x28] sm:$0xf]
  %v25 = vld [vmem:[%s0 + $0x2c] sm:$0xf]
  %v26 = vld [vmem:[%s0 + $0x30] sm:$0xf]
  %v27 = vld [vmem:[%s0 + $0x34] sm:$0xf]
  %v28 = vld [vmem:[%s0 + $0x38] sm:$0xf]
  %v29 = vld [vmem:[%s0 + $0x3c] sm:$0xf]
  %v30 = vld [vmem:[%s1] sm:$0xf]
  %v31 = vld [vmem:[%s1 + $0x4] sm:$0xf]
  %v32 = vld [vmem:[%s1 + $0x8] sm:$0xf]
  %v33 = vld [vmem:[%s1 + $0xc] sm:$0xf]
  %v50 = vunpack.c.l.b16 %v14
  %v51 = vunpack.c.l.b16 %v15
  %v52 = vunpack.c.l.b16 %v16
  %v53 = vunpack.c.l.b16 %v17
  %v54 = vunpack.c.l.b16 %v18
  %v55 = vunpack.c.l.b16 %v19
  %v56 = vunpack.c.l.b16 %v20
  %v57 = vunpack.c.l.b16 %v21
  %v58 = vunpack.c.l.b16 %v22
  %v59 = vunpack.c.l.b16 %v23
  %v60 = vunpack.c.l.b16 %v24
  %v61 = vunpack.c.l.b16 %v25
  %v62 = vunpack.c.l.b16 %v26
  %v63 = vunpack.c.l.b16 %v27
  %v64 = vunpack.c.l.b16 %v28
  %v65 = vunpack.c.l.b16 %v29
  %v66 = vpack.c.b16 %v51, %v50
  %v67 = vpack.c.b16 %v53, %v52
  %v68 = vpack.c.b16 %v55, %v54
  %v69 = vpack.c.b16 %v57, %v56
  %v70 = vpack.c.b16 %v59, %v58
  %v71 = vpack.c.b16 %v61, %v60
  %v72 = vpack.c.b16 %v63, %v62
  %v73 = vpack.c.b16 %v65, %v64
  %v78 = vunpack.c.l.b16 %v30
  %v79 = vunpack.c.l.b16 %v31
  %v80 = vunpack.c.l.b16 %v32
  %v81 = vunpack.c.l.b16 %v33
  %v82 = vpack.c.b16 %v79, %v78
  %v83 = vpack.c.b16 %v81, %v80
  %vm86 = vcmask 261120
  %v88 = vsel %vm86, %v66, 0
  %v91 = vsel %vm86, %v67, 0
  %v94 = vsel %vm86, %v68, 0
  %v97 = vsel %vm86, %v69, 0
  %v100 = vsel %vm86, %v70, 0
  %v103 = vsel %vm86, %v71, 0
  %v106 = vsel %vm86, %v72, 0
  %v109 = vsel %vm86, %v73, 0
  %111 = vmatprep.subr.bf16.mxu0 0
  %112 = vmatpush1.bf16.msra.mxu0 %v82
  %113 = vmatprep.subr.bf16.mxu0 0
  %114 = vmatpush1.bf16.msra.mxu0 %v83
  %115 = vmatprep.subr.bf16.mxu0 0
  %116 = vmatpush1.bf16.msra.mxu0 0
  %117 = vmatprep.subr.bf16.mxu0 0
  %118 = vmatpush1.bf16.msra.mxu0 0
  %119 = vmatprep.subr.bf16.mxu0 0
  %120 = vmatpush1.bf16.msra.mxu0 0
  %121 = vmatprep.subr.bf16.mxu0 0
  %122 = vmatpush1.bf16.msra.mxu0 0
  %123 = vmatprep.subr.bf16.mxu0 0
  %124 = vmatpush1.bf16.msra.mxu0 0
  %125 = vmatprep.subr.bf16.mxu0 0
  %126 = vmatpush1.bf16.msra.mxu0 0
  %127 = vmatprep.subr.bf16.mxu0 0
  %128 = vmatpush1.bf16.msra.mxu0 0
  %129 = vmatprep.subr.bf16.mxu0 0
  %130 = vmatpush1.bf16.msra.mxu0 0
  %131 = vmatprep.subr.bf16.mxu0 0
  %132 = vmatpush1.bf16.msra.mxu0 0
  %133 = vmatprep.subr.bf16.mxu0 0
  %134 = vmatpush1.bf16.msra.mxu0 0
  %135 = vmatprep.subr.bf16.mxu0 0
  %136 = vmatpush1.bf16.msra.mxu0 0
  %137 = vmatprep.subr.bf16.mxu0 0
  %138 = vmatpush1.bf16.msra.mxu0 0
  %139 = vmatprep.subr.bf16.mxu0 0
  %140 = vmatpush1.bf16.msra.mxu0 0
  %141 = vmatprep.subr.bf16.mxu0 0
  %142 = vmatpush1.bf16.msra.mxu0 0
  %143 = vmatprep.mubr.bf16.mxu0 0
  %144 = vmatmul.mubr.bf16.gmra.mrb[0].mxu0 %v88
  %v145 = vpop.f32.mrb[0].mxu0
  %v146 = vadd.f32 0.0, %v145
  %v147 = vpop.f32.mrb[0].mxu0
  %v148 = vpop.f32.mrb[0].mxu0
  %v149 = vadd.f32 0.0, %v148
  %v150 = vpop.f32.mrb[0].mxu0
  %151 = vmatprep.mubr.bf16.mxu0 0
  %152 = vmatmul.mubr.bf16.gmra.mrb[0].mxu0 %v91
  %v153 = vpop.f32.mrb[0].mxu0
  %v154 = vadd.f32 0.0, %v153
  %v155 = vpop.f32.mrb[0].mxu0
  %v156 = vpop.f32.mrb[0].mxu0
  %v157 = vadd.f32 0.0, %v156
  %v158 = vpop.f32.mrb[0].mxu0
  %159 = vmatprep.mubr.bf16.mxu0 0
  %160 = vmatmul.mubr.bf16.gmra.mrb[0].mxu0 %v94
  %v161 = vpop.f32.mrb[0].mxu0
  %v162 = vadd.f32 0.0, %v161
  %v163 = vpop.f32.mrb[0].mxu0
  %v164 = vpop.f32.mrb[0].mxu0
  %v165 = vadd.f32 0.0, %v164
  %v166 = vpop.f32.mrb[0].mxu0
  %167 = vmatprep.mubr.bf16.mxu0 0
  %168 = vmatmul.mubr.bf16.gmra.mrb[0].mxu0 %v97
  %v169 = vpop.f32.mrb[0].mxu0
  %v170 = vadd.f32 0.0, %v169
  %v171 = vpop.f32.mrb[0].mxu0
  %v172 = vpop.f32.mrb[0].mxu0
  %v173 = vadd.f32 0.0, %v172
  %v174 = vpop.f32.mrb[0].mxu0
  %175 = vmatprep.mubr.bf16.mxu0 0
  %176 = vmatmul.mubr.bf16.gmra.mrb[0].mxu0 %v100
  %v177 = vpop.f32.mrb[0].mxu0
  %v178 = vadd.f32 0.0, %v177
  %v179 = vpop.f32.mrb[0].mxu0
  %v180 = vpop.f32.mrb[0].mxu0
  %v181 = vadd.f32 0.0, %v180
  %v182 = vpop.f32.mrb[0].mxu0
  %183 = vmatprep.mubr.bf16.mxu0 0
  %184 = vmatmul.mubr.bf16.gmra.mrb[0].mxu0 %v103
  %v185 = vpop.f32.mrb[0].mxu0
  %v186 = vadd.f32 0.0, %v185
  %v187 = vpop.f32.mrb[0].mxu0
  %v188 = vpop.f32.mrb[0].mxu0
  %v189 = vadd.f32 0.0, %v188
  %v190 = vpop.f32.mrb[0].mxu0
  %191 = vmatprep.mubr.bf16.mxu0 0
  %192 = vmatmul.mubr.bf16.gmra.mrb[0].mxu0 %v106
  %v193 = vpop.f32.mrb[0].mxu0
  %v194 = vadd.f32 0.0, %v193
  %v195 = vpop.f32.mrb[0].mxu0
  %v196 = vpop.f32.mrb[0].mxu0
  %v197 = vadd.f32 0.0, %v196
  %v198 = vpop.f32.mrb[0].mxu0
  %199 = vmatprep.mubr.bf16.mxu0 0
  %200 = vmatmul.mubr.bf16.gmra.mrb[0].mxu0 %v109
  %v201 = vpop.f32.mrb[0].mxu0
  %v202 = vadd.f32 0.0, %v201
  %v203 = vpop.f32.mrb[0].mxu0
  %v204 = vpop.f32.mrb[0].mxu0
  %v205 = vadd.f32 0.0, %v204
  %v206 = vpop.f32.mrb[0].mxu0
  %207 = vdwg.mxu0
  %v208 = vpack.c.bf16 %v149, %v146
  %v209 = vpack.c.bf16 %v157, %v154
  %v210 = vpack.c.bf16 %v165, %v162
  %v211 = vpack.c.bf16 %v173, %v170
  %v212 = vpack.c.bf16 %v181, %v178
  %v213 = vpack.c.bf16 %v189, %v186
  %v214 = vpack.c.bf16 %v197, %v194
  %v215 = vpack.c.bf16 %v205, %v202
  %v224 = vunpack.c.l.b16 %v208
  %v225 = vunpack.c.h.b16 %v208
  %v226 = vunpack.c.l.b16 %v209
  %v227 = vunpack.c.h.b16 %v209
  %v228 = vunpack.c.l.b16 %v210
  %v229 = vunpack.c.h.b16 %v210
  %v230 = vunpack.c.l.b16 %v211
  %v231 = vunpack.c.h.b16 %v211
  %v232 = vunpack.c.l.b16 %v212
  %v233 = vunpack.c.h.b16 %v212
  %v234 = vunpack.c.l.b16 %v213
  %v235 = vunpack.c.h.b16 %v213
  %v236 = vunpack.c.l.b16 %v214
  %v237 = vunpack.c.h.b16 %v214
  %v238 = vunpack.c.l.b16 %v215
  %v239 = vunpack.c.h.b16 %v215
  %v240 = vpack.c.b16 %v224, %v224
  %v241 = vpack.c.b16 %v225, %v225
  %v242 = vpack.c.b16 %v226, %v226
  %v243 = vpack.c.b16 %v227, %v227
  %v244 = vpack.c.b16 %v228, %v228
  %v245 = vpack.c.b16 %v229, %v229
  %v246 = vpack.c.b16 %v230, %v230
  %v247 = vpack.c.b16 %v231, %v231
  %v248 = vpack.c.b16 %v232, %v232
  %v249 = vpack.c.b16 %v233, %v233
  %v250 = vpack.c.b16 %v234, %v234
  %v251 = vpack.c.b16 %v235, %v235
  %v252 = vpack.c.b16 %v236, %v236
  %v253 = vpack.c.b16 %v237, %v237
  %v254 = vpack.c.b16 %v238, %v238
  %v255 = vpack.c.b16 %v239, %v239
  %vm272 = vcmask 519168
  %273 = vst.msk [vmem:[%s2] sm:$0xf] %vm272, %v240
  %274 = vst.msk [vmem:[%s2 + $0x4] sm:$0xf] %vm272, %v241
  %275 = vst.msk [vmem:[%s2 + $0x8] sm:$0xf] %vm272, %v242
  %276 = vst.msk [vmem:[%s2 + $0xc] sm:$0xf] %vm272, %v243
  %277 = vst.msk [vmem:[%s2 + $0x10] sm:$0xf] %vm272, %v244
  %278 = vst.msk [vmem:[%s2 + $0x14] sm:$0xf] %vm272, %v245
  %279 = vst.msk [vmem:[%s2 + $0x18] sm:$0xf] %vm272, %v246
  %280 = vst.msk [vmem:[%s2 + $0x1c] sm:$0xf] %vm272, %v247
  %281 = vst.msk [vmem:[%s2 + $0x20] sm:$0xf] %vm272, %v248
  %282 = vst.msk [vmem:[%s2 + $0x24] sm:$0xf] %vm272, %v249
  %283 = vst.msk [vmem:[%s2 + $0x28] sm:$0xf] %vm272, %v250
  %284 = vst.msk [vmem:[%s2 + $0x2c] sm:$0xf] %vm272, %v251
  %285 = vst.msk [vmem:[%s2 + $0x30] sm:$0xf] %vm272, %v252
  %286 = vst.msk [vmem:[%s2 + $0x34] sm:$0xf] %vm272, %v253
  %287 = vst.msk [vmem:[%s2 + $0x38] sm:$0xf] %vm272, %v254
  %288 = vst.msk [vmem:[%s2 + $0x3c] sm:$0xf] %vm272, %v255
  %vm289 = vcmask 523264
  %v290 = vsel %vm289, %v146, 0.0
  %v291 = vsel %vm289, %v149, 0.0
  %v292 = vadd.f32 %v290, %v291
  %v293 = vsel %vm289, %v154, 0.0
  %v294 = vadd.f32 %v292, %v293
  %v295 = vsel %vm289, %v157, 0.0
  %v296 = vadd.f32 %v294, %v295
  %v297 = vsel %vm289, %v162, 0.0
  %v298 = vadd.f32 %v296, %v297
  %v299 = vsel %vm289, %v165, 0.0
  %v300 = vadd.f32 %v298, %v299
  %v301 = vsel %vm289, %v170, 0.0
  %v302 = vadd.f32 %v300, %v301
  %v303 = vsel %vm289, %v173, 0.0
  %v304 = vadd.f32 %v302, %v303
  %v305 = vsel %vm289, %v178, 0.0
  %v306 = vadd.f32 %v304, %v305
  %v307 = vsel %vm289, %v181, 0.0
  %v308 = vadd.f32 %v306, %v307
  %v309 = vsel %vm289, %v186, 0.0
  %v310 = vadd.f32 %v308, %v309
  %v311 = vsel %vm289, %v189, 0.0
  %v312 = vadd.f32 %v310, %v311
  %v313 = vsel %vm289, %v194, 0.0
  %v314 = vadd.f32 %v312, %v313
  %v315 = vsel %vm289, %v197, 0.0
  %v316 = vadd.f32 %v314, %v315
  %v317 = vsel %vm289, %v202, 0.0
  %v318 = vadd.f32 %v316, %v317
  %v319 = vsel %vm289, %v205, 0.0
  %v320 = vadd.f32 %v318, %v319
  %v321 = vrot.slane %v320, 4
  %v322 = vadd.f32 %v320, %v321
  %v323 = vrot.slane %v322, 2
  %v324 = vadd.f32 %v322, %v323
  %v325 = vrot.slane %v324, 1
  %v326 = vadd.f32 %v324, %v325
  %v327 = vmul.f32 %v146, %v146
  %v328 = vmul.f32 %v149, %v149
  %v329 = vmul.f32 %v154, %v154
  %v330 = vmul.f32 %v157, %v157
  %v331 = vmul.f32 %v162, %v162
  %v332 = vmul.f32 %v165, %v165
  %v333 = vmul.f32 %v170, %v170
  %v334 = vmul.f32 %v173, %v173
  %v335 = vmul.f32 %v178, %v178
  %v336 = vmul.f32 %v181, %v181
  %v337 = vmul.f32 %v186, %v186
  %v338 = vmul.f32 %v189, %v189
  %v339 = vmul.f32 %v194, %v194
  %v340 = vmul.f32 %v197, %v197
  %v341 = vmul.f32 %v202, %v202
  %v342 = vmul.f32 %v205, %v205
  %v343 = vsel %vm289, %v327, 0.0
  %v344 = vsel %vm289, %v328, 0.0
  %v345 = vadd.f32 %v343, %v344
  %v346 = vsel %vm289, %v329, 0.0
  %v347 = vadd.f32 %v345, %v346
  %v348 = vsel %vm289, %v330, 0.0
  %v349 = vadd.f32 %v347, %v348
  %v350 = vsel %vm289, %v331, 0.0
  %v351 = vadd.f32 %v349, %v350
  %v352 = vsel %vm289, %v332, 0.0
  %v353 = vadd.f32 %v351, %v352
  %v354 = vsel %vm289, %v333, 0.0
  %v355 = vadd.f32 %v353, %v354
  %v356 = vsel %vm289, %v334, 0.0
  %v357 = vadd.f32 %v355, %v356
  %v358 = vsel %vm289, %v335, 0.0
  %v359 = vadd.f32 %v357, %v358
  %v360 = vsel %vm289, %v336, 0.0
  %v361 = vadd.f32 %v359, %v360
  %v362 = vsel %vm289, %v337, 0.0
  %v363 = vadd.f32 %v361, %v362
  %v364 = vsel %vm289, %v338, 0.0
  %v365 = vadd.f32 %v363, %v364
  %v366 = vsel %vm289, %v339, 0.0
  %v367 = vadd.f32 %v365, %v366
  %v368 = vsel %vm289, %v340, 0.0
  %v369 = vadd.f32 %v367, %v368
  %v370 = vsel %vm289, %v341, 0.0
  %v371 = vadd.f32 %v369, %v370
  %v372 = vsel %vm289, %v342, 0.0
  %v373 = vadd.f32 %v371, %v372
  %v374 = vrot.slane %v373, 4
  %v375 = vadd.f32 %v373, %v374
  %v376 = vrot.slane %v375, 2
  %v377 = vadd.f32 %v375, %v376
  %v378 = vrot.slane %v377, 1
  %v379 = vadd.f32 %v377, %v378
  %v380 = vlaneseq
  %v381 = vshrl.u32 %v380, 7
  %vm382 = vcmp.eq.s32.totalorder %v381, 0
  %vm383 = vcmp.eq.s32.totalorder %v381, 1
  %v384 = vsel %vm383, %v379, 0.0
  %v385 = vsel %vm382, %v326, %v384
  %386 = vst.msk [vmem:[%s3] sm:$0xff] %vm289, %v385
  // Predicated region
  $region10: #{fwd.12} parent=0 // pred_check
    _
  $region11: #{fwd.12} parent=0 // pred_check_branch
    %388 = sbr.rel (0) target = $region13
  $region12: #{fwd.12} parent=0 // pred_region
    _
  $region13: #{fwd.12} parent=0 // pred_fallthru
    _
  // Predicated region
  $region14: #{fwd.12} parent=0 // pred_check
    _
  $region15: #{fwd.12} parent=0 // pred_check_branch
    %390 = sbr.rel (0) target = $region17
  $region16: #{fwd.12} parent=0 // pred_region
    _
  $region17: #{fwd.12} parent=0 // pred_fallthru
    _
  // Predicated region
  $region18: #{fwd.12} parent=0 // pred_check
    _
  $region19: #{fwd.12} parent=0 // pred_check_branch
    %392 = sbr.rel (0) target = $region21
  $region20: #{fwd.12} parent=0 // pred_region
    _
  $region21: #{fwd.12} parent=0 // pred_fallthru
    _
  // Predicated region
  $region22: #{fwd.12} parent=0 // pred_check
    _
  $region23: #{fwd.12} parent=0 // pred_check_branch
    %394 = sbr.rel (0) target = $region25
  $region24: #{fwd.12} parent=0 // pred_region
    _
  $region25: #{fwd.12} parent=0 // pred_fallthru
    _

// kernel: fwd.13
$region0: #{fwd.13}
  #allocation0 [shape = 'u32[]', space=smem, size = 0x4, offset = 0x4, fixed_abs, tag = 'smem constant byte address 0x4 - core index']
  #allocation1 [shape = 'u32[144,128]{1,0:T(1,128)}', space=vmem, size = 0x12000, scoped, tag = 'internal scratch']
  %s0 = inlined_call_operand.vmem [shape: bf16[64,128], index: 0, kind: input, shape index: {}]
  %s1 = inlined_call_operand.vmem [shape: f32[1,128], index: 1, kind: input, shape index: {}]
  %s2 = inlined_call_operand.vmem [shape: f32[1,128], index: 2, kind: input, shape index: {}]
  %s3 = inlined_call_operand.vmem [shape: bf16[64,128], index: 3, kind: input, shape index: {}]
  %s4 = inlined_call_operand.vmem [shape: f32[1,128], index: 4, kind: input, shape index: {}]
  %s5 = inlined_call_operand.vmem [shape: f32[1,128], index: 5, kind: input, shape index: {}]
  %s6 = inlined_call_operand.vmem [shape: f32[64,128], index: 6, kind: output, shape index: {}]
  %s7 = sld [smem:[#allocation0]]
  $region34: #{fwd.13} parent=0
    _
  %s9 = ssub.s32 1, %s7
  %s10 = scalar_select 0, %s9, %s7
  // Predicated region
  $region2: #{fwd.13} parent=0 // pred_check
    _
  $region3: #{fwd.13} parent=0 // pred_check_branch
    %12 = sbr.rel (0) target = $region5
  $region4: #{fwd.13} parent=0 // pred_region
    _
  $region5: #{fwd.13} parent=0 // pred_fallthru
    _
  // Predicated region
  $region6: #{fwd.13} parent=0 // pred_check
    _
  $region7: #{fwd.13} parent=0 // pred_check_branch
    %14 = sbr.rel (0) target = $region9
  $region8: #{fwd.13} parent=0 // pred_region
    _
  $region9: #{fwd.13} parent=0 // pred_fallthru
    _
  // Predicated region
  $region10: #{fwd.13} parent=0 // pred_check
    _
  $region11: #{fwd.13} parent=0 // pred_check_branch
    %16 = sbr.rel (0) target = $region13
  $region12: #{fwd.13} parent=0 // pred_region
    _
  $region13: #{fwd.13} parent=0 // pred_fallthru
    _
  // Predicated region
  $region14: #{fwd.13} parent=0 // pred_check
    _
  $region15: #{fwd.13} parent=0 // pred_check_branch
    %18 = sbr.rel (0) target = $region17
  $region16: #{fwd.13} parent=0 // pred_region
    _
  $region17: #{fwd.13} parent=0 // pred_fallthru
    _
  // Predicated region
  $region18: #{fwd.13} parent=0 // pred_check
    _
  $region19: #{fwd.13} parent=0 // pred_check_branch
    %20 = sbr.rel (0) target = $region21
  $region20: #{fwd.13} parent=0 // pred_region
    _
  $region21: #{fwd.13} parent=0 // pred_fallthru
    _
  // Predicated region
  $region22: #{fwd.13} parent=0 // pred_check
    _
  $region23: #{fwd.13} parent=0 // pred_check_branch
    %22 = sbr.rel (0) target = $region25
  $region24: #{fwd.13} parent=0 // pred_region
    _
  $region25: #{fwd.13} parent=0 // pred_fallthru
    _
  %v23 = vld [vmem:[%s0] sm:$0xf]
  %v24 = vld [vmem:[%s0 + $0x4] sm:$0xf]
  %v25 = vld [vmem:[%s0 + $0x8] sm:$0xf]
  %v26 = vld [vmem:[%s0 + $0xc] sm:$0xf]
  %v27 = vld [vmem:[%s0 + $0x10] sm:$0xf]
  %v28 = vld [vmem:[%s0 + $0x14] sm:$0xf]
  %v29 = vld [vmem:[%s0 + $0x18] sm:$0xf]
  %v30 = vld [vmem:[%s0 + $0x1c] sm:$0xf]
  %v31 = vunpack.c.l.bf16 %v23
  %v32 = vunpack.c.l.bf16 %v24
  %v33 = vunpack.c.l.bf16 %v25
  %v34 = vunpack.c.l.bf16 %v26
  %v35 = vunpack.c.l.bf16 %v27
  %v36 = vunpack.c.l.bf16 %v28
  %v37 = vunpack.c.l.bf16 %v29
  %v38 = vunpack.c.l.bf16 %v30
  %v39 = vld [vmem:[%s1] sm:$0x1]
  %v41 = vlaneseq
  %v42 = vshrl.u32 %v41, 7
  %v43 = vsub.s32 0, %v42
  %v44 = vrot.slane %v39, %v43
  %v46 = vmul.f32 %v31, %v44
  %v47 = vmul.f32 %v32, %v44
  %v48 = vmul.f32 %v33, %v44
  %v49 = vmul.f32 %v34, %v44
  %v50 = vmul.f32 %v35, %v44
  %v51 = vmul.f32 %v36, %v44
  %v52 = vmul.f32 %v37, %v44
  %v53 = vmul.f32 %v38, %v44
  %v54 = vld [vmem:[%s2] sm:$0x1]
  %v56 = vlaneseq
  %v57 = vshrl.u32 %v56, 7
  %v58 = vsub.s32 0, %v57
  %v59 = vrot.slane %v54, %v58
  %v61 = vadd.f32 %v46, %v59
  %v62 = vadd.f32 %v47, %v59
  %v63 = vadd.f32 %v48, %v59
  %v64 = vadd.f32 %v49, %v59
  %v65 = vadd.f32 %v50, %v59
  %v66 = vadd.f32 %v51, %v59
  %v67 = vadd.f32 %v52, %v59
  %v68 = vadd.f32 %v53, %v59
  %v69 = vld [vmem:[%s3] sm:$0xf]
  %v70 = vld [vmem:[%s3 + $0x4] sm:$0xf]
  %v71 = vld [vmem:[%s3 + $0x8] sm:$0xf]
  %v72 = vld [vmem:[%s3 + $0xc] sm:$0xf]
  %v73 = vld [vmem:[%s3 + $0x10] sm:$0xf]
  %v74 = vld [vmem:[%s3 + $0x14] sm:$0xf]
  %v75 = vld [vmem:[%s3 + $0x18] sm:$0xf]
  %v76 = vld [vmem:[%s3 + $0x1c] sm:$0xf]
  %v77 = vunpack.c.l.bf16 %v69
  %v78 = vunpack.c.l.bf16 %v70
  %v79 = vunpack.c.l.bf16 %v71
  %v80 = vunpack.c.l.bf16 %v72
  %v81 = vunpack.c.l.bf16 %v73
  %v82 = vunpack.c.l.bf16 %v74
  %v83 = vunpack.c.l.bf16 %v75
  %v84 = vunpack.c.l.bf16 %v76
  %v85 = vld [vmem:[%s4] sm:$0x1]
  %v87 = vlaneseq
  %v88 = vshrl.u32 %v87, 7
  %v89 = vsub.s32 0, %v88
  %v90 = vrot.slane %v85, %v89
  %v92 = vmul.f32 %v77, %v90
  %v93 = vmul.f32 %v78, %v90
  %v94 = vmul.f32 %v79, %v90
  %v95 = vmul.f32 %v80, %v90
  %v96 = vmul.f32 %v81, %v90
  %v97 = vmul.f32 %v82, %v90
  %v98 = vmul.f32 %v83, %v90
  %v99 = vmul.f32 %v84, %v90
  %v100 = vadd.f32 %v61, %v92
  %v101 = vadd.f32 %v62, %v93
  %v102 = vadd.f32 %v63, %v94
  %v103 = vadd.f32 %v64, %v95
  %v104 = vadd.f32 %v65, %v96
  %v105 = vadd.f32 %v66, %v97
  %v106 = vadd.f32 %v67, %v98
  %v107 = vadd.f32 %v68, %v99
  %v108 = vld [vmem:[%s5] sm:$0x1]
  %v110 = vlaneseq
  %v111 = vshrl.u32 %v110, 7
  %v112 = vsub.s32 0, %v111
  %v113 = vrot.slane %v108, %v112
  %v115 = vadd.f32 %v100, %v113
  %v116 = vadd.f32 %v101, %v113
  %v117 = vadd.f32 %v102, %v113
  %v118 = vadd.f32 %v103, %v113
  %v119 = vadd.f32 %v104, %v113
  %v120 = vadd.f32 %v105, %v113
  %v121 = vadd.f32 %v106, %v113
  %v122 = vadd.f32 %v107, %v113
  %v123 = vmax.f32 %v115, 0.0
  %v124 = vmax.f32 %v116, 0.0
  %v125 = vmax.f32 %v117, 0.0
  %v126 = vmax.f32 %v118, 0.0
  %v127 = vmax.f32 %v119, 0.0
  %v128 = vmax.f32 %v120, 0.0
  %v129 = vmax.f32 %v121, 0.0
  %v130 = vmax.f32 %v122, 0.0
  %131 = vst [vmem:[%s6] sm:$0xff] %v123
  %132 = vst [vmem:[%s6 + $0x8] sm:$0xff] %v124
  %133 = vst [vmem:[%s6 + $0x10] sm:$0xff] %v125
  %134 = vst [vmem:[%s6 + $0x18] sm:$0xff] %v126
  %135 = vst [vmem:[%s6 + $0x20] sm:$0xff] %v127
  %136 = vst [vmem:[%s6 + $0x28] sm:$0xff] %v128
  %137 = vst [vmem:[%s6 + $0x30] sm:$0xff] %v129
  %138 = vst [vmem:[%s6 + $0x38] sm:$0xff] %v130
  // Predicated region
  $region26: #{fwd.13} parent=0 // pred_check
    _
  $region27: #{fwd.13} parent=0 // pred_check_branch
    %140 = sbr.rel (0) target = $region29
  $region28: #{fwd.13} parent=0 // pred_region
    _
  $region29: #{fwd.13} parent=0 // pred_fallthru
    _
  // Predicated region
  $region30: #{fwd.13} parent=0 // pred_check
    _
  $region31: #{fwd.13} parent=0 // pred_check_branch
    %142 = sbr.rel (0) target = $region33
  $region32: #{fwd.13} parent=0 // pred_region
    _
  $region33: #{fwd.13} parent=0 // pred_fallthru
    _

// kernel: tile.32
$region0: #{tile.32}
  #allocation0 [shape = 's32[1]{0}', space=sflag, size = 0x4, scoped, tag = 'scoped memory for tile.32']
  %s0 = inlined_call_operand.<no memory space> [shape: f32[], index: 0, kind: input, shape index: {}]
  %s1 = inlined_call_operand.vmem [shape: f32[1,128], index: 1, kind: output, shape index: {}]
  %v2 = vstv %s0
  %3 = vst [vmem:[%s1] sm:$0x1] %v2

// kernel: fwd.14
$region0: #{fwd.14}
  #allocation0 [shape = 'u32[]', space=smem, size = 0x4, offset = 0x4, fixed_abs, tag = 'smem constant byte address 0x4 - core index']
  #allocation1 [shape = 'u32[144,128]{1,0:T(1,128)}', space=vmem, size = 0x12000, scoped, tag = 'internal scratch']
  %s0 = inlined_call_operand.vmem [shape: bf16[128,64], index: 0, kind: input, shape index: {}]
  %s1 = inlined_call_operand.vmem [shape: bf16[64,16], index: 1, kind: input, shape index: {}]
  %s2 = inlined_call_operand.vmem [shape: bf16[128,16], index: 2, kind: output, shape index: {0}]
  %s3 = inlined_call_operand.vmem [shape: f32[1,8,16], index: 3, kind: output, shape index: {1}]
  %4 = xla_tuple %s2, %s3
  %s5 = sld [smem:[#allocation0]]
  $region26: #{fwd.14} parent=0
    _
  %s7 = ssub.s32 1, %s5
  %s8 = scalar_select 0, %s7, %s5
  // Predicated region
  $region2: #{fwd.14} parent=0 // pred_check
    _
  $region3: #{fwd.14} parent=0 // pred_check_branch
    %10 = sbr.rel (0) target = $region5
  $region4: #{fwd.14} parent=0 // pred_region
    _
  $region5: #{fwd.14} parent=0 // pred_fallthru
    _
  // Predicated region
  $region6: #{fwd.14} parent=0 // pred_check
    _
  $region7: #{fwd.14} parent=0 // pred_check_branch
    %12 = sbr.rel (0) target = $region9
  $region8: #{fwd.14} parent=0 // pred_region
    _
  $region9: #{fwd.14} parent=0 // pred_fallthru
    _
  %v14 = vld [vmem:[%s0] sm:$0xf]
  %v15 = vld [vmem:[%s0 + $0x4] sm:$0xf]
  %v16 = vld [vmem:[%s0 + $0x8] sm:$0xf]
  %v17 = vld [vmem:[%s0 + $0xc] sm:$0xf]
  %v18 = vld [vmem:[%s0 + $0x10] sm:$0xf]
  %v19 = vld [vmem:[%s0 + $0x14] sm:$0xf]
  %v20 = vld [vmem:[%s0 + $0x18] sm:$0xf]
  %v21 = vld [vmem:[%s0 + $0x1c] sm:$0xf]
  %v22 = vld [vmem:[%s0 + $0x20] sm:$0xf]
  %v23 = vld [vmem:[%s0 + $0x24] sm:$0xf]
  %v24 = vld [vmem:[%s0 + $0x28] sm:$0xf]
  %v25 = vld [vmem:[%s0 + $0x2c] sm:$0xf]
  %v26 = vld [vmem:[%s0 + $0x30] sm:$0xf]
  %v27 = vld [vmem:[%s0 + $0x34] sm:$0xf]
  %v28 = vld [vmem:[%s0 + $0x38] sm:$0xf]
  %v29 = vld [vmem:[%s0 + $0x3c] sm:$0xf]
  %v30 = vld [vmem:[%s1] sm:$0xf]
  %v31 = vld [vmem:[%s1 + $0x4] sm:$0xf]
  %v32 = vld [vmem:[%s1 + $0x8] sm:$0xf]
  %v33 = vld [vmem:[%s1 + $0xc] sm:$0xf]
  %v34 = vld [vmem:[%s1 + $0x10] sm:$0xf]
  %v35 = vld [vmem:[%s1 + $0x14] sm:$0xf]
  %v36 = vld [vmem:[%s1 + $0x18] sm:$0xf]
  %v37 = vld [vmem:[%s1 + $0x1c] sm:$0xf]
  %v54 = vunpack.c.l.b16 %v14
  %v55 = vunpack.c.l.b16 %v15
  %v56 = vunpack.c.l.b16 %v16
  %v57 = vunpack.c.l.b16 %v17
  %v58 = vunpack.c.l.b16 %v18
  %v59 = vunpack.c.l.b16 %v19
  %v60 = vunpack.c.l.b16 %v20
  %v61 = vunpack.c.l.b16 %v21
  %v62 = vunpack.c.l.b16 %v22
  %v63 = vunpack.c.l.b16 %v23
  %v64 = vunpack.c.l.b16 %v24
  %v65 = vunpack.c.l.b16 %v25
  %v66 = vunpack.c.l.b16 %v26
  %v67 = vunpack.c.l.b16 %v27
  %v68 = vunpack.c.l.b16 %v28
  %v69 = vunpack.c.l.b16 %v29
  %v70 = vpack.c.b16 %v55, %v54
  %v71 = vpack.c.b16 %v57, %v56
  %v72 = vpack.c.b16 %v59, %v58
  %v73 = vpack.c.b16 %v61, %v60
  %v74 = vpack.c.b16 %v63, %v62
  %v75 = vpack.c.b16 %v65, %v64
  %v76 = vpack.c.b16 %v67, %v66
  %v77 = vpack.c.b16 %v69, %v68
  %v86 = vunpack.c.l.b16 %v30
  %v87 = vunpack.c.l.b16 %v31
  %v88 = vunpack.c.l.b16 %v32
  %v89 = vunpack.c.l.b16 %v33
  %v90 = vunpack.c.l.b16 %v34
  %v91 = vunpack.c.l.b16 %v35
  %v92 = vunpack.c.l.b16 %v36
  %v93 = vunpack.c.l.b16 %v37
  %v94 = vpack.c.b16 %v87, %v86
  %v95 = vpack.c.b16 %v89, %v88
  %v96 = vpack.c.b16 %v91, %v90
  %v97 = vpack.c.b16 %v93, %v92
  %vm102 = vcmask 523264
  %v104 = vsel %vm102, %v70, 0
  %v107 = vsel %vm102, %v71, 0
  %v110 = vsel %vm102, %v72, 0
  %v113 = vsel %vm102, %v73, 0
  %v116 = vsel %vm102, %v74, 0
  %v119 = vsel %vm102, %v75, 0
  %v122 = vsel %vm102, %v76, 0
  %v125 = vsel %vm102, %v77, 0
  %127 = vmatprep.subr.bf16.mxu0 0
  %128 = vmatpush1.bf16.msra.mxu0 %v94
  %129 = vmatprep.subr.bf16.mxu0 0
  %130 = vmatpush1.bf16.msra.mxu0 %v95
  %131 = vmatprep.subr.bf16.mxu0 0
  %132 = vmatpush1.bf16.msra.mxu0 %v96
  %133 = vmatprep.subr.bf16.mxu0 0
  %134 = vmatpush1.bf16.msra.mxu0 %v97
  %135 = vmatprep.subr.bf16.mxu0 0
  %136 = vmatpush1.bf16.msra.mxu0 0
  %137 = vmatprep.subr.bf16.mxu0 0
  %138 = vmatpush1.bf16.msra.mxu0 0
  %139 = vmatprep.subr.bf16.mxu0 0
  %140 = vmatpush1.bf16.msra.mxu0 0
  %141 = vmatprep.subr.bf16.mxu0 0
  %142 = vmatpush1.bf16.msra.mxu0 0
  %143 = vmatprep.subr.bf16.mxu0 0
  %144 = vmatpush1.bf16.msra.mxu0 0
  %145 = vmatprep.subr.bf16.mxu0 0
  %146 = vmatpush1.bf16.msra.mxu0 0
  %147 = vmatprep.subr.bf16.mxu0 0
  %148 = vmatpush1.bf16.msra.mxu0 0
  %149 = vmatprep.subr.bf16.mxu0 0
  %150 = vmatpush1.bf16.msra.mxu0 0
  %151 = vmatprep.subr.bf16.mxu0 0
  %152 = vmatpush1.bf16.msra.mxu0 0
  %153 = vmatprep.subr.bf16.mxu0 0
  %154 = vmatpush1.bf16.msra.mxu0 0
  %155 = vmatprep.subr.bf16.mxu0 0
  %156 = vmatpush1.bf16.msra.mxu0 0
  %157 = vmatprep.subr.bf16.mxu0 0
  %158 = vmatpush1.bf16.msra.mxu0 0
  %159 = vmatprep.mubr.bf16.mxu0 0
  %160 = vmatmul.mubr.bf16.gmra.mrb[0].mxu0 %v104
  %v161 = vpop.f32.mrb[0].mxu0
  %v162 = vadd.f32 0.0, %v161
  %v163 = vpop.f32.mrb[0].mxu0
  %v164 = vpop.f32.mrb[0].mxu0
  %v165 = vadd.f32 0.0, %v164
  %v166 = vpop.f32.mrb[0].mxu0
  %167 = vmatprep.mubr.bf16.mxu0 0
  %168 = vmatmul.mubr.bf16.gmra.mrb[0].mxu0 %v107
  %v169 = vpop.f32.mrb[0].mxu0
  %v170 = vadd.f32 0.0, %v169
  %v171 = vpop.f32.mrb[0].mxu0
  %v172 = vpop.f32.mrb[0].mxu0
  %v173 = vadd.f32 0.0, %v172
  %v174 = vpop.f32.mrb[0].mxu0
  %175 = vmatprep.mubr.bf16.mxu0 0
  %176 = vmatmul.mubr.bf16.gmra.mrb[0].mxu0 %v110
  %v177 = vpop.f32.mrb[0].mxu0
  %v178 = vadd.f32 0.0, %v177
  %v179 = vpop.f32.mrb[0].mxu0
  %v180 = vpop.f32.mrb[0].mxu0
  %v181 = vadd.f32 0.0, %v180
  %v182 = vpop.f32.mrb[0].mxu0
  %183 = vmatprep.mubr.bf16.mxu0 0
  %184 = vmatmul.mubr.bf16.gmra.mrb[0].mxu0 %v113
  %v185 = vpop.f32.mrb[0].mxu0
  %v186 = vadd.f32 0.0, %v185
  %v187 = vpop.f32.mrb[0].mxu0
  %v188 = vpop.f32.mrb[0].mxu0
  %v189 = vadd.f32 0.0, %v188
  %v190 = vpop.f32.mrb[0].mxu0
  %191 = vmatprep.mubr.bf16.mxu0 0
  %192 = vmatmul.mubr.bf16.gmra.mrb[0].mxu0 %v116
  %v193 = vpop.f32.mrb[0].mxu0
  %v194 = vadd.f32 0.0, %v193
  %v195 = vpop.f32.mrb[0].mxu0
  %v196 = vpop.f32.mrb[0].mxu0
  %v197 = vadd.f32 0.0, %v196
  %v198 = vpop.f32.mrb[0].mxu0
  %199 = vmatprep.mubr.bf16.mxu0 0
  %200 = vmatmul.mubr.bf16.gmra.mrb[0].mxu0 %v119
  %v201 = vpop.f32.mrb[0].mxu0
  %v202 = vadd.f32 0.0, %v201
  %v203 = vpop.f32.mrb[0].mxu0
  %v204 = vpop.f32.mrb[0].mxu0
  %v205 = vadd.f32 0.0, %v204
  %v206 = vpop.f32.mrb[0].mxu0
  %207 = vmatprep.mubr.bf16.mxu0 0
  %208 = vmatmul.mubr.bf16.gmra.mrb[0].mxu0 %v122
  %v209 = vpop.f32.mrb[0].mxu0
  %v210 = vadd.f32 0.0, %v209
  %v211 = vpop.f32.mrb[0].mxu0
  %v212 = vpop.f32.mrb[0].mxu0
  %v213 = vadd.f32 0.0, %v212
  %v214 = vpop.f32.mrb[0].mxu0
  %215 = vmatprep.mubr.bf16.mxu0 0
  %216 = vmatmul.mubr.bf16.gmra.mrb[0].mxu0 %v125
  %v217 = vpop.f32.mrb[0].mxu0
  %v218 = vadd.f32 0.0, %v217
  %v219 = vpop.f32.mrb[0].mxu0
  %v220 = vpop.f32.mrb[0].mxu0
  %v221 = vadd.f32 0.0, %v220
  %v222 = vpop.f32.mrb[0].mxu0
  %223 = vdwg.mxu0
  %v224 = vpack.c.bf16 %v165, %v162
  %v225 = vpack.c.bf16 %v173, %v170
  %v226 = vpack.c.bf16 %v181, %v178
  %v227 = vpack.c.bf16 %v189, %v186
  %v228 = vpack.c.bf16 %v197, %v194
  %v229 = vpack.c.bf16 %v205, %v202
  %v230 = vpack.c.bf16 %v213, %v210
  %v231 = vpack.c.bf16 %v221, %v218
  %v240 = vunpack.c.l.b16 %v224
  %v241 = vunpack.c.h.b16 %v224
  %v242 = vunpack.c.l.b16 %v225
  %v243 = vunpack.c.h.b16 %v225
  %v244 = vunpack.c.l.b16 %v226
  %v245 = vunpack.c.h.b16 %v226
  %v246 = vunpack.c.l.b16 %v227
  %v247 = vunpack.c.h.b16 %v227
  %v248 = vunpack.c.l.b16 %v228
  %v249 = vunpack.c.h.b16 %v228
  %v250 = vunpack.c.l.b16 %v229
  %v251 = vunpack.c.h.b16 %v229
  %v252 = vunpack.c.l.b16 %v230
  %v253 = vunpack.c.h.b16 %v230
  %v254 = vunpack.c.l.b16 %v231
  %v255 = vunpack.c.h.b16 %v231
  %v256 = vpack.c.b16 %v240, %v240
  %v257 = vpack.c.b16 %v241, %v241
  %v258 = vpack.c.b16 %v242, %v242
  %v259 = vpack.c.b16 %v243, %v243
  %v260 = vpack.c.b16 %v244, %v244
  %v261 = vpack.c.b16 %v245, %v245
  %v262 = vpack.c.b16 %v246, %v246
  %v263 = vpack.c.b16 %v247, %v247
  %v264 = vpack.c.b16 %v248, %v248
  %v265 = vpack.c.b16 %v249, %v249
  %v266 = vpack.c.b16 %v250, %v250
  %v267 = vpack.c.b16 %v251, %v251
  %v268 = vpack.c.b16 %v252, %v252
  %v269 = vpack.c.b16 %v253, %v253
  %v270 = vpack.c.b16 %v254, %v254
  %v271 = vpack.c.b16 %v255, %v255
  %vm288 = vcmask 125952
  %289 = vst.msk [vmem:[%s2] sm:$0xf] %vm288, %v256
  %290 = vst.msk [vmem:[%s2 + $0x4] sm:$0xf] %vm288, %v257
  %291 = vst.msk [vmem:[%s2 + $0x8] sm:$0xf] %vm288, %v258
  %292 = vst.msk [vmem:[%s2 + $0xc] sm:$0xf] %vm288, %v259
  %293 = vst.msk [vmem:[%s2 + $0x10] sm:$0xf] %vm288, %v260
  %294 = vst.msk [vmem:[%s2 + $0x14] sm:$0xf] %vm288, %v261
  %295 = vst.msk [vmem:[%s2 + $0x18] sm:$0xf] %vm288, %v262
  %296 = vst.msk [vmem:[%s2 + $0x1c] sm:$0xf] %vm288, %v263
  %297 = vst.msk [vmem:[%s2 + $0x20] sm:$0xf] %vm288, %v264
  %298 = vst.msk [vmem:[%s2 + $0x24] sm:$0xf] %vm288, %v265
  %299 = vst.msk [vmem:[%s2 + $0x28] sm:$0xf] %vm288, %v266
  %300 = vst.msk [vmem:[%s2 + $0x2c] sm:$0xf] %vm288, %v267
  %301 = vst.msk [vmem:[%s2 + $0x30] sm:$0xf] %vm288, %v268
  %302 = vst.msk [vmem:[%s2 + $0x34] sm:$0xf] %vm288, %v269
  %303 = vst.msk [vmem:[%s2 + $0x38] sm:$0xf] %vm288, %v270
  %304 = vst.msk [vmem:[%s2 + $0x3c] sm:$0xf] %vm288, %v271
  %vm305 = vcmask 130048
  %v306 = vsel %vm305, %v162, 0.0
  %v307 = vsel %vm305, %v165, 0.0
  %v308 = vadd.f32 %v306, %v307
  %v309 = vsel %vm305, %v170, 0.0
  %v310 = vadd.f32 %v308, %v309
  %v311 = vsel %vm305, %v173, 0.0
  %v312 = vadd.f32 %v310, %v311
  %v313 = vsel %vm305, %v178, 0.0
  %v314 = vadd.f32 %v312, %v313
  %v315 = vsel %vm305, %v181, 0.0
  %v316 = vadd.f32 %v314, %v315
  %v317 = vsel %vm305, %v186, 0.0
  %v318 = vadd.f32 %v316, %v317
  %v319 = vsel %vm305, %v189, 0.0
  %v320 = vadd.f32 %v318, %v319
  %v321 = vsel %vm305, %v194, 0.0
  %v322 = vadd.f32 %v320, %v321
  %v323 = vsel %vm305, %v197, 0.0
  %v324 = vadd.f32 %v322, %v323
  %v325 = vsel %vm305, %v202, 0.0
  %v326 = vadd.f32 %v324, %v325
  %v327 = vsel %vm305, %v205, 0.0
  %v328 = vadd.f32 %v326, %v327
  %v329 = vsel %vm305, %v210, 0.0
  %v330 = vadd.f32 %v328, %v329
  %v331 = vsel %vm305, %v213, 0.0
  %v332 = vadd.f32 %v330, %v331
  %v333 = vsel %vm305, %v218, 0.0
  %v334 = vadd.f32 %v332, %v333
  %v335 = vsel %vm305, %v221, 0.0
  %v336 = vadd.f32 %v334, %v335
  %v337 = vrot.slane %v336, 4
  %v338 = vadd.f32 %v336, %v337
  %v339 = vrot.slane %v338, 2
  %v340 = vadd.f32 %v338, %v339
  %v341 = vrot.slane %v340, 1
  %v342 = vadd.f32 %v340, %v341
  %v343 = vmul.f32 %v162, %v162
  %v344 = vmul.f32 %v165, %v165
  %v345 = vmul.f32 %v170, %v170
  %v346 = vmul.f32 %v173, %v173
  %v347 = vmul.f32 %v178, %v178
  %v348 = vmul.f32 %v181, %v181
  %v349 = vmul.f32 %v186, %v186
  %v350 = vmul.f32 %v189, %v189
  %v351 = vmul.f32 %v194, %v194
  %v352 = vmul.f32 %v197, %v197
  %v353 = vmul.f32 %v202, %v202
  %v354 = vmul.f32 %v205, %v205
  %v355 = vmul.f32 %v210, %v210
  %v356 = vmul.f32 %v213, %v213
  %v357 = vmul.f32 %v218, %v218
  %v358 = vmul.f32 %v221, %v221
  %v359 = vsel %vm305, %v343, 0.0
  %v360 = vsel %vm305, %v344, 0.0
  %v361 = vadd.f32 %v359, %v360
  %v362 = vsel %vm305, %v345, 0.0
  %v363 = vadd.f32 %v361, %v362
  %v364 = vsel %vm305, %v346, 0.0
  %v365 = vadd.f32 %v363, %v364
  %v366 = vsel %vm305, %v347, 0.0
  %v367 = vadd.f32 %v365, %v366
  %v368 = vsel %vm305, %v348, 0.0
  %v369 = vadd.f32 %v367, %v368
  %v370 = vsel %vm305, %v349, 0.0
  %v371 = vadd.f32 %v369, %v370
  %v372 = vsel %vm305, %v350, 0.0
  %v373 = vadd.f32 %v371, %v372
  %v374 = vsel %vm305, %v351, 0.0
  %v375 = vadd.f32 %v373, %v374
  %v376 = vsel %vm305, %v352, 0.0
  %v377 = vadd.f32 %v375, %v376
  %v378 = vsel %vm305, %v353, 0.0
  %v379 = vadd.f32 %v377, %v378
  %v380 = vsel %vm305, %v354, 0.0
  %v381 = vadd.f32 %v379, %v380
  %v382 = vsel %vm305, %v355, 0.0
  %v383 = vadd.f32 %v381, %v382
  %v384 = vsel %vm305, %v356, 0.0
  %v385 = vadd.f32 %v383, %v384
  %v386 = vsel %vm305, %v357, 0.0
  %v387 = vadd.f32 %v385, %v386
  %v388 = vsel %vm305, %v358, 0.0
  %v389 = vadd.f32 %v387, %v388
  %v390 = vrot.slane %v389, 4
  %v391 = vadd.f32 %v389, %v390
  %v392 = vrot.slane %v391, 2
  %v393 = vadd.f32 %v391, %v392
  %v394 = vrot.slane %v393, 1
  %v395 = vadd.f32 %v393, %v394
  %v396 = vlaneseq
  %v397 = vshrl.u32 %v396, 7
  %vm398 = vcmp.eq.s32.totalorder %v397, 0
  %vm399 = vcmp.eq.s32.totalorder %v397, 1
  %v400 = vsel %vm399, %v395, 0.0
  %v401 = vsel %vm398, %v342, %v400
  %402 = vst.msk [vmem:[%s3] sm:$0xff] %vm305, %v401
  // Predicated region
  $region10: #{fwd.14} parent=0 // pred_check
    _
  $region11: #{fwd.14} parent=0 // pred_check_branch
    %404 = sbr.rel (0) target = $region13
  $region12: #{fwd.14} parent=0 // pred_region
    _
  $region13: #{fwd.14} parent=0 // pred_fallthru
    _
  // Predicated region
  $region14: #{fwd.14} parent=0 // pred_check
    _
  $region15: #{fwd.14} parent=0 // pred_check_branch
    %406 = sbr.rel (0) target = $region17
  $region16: #{fwd.14} parent=0 // pred_region
    _
  $region17: #{fwd.14} parent=0 // pred_fallthru
    _
  // Predicated region
  $region18: #{fwd.14} parent=0 // pred_check
    _
  $region19: #{fwd.14} parent=0 // pred_check_branch
    %408 = sbr.rel (0) target = $region21
  $region20: #{fwd.14} parent=0 // pred_region
    _
  $region21: #{fwd.14} parent=0 // pred_fallthru
    _
  // Predicated region
  $region22: #{fwd.14} parent=0 // pred_check
    _
  $region23: #{fwd.14} parent=0 // pred_check_branch
    %410 = sbr.rel (0) target = $region25
  $region24: #{fwd.14} parent=0 // pred_region
    _
  $region25: #{fwd.14} parent=0 // pred_fallthru
    _

// kernel: fwd.17
$region0: #{fwd.17}
  #allocation0 [shape = 'u32[]', space=smem, size = 0x4, offset = 0x4, fixed_abs, tag = 'smem constant byte address 0x4 - core index']
  #allocation1 [shape = 'u32[144,128]{1,0:T(1,128)}', space=vmem, size = 0x12000, scoped, tag = 'internal scratch']
  %s0 = inlined_call_operand.vmem [shape: bf16[64,128], index: 0, kind: input, shape index: {}]
  %s1 = inlined_call_operand.vmem [shape: f32[1,128], index: 1, kind: input, shape index: {}]
  %s2 = inlined_call_operand.vmem [shape: f32[1,128], index: 2, kind: input, shape index: {}]
  %s3 = inlined_call_operand.vmem [shape: f32[64,128], index: 3, kind: input, shape index: {}]
  %s4 = inlined_call_operand.vmem [shape: f32[1,128], index: 4, kind: input, shape index: {}]
  %s5 = inlined_call_operand.vmem [shape: f32[1,128], index: 5, kind: input, shape index: {}]
  %s6 = inlined_call_operand.vmem [shape: f32[64,128], index: 6, kind: output, shape index: {}]
  %s7 = sld [smem:[#allocation0]]
  $region34: #{fwd.17} parent=0
    _
  %s9 = ssub.s32 1, %s7
  %s10 = scalar_select 0, %s9, %s7
  // Predicated region
  $region2: #{fwd.17} parent=0 // pred_check
    _
  $region3: #{fwd.17} parent=0 // pred_check_branch
    %12 = sbr.rel (0) target = $region5
  $region4: #{fwd.17} parent=0 // pred_region
    _
  $region5: #{fwd.17} parent=0 // pred_fallthru
    _
  // Predicated region
  $region6: #{fwd.17} parent=0 // pred_check
    _
  $region7: #{fwd.17} parent=0 // pred_check_branch
    %14 = sbr.rel (0) target = $region9
  $region8: #{fwd.17} parent=0 // pred_region
    _
  $region9: #{fwd.17} parent=0 // pred_fallthru
    _
  // Predicated region
  $region10: #{fwd.17} parent=0 // pred_check
    _
  $region11: #{fwd.17} parent=0 // pred_check_branch
    %16 = sbr.rel (0) target = $region13
  $region12: #{fwd.17} parent=0 // pred_region
    _
  $region13: #{fwd.17} parent=0 // pred_fallthru
    _
  // Predicated region
  $region14: #{fwd.17} parent=0 // pred_check
    _
  $region15: #{fwd.17} parent=0 // pred_check_branch
    %18 = sbr.rel (0) target = $region17
  $region16: #{fwd.17} parent=0 // pred_region
    _
  $region17: #{fwd.17} parent=0 // pred_fallthru
    _
  // Predicated region
  $region18: #{fwd.17} parent=0 // pred_check
    _
  $region19: #{fwd.17} parent=0 // pred_check_branch
    %20 = sbr.rel (0) target = $region21
  $region20: #{fwd.17} parent=0 // pred_region
    _
  $region21: #{fwd.17} parent=0 // pred_fallthru
    _
  // Predicated region
  $region22: #{fwd.17} parent=0 // pred_check
    _
  $region23: #{fwd.17} parent=0 // pred_check_branch
    %22 = sbr.rel (0) target = $region25
  $region24: #{fwd.17} parent=0 // pred_region
    _
  $region25: #{fwd.17} parent=0 // pred_fallthru
    _
  %v23 = vld [vmem:[%s0] sm:$0xf]
  %v24 = vld [vmem:[%s0 + $0x4] sm:$0xf]
  %v25 = vld [vmem:[%s0 + $0x8] sm:$0xf]
  %v26 = vld [vmem:[%s0 + $0xc] sm:$0xf]
  %v27 = vld [vmem:[%s0 + $0x10] sm:$0xf]
  %v28 = vld [vmem:[%s0 + $0x14] sm:$0xf]
  %v29 = vld [vmem:[%s0 + $0x18] sm:$0xf]
  %v30 = vld [vmem:[%s0 + $0x1c] sm:$0xf]
  %v31 = vunpack.c.l.bf16 %v23
  %v32 = vunpack.c.l.bf16 %v24
  %v33 = vunpack.c.l.bf16 %v25
  %v34 = vunpack.c.l.bf16 %v26
  %v35 = vunpack.c.l.bf16 %v27
  %v36 = vunpack.c.l.bf16 %v28
  %v37 = vunpack.c.l.bf16 %v29
  %v38 = vunpack.c.l.bf16 %v30
  %v39 = vld [vmem:[%s1] sm:$0x1]
  %v41 = vlaneseq
  %v42 = vshrl.u32 %v41, 7
  %v43 = vsub.s32 0, %v42
  %v44 = vrot.slane %v39, %v43
  %v46 = vmul.f32 %v31, %v44
  %v47 = vmul.f32 %v32, %v44
  %v48 = vmul.f32 %v33, %v44
  %v49 = vmul.f32 %v34, %v44
  %v50 = vmul.f32 %v35, %v44
  %v51 = vmul.f32 %v36, %v44
  %v52 = vmul.f32 %v37, %v44
  %v53 = vmul.f32 %v38, %v44
  %v54 = vld [vmem:[%s2] sm:$0x1]
  %v56 = vlaneseq
  %v57 = vshrl.u32 %v56, 7
  %v58 = vsub.s32 0, %v57
  %v59 = vrot.slane %v54, %v58
  %v61 = vadd.f32 %v46, %v59
  %v62 = vadd.f32 %v47, %v59
  %v63 = vadd.f32 %v48, %v59
  %v64 = vadd.f32 %v49, %v59
  %v65 = vadd.f32 %v50, %v59
  %v66 = vadd.f32 %v51, %v59
  %v67 = vadd.f32 %v52, %v59
  %v68 = vadd.f32 %v53, %v59
  %v69 = vld [vmem:[%s3] sm:$0xff]
  %v70 = vld [vmem:[%s3 + $0x8] sm:$0xff]
  %v71 = vld [vmem:[%s3 + $0x10] sm:$0xff]
  %v72 = vld [vmem:[%s3 + $0x18] sm:$0xff]
  %v73 = vld [vmem:[%s3 + $0x20] sm:$0xff]
  %v74 = vld [vmem:[%s3 + $0x28] sm:$0xff]
  %v75 = vld [vmem:[%s3 + $0x30] sm:$0xff]
  %v76 = vld [vmem:[%s3 + $0x38] sm:$0xff]
  %v77 = vld [vmem:[%s4] sm:$0x1]
  %v79 = vlaneseq
  %v80 = vshrl.u32 %v79, 7
  %v81 = vsub.s32 0, %v80
  %v82 = vrot.slane %v77, %v81
  %v84 = vmul.f32 %v69, %v82
  %v85 = vmul.f32 %v70, %v82
  %v86 = vmul.f32 %v71, %v82
  %v87 = vmul.f32 %v72, %v82
  %v88 = vmul.f32 %v73, %v82
  %v89 = vmul.f32 %v74, %v82
  %v90 = vmul.f32 %v75, %v82
  %v91 = vmul.f32 %v76, %v82
  %v92 = vadd.f32 %v61, %v84
  %v93 = vadd.f32 %v62, %v85
  %v94 = vadd.f32 %v63, %v86
  %v95 = vadd.f32 %v64, %v87
  %v96 = vadd.f32 %v65, %v88
  %v97 = vadd.f32 %v66, %v89
  %v98 = vadd.f32 %v67, %v90
  %v99 = vadd.f32 %v68, %v91
  %v100 = vld [vmem:[%s5] sm:$0x1]
  %v102 = vlaneseq
  %v103 = vshrl.u32 %v102, 7
  %v104 = vsub.s32 0, %v103
  %v105 = vrot.slane %v100, %v104
  %v107 = vadd.f32 %v92, %v105
  %v108 = vadd.f32 %v93, %v105
  %v109 = vadd.f32 %v94, %v105
  %v110 = vadd.f32 %v95, %v105
  %v111 = vadd.f32 %v96, %v105
  %v112 = vadd.f32 %v97, %v105
  %v113 = vadd.f32 %v98, %v105
  %v114 = vadd.f32 %v99, %v105
  %v115 = vmax.f32 %v107, 0.0
  %v116 = vmax.f32 %v108, 0.0
  %v117 = vmax.f32 %v109, 0.0
  %v118 = vmax.f32 %v110, 0.0
  %v119 = vmax.f32 %v111, 0.0
  %v120 = vmax.f32 %v112, 0.0
  %v121 = vmax.f32 %v113, 0.0
  %v122 = vmax.f32 %v114, 0.0
  %123 = vst [vmem:[%s6] sm:$0xff] %v115
  %124 = vst [vmem:[%s6 + $0x8] sm:$0xff] %v116
  %125 = vst [vmem:[%s6 + $0x10] sm:$0xff] %v117
  %126 = vst [vmem:[%s6 + $0x18] sm:$0xff] %v118
  %127 = vst [vmem:[%s6 + $0x20] sm:$0xff] %v119
  %128 = vst [vmem:[%s6 + $0x28] sm:$0xff] %v120
  %129 = vst [vmem:[%s6 + $0x30] sm:$0xff] %v121
  %130 = vst [vmem:[%s6 + $0x38] sm:$0xff] %v122
  // Predicated region
  $region26: #{fwd.17} parent=0 // pred_check
    _
  $region27: #{fwd.17} parent=0 // pred_check_branch
    %132 = sbr.rel (0) target = $region29
  $region28: #{fwd.17} parent=0 // pred_region
    _
  $region29: #{fwd.17} parent=0 // pred_fallthru
    _
  // Predicated region
  $region30: #{fwd.17} parent=0 // pred_check
    _
  $region31: #{fwd.17} parent=0 // pred_check_branch
    %134 = sbr.rel (0) target = $region33
  $region32: #{fwd.17} parent=0 // pred_region
    _
  $region33: #{fwd.17} parent=0 // pred_fallthru
    _

</llo_original>
